<compile_context>
chip_gen: v7x
topology: tpu7x:2x2x1
jax: 0.10.0
libtpu: 0.0.40
codegen_flags: <defaults>
</compile_context>

<pallas_src>
import functools

import numpy as np
import jax
import jax.numpy as jnp
from jax import lax
from jax.experimental import pallas as pl
from jax.experimental.pallas import tpu as pltpu


C1, C2, HID = 16, 32, 32          # backbone 3->16->32, siamese hidden 32
CIN = 3


# ----------------------------------------------------------------------------
# BlockSpec helper (whole-array blocks, grid=(1,))
# ----------------------------------------------------------------------------
def _full_spec(shape):
    nd = len(shape)

    def idx(i):
        return (0,) * nd

    return pl.BlockSpec(shape, idx)


# ----------------------------------------------------------------------------
# Host-side (XLA, inside jit) im2col for conv1 only, column-parity split.
# Even/odd output columns are separated so that the in-kernel stride-2 conv2
# only ever needs unit-stride slices of the VMEM-resident conv1 activations.
# ----------------------------------------------------------------------------
def _conv1_patches_split(x, kh, kw, stride):
    """x: (H, W, Cin) -> patches (2, oh, ceil(ow/2), kh*kw*Cin), plus (oh, ow)."""
    H, W, C = x.shape
    oh = (H - kh) // stride + 1
    ow = (W - kw) // stride + 1
    cols = []
    for di in range(kh):
        for dj in range(kw):
            cols.append(x[di:di + stride * (oh - 1) + 1:stride,
                          dj:dj + stride * (ow - 1) + 1:stride, :])
    patches = jnp.concatenate(cols, axis=-1)               # (oh, ow, kh*kw*C)
    we = (ow + 1) // 2
    pe = patches[:, 0::2, :]                               # even output cols
    po = patches[:, 1::2, :]                               # odd output cols
    if po.shape[1] < we:
        po = jnp.pad(po, ((0, 0), (0, we - po.shape[1]), (0, 0)))
    return jnp.stack([pe, po], axis=0), oh, ow


# ----------------------------------------------------------------------------
# In-kernel shared body: conv1(3x3,s2)+ReLU -> conv2(3x3,s2)+ReLU -> ds 1x1.
# All intermediates live in VMEM scratch; only small 2-D matmuls + static
# unit-stride ref slices are used.
# ----------------------------------------------------------------------------
def _backbone_ds_body(p1_ref, w1_ref, b1_ref, w2_ref, b2_ref, dsw_ref, dsb_ref,
                      y1_ref, dst_ref, *, oh1, ow1, oh2, ow2):
    w1 = w1_ref[...]
    b1 = b1_ref[...]
    w2 = w2_ref[...]
    b2 = b2_ref[...]
    dsw = dsw_ref[...]
    dsb = dsb_ref[...]

    # conv1 (3x3 stride 2) + ReLU; output stored split by output-column parity
    for par in range(2):
        for r in range(oh1):
            p = p1_ref[par, r, :, :]                                     # (wpar, 9*Cin)
            y = jnp.dot(p, w1, preferred_element_type=jnp.float32) + b1  # (wpar, C1)
            y1_ref[par, r, :, :] = jnp.maximum(y, 0.0)

    # conv2 (3x3 stride 2) + ReLU, fused with the 1x1 downsample conv
    for i in range(oh2):
        acc = jnp.zeros((ow2, C2), jnp.float32)
        for di in range(3):
            for dj in range(3):
                tap = y1_ref[dj % 2, 2 * i + di, dj // 2:dj // 2 + ow2, :]   # (ow2, C1)
                wt = w2[(3 * di + dj) * C1:(3 * di + dj + 1) * C1, :]        # (C1, C2)
                acc = acc + jnp.dot(tap, wt, preferred_element_type=jnp.float32)
        feat = jnp.maximum(acc + b2, 0.0)                                    # (ow2, C2)
        dst_ref[i, :, :] = (jnp.dot(feat, dsw, preferred_element_type=jnp.float32)
                            + dsb)                                           # (ow2, HID)


# ----------------------------------------------------------------------------
# temple(): backbone + downsample -> template kernel, one pallas_call
# ----------------------------------------------------------------------------
def _temple_kernel(p1_ref, w1_ref, b1_ref, w2_ref, b2_ref, dsw_ref, dsb_ref,
                   out_ref, y1_ref, *, oh1, ow1, oh2, ow2):
    _backbone_ds_body(p1_ref, w1_ref, b1_ref, w2_ref, b2_ref, dsw_ref, dsb_ref,
                      y1_ref, out_ref, oh1=oh1, ow1=ow1, oh2=oh2, ow2=ow2)


def _backbone_ds_call(p1, params, *, oh1, ow1, oh2, ow2):
    wpar = p1.shape[2]
    args = (p1, params["bb1_w"], params["bb1_b"], params["bb2_w"], params["bb2_b"],
            params["ds_w"], params["ds_b"])
    kernel = functools.partial(_temple_kernel, oh1=oh1, ow1=ow1, oh2=oh2, ow2=ow2)
    return pl.pallas_call(
        kernel,
        out_shape=jax.ShapeDtypeStruct((oh2, ow2, HID), jnp.float32),
        grid=(1,),
        in_specs=[_full_spec(a.shape) for a in args],
        out_specs=_full_spec((oh2, ow2, HID)),
        scratch_shapes=[pltpu.VMEM((2, oh1, wpar, C1), jnp.float32)],
        compiler_params=pltpu.CompilerParams(dimension_semantics=("arbitrary",)),
    )(*args)


# ----------------------------------------------------------------------------
# forward(): one fully-fused tracker kernel
# ----------------------------------------------------------------------------
def _tracker_kernel(p1_ref, rker_ref, win_ref,
                    w1_ref, b1_ref, w2_ref, b2_ref, dsw_ref, dsb_ref,
                    fw_ref, fb_ref, tw_ref, tb_ref, hw_ref, hb_ref,
                    out_ref,
                    y1_ref, sfeat_ref, xc_ref, heads_ref,
                    *, oh1, ow1, oh2, ow2, kh, kw, wi):
    # ---- backbone + 1x1 downsample, results kept in VMEM scratch ----
    _backbone_ds_body(p1_ref, w1_ref, b1_ref, w2_ref, b2_ref, dsw_ref, dsb_ref,
                      y1_ref, sfeat_ref, oh1=oh1, ow1=ow1, oh2=oh2, ow2=ow2)
    oh = oh2 - kh + 1
    ow = ow2 - kw + 1

    # ---- depthwise cross-correlation with the stored template kernel ----
    s = sfeat_ref[...]                                     # (oh2, ow2, HID)
    rk = rker_ref[...]                                     # (kh, kw, HID)
    xc = jnp.zeros((oh, ow, HID), jnp.float32)
    for di in range(kh):
        for dj in range(kw):
            xc = xc + s[di:di + oh, dj:dj + ow, :] * rk[di:di + 1, dj:dj + 1, :]
    xc_ref[...] = xc

    # ---- fuse 1x1 conv + packed cls/reg towers + packed cls/reg heads ----
    fw = fw_ref[...]
    fb = fb_ref[...]
    tw = tw_ref[...]
    tb = tb_ref[...]
    hw = hw_ref[...]
    hb = hb_ref[...]
    for j in range(oh):
        row = xc_ref[j, :, :]                                               # (ow, HID)
        siam = jnp.maximum(jnp.dot(row, fw, preferred_element_type=jnp.float32) + fb, 0.0)
        tow = jnp.maximum(jnp.dot(siam, tw, preferred_element_type=jnp.float32) + tb, 0.0)
        pre = jnp.dot(tow, hw, preferred_element_type=jnp.float32) + hb     # (ow, 8)
        lane = lax.broadcasted_iota(jnp.int32, pre.shape, 1)
        # lane 2: sigmoid(cls), lanes 3..6: exp(reg l,t,r,b), rest forced to 0
        heads_ref[j, :, :] = jnp.where(
            lane == 2, jax.nn.sigmoid(pre),
            jnp.where((lane >= 3) & (lane <= 6), jnp.exp(pre), 0.0))

    # ---- cosine-window penalty + arg-max + gather of (score, l, t, r, b) ----
    heads = heads_ref[...]                                                  # (oh, ow, 8)
    lane3 = lax.broadcasted_iota(jnp.int32, heads.shape, 2)
    score = jnp.sum(jnp.where(lane3 == 2, heads, 0.0), axis=2)              # (oh, ow)
    pscore = score * (1.0 - wi) + win_ref[...] * wi
    m = jnp.max(pscore)
    ri = lax.broadcasted_iota(jnp.int32, (oh, ow), 0)
    ci = lax.broadcasted_iota(jnp.int32, (oh, ow), 1)
    flat = ri * ow + ci
    best = jnp.min(jnp.where(pscore >= m, flat, oh * ow))
    onehot = (flat == best).astype(jnp.float32)
    g = jnp.sum(jnp.sum(heads * onehot[:, :, None], axis=0), axis=0,
                keepdims=True)                                              # (1, 8)
    by = (best // ow).astype(jnp.float32)
    bx = (best - (best // ow) * ow).astype(jnp.float32)
    pos = lax.broadcasted_iota(jnp.int32, (1, 8), 1)
    out_ref[...] = g + jnp.where(pos == 0, by, 0.0) + jnp.where(pos == 1, bx, 0.0)


def _tracker_fused_call(p1, rker, window, params, *, oh1, ow1, oh2, ow2, wi):
    kh, kw, _ = rker.shape
    oh = oh2 - kh + 1
    ow = ow2 - kw + 1
    wpar = p1.shape[2]
    args = (p1, rker, window,
            params["bb1_w"], params["bb1_b"], params["bb2_w"], params["bb2_b"],
            params["ds_w"], params["ds_b"],
            params["fuse_w"], params["fuse_b"],
            params["tower_w"], params["tower_b"],
            params["head_w"], params["head_b"])
    kernel = functools.partial(_tracker_kernel, oh1=oh1, ow1=ow1, oh2=oh2, ow2=ow2,
                               kh=kh, kw=kw, wi=float(wi))
    return pl.pallas_call(
        kernel,
        out_shape=jax.ShapeDtypeStruct((1, 8), jnp.float32),
        grid=(1,),
        in_specs=[_full_spec(a.shape) for a in args],
        out_specs=_full_spec((1, 8)),
        scratch_shapes=[
            pltpu.VMEM((2, oh1, wpar, C1), jnp.float32),   # conv1 acts (col-parity split)
            pltpu.VMEM((oh2, ow2, HID), jnp.float32),      # downsampled search features
            pltpu.VMEM((oh, ow, HID), jnp.float32),        # xcorr output
            pltpu.VMEM((oh, ow, 8), jnp.float32),          # packed cls/reg head outputs
        ],
        compiler_params=pltpu.CompilerParams(dimension_semantics=("arbitrary",)),
    )(*args)


# ----------------------------------------------------------------------------
# Deterministic parameter init (synthetic weights, not a checkpoint) + packing
# ----------------------------------------------------------------------------
def init_params(key):
    def w_(k, shape):
        return 0.1 * jax.random.normal(k, shape, jnp.float32)

    ks = jax.random.split(key, 8)
    return {
        "bb1_w": w_(ks[0], (3 * 3 * CIN, C1)), "bb1_b": jnp.zeros((1, C1), jnp.float32),
        "bb2_w": w_(ks[1], (3 * 3 * C1, C2)),  "bb2_b": jnp.zeros((1, C2), jnp.float32),
        "ds_w":  w_(ks[2], (C2, HID)),         "ds_b":  jnp.zeros((1, HID), jnp.float32),
        "fuse_w": w_(ks[3], (HID, HID)),       "fuse_b": jnp.zeros((1, HID), jnp.float32),
        "cls_t_w": w_(ks[4], (HID, HID)),      "cls_t_b": jnp.zeros((1, HID), jnp.float32),
        "cls_w": w_(ks[5], (HID, 1)),          "cls_b":  jnp.zeros((1, 1), jnp.float32),
        "reg_t_w": w_(ks[6], (HID, HID)),      "reg_t_b": jnp.zeros((1, HID), jnp.float32),
        "reg_w": w_(ks[7], (HID, 4)),          "reg_b":  jnp.zeros((1, 4), jnp.float32),
    }


def pack_params(p):
    """Pack cls/reg towers and heads into single lane-denser matmuls (equivalent math)."""
    tower_w = jnp.concatenate([p["cls_t_w"], p["reg_t_w"]], axis=1)    # (HID, 2*HID)
    tower_b = jnp.concatenate([p["cls_t_b"], p["reg_t_b"]], axis=1)    # (1, 2*HID)
    head_w = jnp.zeros((2 * HID, 8), jnp.float32)
    head_w = head_w.at[:HID, 2].set(p["cls_w"][:, 0])                  # cls -> lane 2
    head_w = head_w.at[HID:, 3:7].set(p["reg_w"])                      # reg -> lanes 3..6
    head_b = jnp.zeros((1, 8), jnp.float32)
    head_b = head_b.at[0, 2].set(p["cls_b"][0, 0])
    head_b = head_b.at[0, 3:7].set(p["reg_b"][0, :])
    return {
        "bb1_w": p["bb1_w"], "bb1_b": p["bb1_b"],
        "bb2_w": p["bb2_w"], "bb2_b": p["bb2_b"],
        "ds_w": p["ds_w"], "ds_b": p["ds_b"],
        "fuse_w": p["fuse_w"], "fuse_b": p["fuse_b"],
        "tower_w": tower_w, "tower_b": tower_b,
        "head_w": head_w, "head_b": head_b,
    }


# ----------------------------------------------------------------------------
# jit-ed whole-frame implementations (no host syncs inside)
# ----------------------------------------------------------------------------
@jax.jit
def _temple_impl(params, ref_nhwc):
    p1, oh1, ow1 = _conv1_patches_split(ref_nhwc, 3, 3, 2)
    oh2 = (oh1 - 3) // 2 + 1
    ow2 = (ow1 - 3) // 2 + 1
    return _backbone_ds_call(p1, params, oh1=oh1, ow1=ow1, oh2=oh2, ow2=ow2)


@functools.partial(jax.jit, static_argnames=("wi", "lr", "total_stride"))
def _forward_impl(params, ref_kernels, srch_nhwc, window,
                  target_pos, target_size, scale_t, image_size,
                  *, wi, lr, total_stride):
    p1, oh1, ow1 = _conv1_patches_split(srch_nhwc, 3, 3, 2)
    oh2 = (oh1 - 3) // 2 + 1
    ow2 = (ow1 - 3) // 2 + 1
    kh, kw, _ = ref_kernels.shape
    oh = oh2 - kh + 1
    ow = ow2 - kw + 1
    assert window.shape == (oh, ow), (window.shape, (oh, ow))

    out = _tracker_fused_call(p1, ref_kernels, window, params,
                              oh1=oh1, ow1=ow1, oh2=oh2, ow2=ow2, wi=wi)
    by, bx, best_score = out[0, 0], out[0, 1], out[0, 2]
    l, t, r, b = out[0, 3], out[0, 4], out[0, 5], out[0, 6]

    # ---- scalar tracking-state update (pure jnp, stays on device) ----
    sc = (oh - 1) / 2.0
    disp_x = (bx - sc) * total_stride / scale_t
    disp_y = (by - sc) * total_stride / scale_t
    new_pos = target_pos + jnp.stack([disp_x, disp_y])
    pred_w = (l + r) * total_stride / scale_t
    pred_h = (t + b) * total_stride / scale_t
    new_size = target_size * (1.0 - lr) + jnp.stack([pred_w, pred_h]) * lr

    img_h, img_w = image_size[0], image_size[1]
    hi = jnp.stack([img_w, img_h])
    new_pos = jnp.clip(new_pos, 0.0, hi)
    new_size = jnp.clip(new_size, 10.0, hi)
    return new_pos, new_size, best_score


# ----------------------------------------------------------------------------
# GenTracker (Pallas)
# ----------------------------------------------------------------------------
class GenTrackerPallas:
    TOTAL_STRIDE = 4.0                            # two stride-2 convs

    def __init__(self, params):
        self.params = pack_params(params)
        self.training = False
        self.ref_kernels = None                   # set by temple()

    def temple(self, ref_images):
        """ref_images: [num_ref, batch, 3, H, W] -- store template kernels."""
        if self.training:
            raise ValueError("Should perform tracking in GenTracker's eval mode")
        C, H, W = ref_images.shape[-3:]
        ref = jnp.reshape(jnp.asarray(ref_images, jnp.float32), (-1, C, H, W))
        assert ref.shape[0] == 1, "single-sequence tracking (as in reference usage)"
        ref_nhwc = jnp.transpose(ref[0], (1, 2, 0))           # NCHW -> HWC
        self.ref_kernels = _temple_impl(self.params, ref_nhwc)

    def forward(self, srch_images, image_size, tracking_state):
        """srch_images: [num_srch, batch, 3, H, W]; returns (pos, size, score)."""
        if self.training:
            raise ValueError("Should perform tracking in GenTracker's eval mode")
        if self.ref_kernels is None:
            raise ValueError("call temple() first")
        C, H, W = srch_images.shape[-3:]
        srch = jnp.reshape(jnp.asarray(srch_images, jnp.float32), (-1, C, H, W))
        assert srch.shape[0] == 1, "single-sequence tracking (as in reference usage)"
        srch_nhwc = jnp.transpose(srch[0], (1, 2, 0))         # NCHW -> HWC

        cfg = tracking_state["tracking_config"]
        new_pos, new_size, score = _forward_impl(
            self.params, self.ref_kernels, srch_nhwc,
            jnp.asarray(tracking_state["window"], jnp.float32),
            jnp.asarray(tracking_state["target_pos"], jnp.float32),
            jnp.asarray(tracking_state["target_size"], jnp.float32),
            jnp.asarray(tracking_state["scale_template"], jnp.float32),
            jnp.asarray(image_size, jnp.float32),
            wi=float(cfg["window_influence"]), lr=float(cfg["lr"]),
            total_stride=self.TOTAL_STRIDE)
        return new_pos, new_size, score


# ----------------------------------------------------------------------------
# main
# ----------------------------------------------------------------------------
if __name__ == "__main__":
    key = jax.random.PRNGKey(0)
    k_ref, k_srch, k_param = jax.random.split(key, 3)

    params = init_params(k_param)
    tracker = GenTrackerPallas(params)

    # small shapes consistent with the module's [num, batch, 3, H, W] convention
    ref_images = jax.random.normal(k_ref, (1, 1, 3, 16, 16), jnp.float32)
    srch_images = jax.random.normal(k_srch, (1, 1, 3, 32, 32), jnp.float32)

    score_size = 5                                # search 32->15->7, template 16->7->3, 7-3+1
    image_size = np.array([256, 256])             # [height, width]
    tracking_state = {
        "image_w": 256,
        "image_h": 256,
        "avg_chans": np.array([117.0, 117.0, 117.0]),
        "target_pos": np.array([128.0, 128.0]),
        "target_size": np.array([64.0, 64.0]),
        "scale_template": np.float64(0.5),
        "window": np.outer(np.hanning(score_size), np.hanning(score_size)).astype(np.float32),
        "tracking_config": {"window_influence": 0.3, "lr": 0.3},
        "score": 0.0,
    }

    tracker.temple(ref_images)
    target_pos, target_size, score = tracker.forward(srch_images, image_size, tracking_state)
    jax.block_until_ready((target_pos, target_size, score))
    print("KERNEL_OK")
</pallas_src>

<mosaic_0001>
module attributes {stable_mosaic.version = 11 : i64} {
  func.func @_temple_kernel(%arg0: i32, %arg1: memref<2x7x4x27xf32, #tpu.memory_space<vmem>>, %arg2: memref<27x16xf32, #tpu.memory_space<vmem>>, %arg3: memref<1x16xf32, #tpu.memory_space<vmem>>, %arg4: memref<144x32xf32, #tpu.memory_space<vmem>>, %arg5: memref<1x32xf32, #tpu.memory_space<vmem>>, %arg6: memref<32x32xf32, #tpu.memory_space<vmem>>, %arg7: memref<1x32xf32, #tpu.memory_space<vmem>>, %arg8: memref<3x3x32xf32, #tpu.memory_space<vmem>>, %arg9: memref<2x7x4x16xf32, #tpu.memory_space<vmem>>) attributes {dimension_semantics = [#tpu.dimension_semantics<arbitrary>], iteration_bounds = array<i64: 1>, scalar_prefetch = 0 : i64, scratch_operands = 1 : i64, tpu.core_type = #tpu.core_type<tc>, window_params = [{pipeline_mode = #tpu.pipeline_mode<synchronous>, transform_indices = @transform_0, window_bounds = array<i64: 2, 7, 4, 27>}, {pipeline_mode = #tpu.pipeline_mode<synchronous>, transform_indices = @transform_1, window_bounds = array<i64: 27, 16>}, {pipeline_mode = #tpu.pipeline_mode<synchronous>, transform_indices = @transform_2, window_bounds = array<i64: 1, 16>}, {pipeline_mode = #tpu.pipeline_mode<synchronous>, transform_indices = @transform_3, window_bounds = array<i64: 144, 32>}, {pipeline_mode = #tpu.pipeline_mode<synchronous>, transform_indices = @transform_4, window_bounds = array<i64: 1, 32>}, {pipeline_mode = #tpu.pipeline_mode<synchronous>, transform_indices = @transform_5, window_bounds = array<i64: 32, 32>}, {pipeline_mode = #tpu.pipeline_mode<synchronous>, transform_indices = @transform_6, window_bounds = array<i64: 1, 32>}, {pipeline_mode = #tpu.pipeline_mode<synchronous>, transform_indices = @transform_7, window_bounds = array<i64: 3, 3, 32>}]} {
    %c0 = arith.constant 0 : index
    %c0_0 = arith.constant 0 : index
    %0 = vector.load %arg2[%c0, %c0_0] : memref<27x16xf32, #tpu.memory_space<vmem>>, vector<27x16xf32>
    %c0_1 = arith.constant 0 : index
    %c0_2 = arith.constant 0 : index
    %1 = vector.load %arg3[%c0_1, %c0_2] : memref<1x16xf32, #tpu.memory_space<vmem>>, vector<1x16xf32>
    %c0_3 = arith.constant 0 : index
    %c0_4 = arith.constant 0 : index
    %2 = vector.load %arg4[%c0_3, %c0_4] : memref<144x32xf32, #tpu.memory_space<vmem>>, vector<144x32xf32>
    %c0_5 = arith.constant 0 : index
    %c0_6 = arith.constant 0 : index
    %3 = vector.load %arg5[%c0_5, %c0_6] : memref<1x32xf32, #tpu.memory_space<vmem>>, vector<1x32xf32>
    %c0_7 = arith.constant 0 : index
    %c0_8 = arith.constant 0 : index
    %4 = vector.load %arg6[%c0_7, %c0_8] : memref<32x32xf32, #tpu.memory_space<vmem>>, vector<32x32xf32>
    %c0_9 = arith.constant 0 : index
    %c0_10 = arith.constant 0 : index
    %5 = vector.load %arg7[%c0_9, %c0_10] : memref<1x32xf32, #tpu.memory_space<vmem>>, vector<1x32xf32>
    %c0_11 = arith.constant 0 : index
    %c0_12 = arith.constant 0 : index
    %c0_13 = arith.constant 0 : index
    %c0_14 = arith.constant 0 : index
    %6 = vector.load %arg1[%c0_11, %c0_12, %c0_13, %c0_14] : memref<2x7x4x27xf32, #tpu.memory_space<vmem>>, vector<1x1x4x27xf32>
    %7 = vector.shape_cast %6 : vector<1x1x4x27xf32> to vector<4x27xf32>
    %cst = arith.constant dense<0.000000e+00> : vector<4x16xf32>
    %8 = tpu.matmul %7, %0, %cst {dimension_numbers = #tpu.dot_dimension_numbers<[1], [0], [0], [1], [0, 0, 1, 1], [], []>} : vector<4x27xf32>, vector<27x16xf32>, vector<4x16xf32> -> vector<4x16xf32>
    %9 = vector.broadcast %1 : vector<1x16xf32> to vector<4x16xf32>
    %10 = arith.addf %8, %9 : vector<4x16xf32>
    %cst_15 = arith.constant 0.000000e+00 : f32
    %11 = vector.broadcast %cst_15 : f32 to vector<4x16xf32>
    %12 = arith.maximumf %10, %11 : vector<4x16xf32>
    %c0_16 = arith.constant 0 : index
    %c0_17 = arith.constant 0 : index
    %c0_18 = arith.constant 0 : index
    %c0_19 = arith.constant 0 : index
    %13 = vector.load %arg9[%c0_16, %c0_17, %c0_18, %c0_19] : memref<2x7x4x16xf32, #tpu.memory_space<vmem>>, vector<1x1x4x16xf32>
    %14 = vector.shape_cast %13 : vector<1x1x4x16xf32> to vector<4x16xf32>
    %15 = vector.shape_cast %12 : vector<4x16xf32> to vector<1x1x4x16xf32>
    tpu.vector_store %arg9[%c0_16, %c0_17, %c0_18, %c0_19], %15 {strides = array<i32>} : memref<2x7x4x16xf32, #tpu.memory_space<vmem>>, vector<1x1x4x16xf32>,
    %c0_20 = arith.constant 0 : index
    %c1 = arith.constant 1 : index
    %c0_21 = arith.constant 0 : index
    %c0_22 = arith.constant 0 : index
    %16 = vector.load %arg1[%c0_20, %c1, %c0_21, %c0_22] : memref<2x7x4x27xf32, #tpu.memory_space<vmem>>, vector<1x1x4x27xf32>
    %17 = vector.shape_cast %16 : vector<1x1x4x27xf32> to vector<4x27xf32>
    %cst_23 = arith.constant dense<0.000000e+00> : vector<4x16xf32>
    %18 = tpu.matmul %17, %0, %cst_23 {dimension_numbers = #tpu.dot_dimension_numbers<[1], [0], [0], [1], [0, 0, 1, 1], [], []>} : vector<4x27xf32>, vector<27x16xf32>, vector<4x16xf32> -> vector<4x16xf32>
    %19 = vector.broadcast %1 : vector<1x16xf32> to vector<4x16xf32>
    %20 = arith.addf %18, %19 : vector<4x16xf32>
    %cst_24 = arith.constant 0.000000e+00 : f32
    %21 = vector.broadcast %cst_24 : f32 to vector<4x16xf32>
    %22 = arith.maximumf %20, %21 : vector<4x16xf32>
    %c0_25 = arith.constant 0 : index
    %c1_26 = arith.constant 1 : index
    %c0_27 = arith.constant 0 : index
    %c0_28 = arith.constant 0 : index
    %23 = vector.load %arg9[%c0_25, %c1_26, %c0_27, %c0_28] : memref<2x7x4x16xf32, #tpu.memory_space<vmem>>, vector<1x1x4x16xf32>
    %24 = vector.shape_cast %23 : vector<1x1x4x16xf32> to vector<4x16xf32>
    %25 = vector.shape_cast %22 : vector<4x16xf32> to vector<1x1x4x16xf32>
    tpu.vector_store %arg9[%c0_25, %c1_26, %c0_27, %c0_28], %25 {strides = array<i32>} : memref<2x7x4x16xf32, #tpu.memory_space<vmem>>, vector<1x1x4x16xf32>,
    %c0_29 = arith.constant 0 : index
    %c2 = arith.constant 2 : index
    %c0_30 = arith.constant 0 : index
    %c0_31 = arith.constant 0 : index
    %26 = vector.load %arg1[%c0_29, %c2, %c0_30, %c0_31] : memref<2x7x4x27xf32, #tpu.memory_space<vmem>>, vector<1x1x4x27xf32>
    %27 = vector.shape_cast %26 : vector<1x1x4x27xf32> to vector<4x27xf32>
    %cst_32 = arith.constant dense<0.000000e+00> : vector<4x16xf32>
    %28 = tpu.matmul %27, %0, %cst_32 {dimension_numbers = #tpu.dot_dimension_numbers<[1], [0], [0], [1], [0, 0, 1, 1], [], []>} : vector<4x27xf32>, vector<27x16xf32>, vector<4x16xf32> -> vector<4x16xf32>
    %29 = vector.broadcast %1 : vector<1x16xf32> to vector<4x16xf32>
    %30 = arith.addf %28, %29 : vector<4x16xf32>
    %cst_33 = arith.constant 0.000000e+00 : f32
    %31 = vector.broadcast %cst_33 : f32 to vector<4x16xf32>
    %32 = arith.maximumf %30, %31 : vector<4x16xf32>
    %c0_34 = arith.constant 0 : index
    %c2_35 = arith.constant 2 : index
    %c0_36 = arith.constant 0 : index
    %c0_37 = arith.constant 0 : index
    %33 = vector.load %arg9[%c0_34, %c2_35, %c0_36, %c0_37] : memref<2x7x4x16xf32, #tpu.memory_space<vmem>>, vector<1x1x4x16xf32>
    %34 = vector.shape_cast %33 : vector<1x1x4x16xf32> to vector<4x16xf32>
    %35 = vector.shape_cast %32 : vector<4x16xf32> to vector<1x1x4x16xf32>
    tpu.vector_store %arg9[%c0_34, %c2_35, %c0_36, %c0_37], %35 {strides = array<i32>} : memref<2x7x4x16xf32, #tpu.memory_space<vmem>>, vector<1x1x4x16xf32>,
    %c0_38 = arith.constant 0 : index
    %c3 = arith.constant 3 : index
    %c0_39 = arith.constant 0 : index
    %c0_40 = arith.constant 0 : index
    %36 = vector.load %arg1[%c0_38, %c3, %c0_39, %c0_40] : memref<2x7x4x27xf32, #tpu.memory_space<vmem>>, vector<1x1x4x27xf32>
    %37 = vector.shape_cast %36 : vector<1x1x4x27xf32> to vector<4x27xf32>
    %cst_41 = arith.constant dense<0.000000e+00> : vector<4x16xf32>
    %38 = tpu.matmul %37, %0, %cst_41 {dimension_numbers = #tpu.dot_dimension_numbers<[1], [0], [0], [1], [0, 0, 1, 1], [], []>} : vector<4x27xf32>, vector<27x16xf32>, vector<4x16xf32> -> vector<4x16xf32>
    %39 = vector.broadcast %1 : vector<1x16xf32> to vector<4x16xf32>
    %40 = arith.addf %38, %39 : vector<4x16xf32>
    %cst_42 = arith.constant 0.000000e+00 : f32
    %41 = vector.broadcast %cst_42 : f32 to vector<4x16xf32>
    %42 = arith.maximumf %40, %41 : vector<4x16xf32>
    %c0_43 = arith.constant 0 : index
    %c3_44 = arith.constant 3 : index
    %c0_45 = arith.constant 0 : index
    %c0_46 = arith.constant 0 : index
    %43 = vector.load %arg9[%c0_43, %c3_44, %c0_45, %c0_46] : memref<2x7x4x16xf32, #tpu.memory_space<vmem>>, vector<1x1x4x16xf32>
    %44 = vector.shape_cast %43 : vector<1x1x4x16xf32> to vector<4x16xf32>
    %45 = vector.shape_cast %42 : vector<4x16xf32> to vector<1x1x4x16xf32>
    tpu.vector_store %arg9[%c0_43, %c3_44, %c0_45, %c0_46], %45 {strides = array<i32>} : memref<2x7x4x16xf32, #tpu.memory_space<vmem>>, vector<1x1x4x16xf32>,
    %c0_47 = arith.constant 0 : index
    %c4 = arith.constant 4 : index
    %c0_48 = arith.constant 0 : index
    %c0_49 = arith.constant 0 : index
    %46 = vector.load %arg1[%c0_47, %c4, %c0_48, %c0_49] : memref<2x7x4x27xf32, #tpu.memory_space<vmem>>, vector<1x1x4x27xf32>
    %47 = vector.shape_cast %46 : vector<1x1x4x27xf32> to vector<4x27xf32>
    %cst_50 = arith.constant dense<0.000000e+00> : vector<4x16xf32>
    %48 = tpu.matmul %47, %0, %cst_50 {dimension_numbers = #tpu.dot_dimension_numbers<[1], [0], [0], [1], [0, 0, 1, 1], [], []>} : vector<4x27xf32>, vector<27x16xf32>, vector<4x16xf32> -> vector<4x16xf32>
    %49 = vector.broadcast %1 : vector<1x16xf32> to vector<4x16xf32>
    %50 = arith.addf %48, %49 : vector<4x16xf32>
    %cst_51 = arith.constant 0.000000e+00 : f32
    %51 = vector.broadcast %cst_51 : f32 to vector<4x16xf32>
    %52 = arith.maximumf %50, %51 : vector<4x16xf32>
    %c0_52 = arith.constant 0 : index
    %c4_53 = arith.constant 4 : index
    %c0_54 = arith.constant 0 : index
    %c0_55 = arith.constant 0 : index
    %53 = vector.load %arg9[%c0_52, %c4_53, %c0_54, %c0_55] : memref<2x7x4x16xf32, #tpu.memory_space<vmem>>, vector<1x1x4x16xf32>
    %54 = vector.shape_cast %53 : vector<1x1x4x16xf32> to vector<4x16xf32>
    %55 = vector.shape_cast %52 : vector<4x16xf32> to vector<1x1x4x16xf32>
    tpu.vector_store %arg9[%c0_52, %c4_53, %c0_54, %c0_55], %55 {strides = array<i32>} : memref<2x7x4x16xf32, #tpu.memory_space<vmem>>, vector<1x1x4x16xf32>,
    %c0_56 = arith.constant 0 : index
    %c5 = arith.constant 5 : index
    %c0_57 = arith.constant 0 : index
    %c0_58 = arith.constant 0 : index
    %56 = vector.load %arg1[%c0_56, %c5, %c0_57, %c0_58] : memref<2x7x4x27xf32, #tpu.memory_space<vmem>>, vector<1x1x4x27xf32>
    %57 = vector.shape_cast %56 : vector<1x1x4x27xf32> to vector<4x27xf32>
    %cst_59 = arith.constant dense<0.000000e+00> : vector<4x16xf32>
    %58 = tpu.matmul %57, %0, %cst_59 {dimension_numbers = #tpu.dot_dimension_numbers<[1], [0], [0], [1], [0, 0, 1, 1], [], []>} : vector<4x27xf32>, vector<27x16xf32>, vector<4x16xf32> -> vector<4x16xf32>
    %59 = vector.broadcast %1 : vector<1x16xf32> to vector<4x16xf32>
    %60 = arith.addf %58, %59 : vector<4x16xf32>
    %cst_60 = arith.constant 0.000000e+00 : f32
    %61 = vector.broadcast %cst_60 : f32 to vector<4x16xf32>
    %62 = arith.maximumf %60, %61 : vector<4x16xf32>
    %c0_61 = arith.constant 0 : index
    %c5_62 = arith.constant 5 : index
    %c0_63 = arith.constant 0 : index
    %c0_64 = arith.constant 0 : index
    %63 = vector.load %arg9[%c0_61, %c5_62, %c0_63, %c0_64] : memref<2x7x4x16xf32, #tpu.memory_space<vmem>>, vector<1x1x4x16xf32>
    %64 = vector.shape_cast %63 : vector<1x1x4x16xf32> to vector<4x16xf32>
    %65 = vector.shape_cast %62 : vector<4x16xf32> to vector<1x1x4x16xf32>
    tpu.vector_store %arg9[%c0_61, %c5_62, %c0_63, %c0_64], %65 {strides = array<i32>} : memref<2x7x4x16xf32, #tpu.memory_space<vmem>>, vector<1x1x4x16xf32>,
    %c0_65 = arith.constant 0 : index
    %c6 = arith.constant 6 : index
    %c0_66 = arith.constant 0 : index
    %c0_67 = arith.constant 0 : index
    %66 = vector.load %arg1[%c0_65, %c6, %c0_66, %c0_67] : memref<2x7x4x27xf32, #tpu.memory_space<vmem>>, vector<1x1x4x27xf32>
    %67 = vector.shape_cast %66 : vector<1x1x4x27xf32> to vector<4x27xf32>
    %cst_68 = arith.constant dense<0.000000e+00> : vector<4x16xf32>
    %68 = tpu.matmul %67, %0, %cst_68 {dimension_numbers = #tpu.dot_dimension_numbers<[1], [0], [0], [1], [0, 0, 1, 1], [], []>} : vector<4x27xf32>, vector<27x16xf32>, vector<4x16xf32> -> vector<4x16xf32>
    %69 = vector.broadcast %1 : vector<1x16xf32> to vector<4x16xf32>
    %70 = arith.addf %68, %69 : vector<4x16xf32>
    %cst_69 = arith.constant 0.000000e+00 : f32
    %71 = vector.broadcast %cst_69 : f32 to vector<4x16xf32>
    %72 = arith.maximumf %70, %71 : vector<4x16xf32>
    %c0_70 = arith.constant 0 : index
    %c6_71 = arith.constant 6 : index
    %c0_72 = arith.constant 0 : index
    %c0_73 = arith.constant 0 : index
    %73 = vector.load %arg9[%c0_70, %c6_71, %c0_72, %c0_73] : memref<2x7x4x16xf32, #tpu.memory_space<vmem>>, vector<1x1x4x16xf32>
    %74 = vector.shape_cast %73 : vector<1x1x4x16xf32> to vector<4x16xf32>
    %75 = vector.shape_cast %72 : vector<4x16xf32> to vector<1x1x4x16xf32>
    tpu.vector_store %arg9[%c0_70, %c6_71, %c0_72, %c0_73], %75 {strides = array<i32>} : memref<2x7x4x16xf32, #tpu.memory_space<vmem>>, vector<1x1x4x16xf32>,
    %c1_74 = arith.constant 1 : index
    %c0_75 = arith.constant 0 : index
    %c0_76 = arith.constant 0 : index
    %c0_77 = arith.constant 0 : index
    %76 = vector.load %arg1[%c1_74, %c0_75, %c0_76, %c0_77] : memref<2x7x4x27xf32, #tpu.memory_space<vmem>>, vector<1x1x4x27xf32>
    %77 = vector.shape_cast %76 : vector<1x1x4x27xf32> to vector<4x27xf32>
    %cst_78 = arith.constant dense<0.000000e+00> : vector<4x16xf32>
    %78 = tpu.matmul %77, %0, %cst_78 {dimension_numbers = #tpu.dot_dimension_numbers<[1], [0], [0], [1], [0, 0, 1, 1], [], []>} : vector<4x27xf32>, vector<27x16xf32>, vector<4x16xf32> -> vector<4x16xf32>
    %79 = vector.broadcast %1 : vector<1x16xf32> to vector<4x16xf32>
    %80 = arith.addf %78, %79 : vector<4x16xf32>
    %cst_79 = arith.constant 0.000000e+00 : f32
    %81 = vector.broadcast %cst_79 : f32 to vector<4x16xf32>
    %82 = arith.maximumf %80, %81 : vector<4x16xf32>
    %c1_80 = arith.constant 1 : index
    %c0_81 = arith.constant 0 : index
    %c0_82 = arith.constant 0 : index
    %c0_83 = arith.constant 0 : index
    %83 = vector.load %arg9[%c1_80, %c0_81, %c0_82, %c0_83] : memref<2x7x4x16xf32, #tpu.memory_space<vmem>>, vector<1x1x4x16xf32>
    %84 = vector.shape_cast %83 : vector<1x1x4x16xf32> to vector<4x16xf32>
    %85 = vector.shape_cast %82 : vector<4x16xf32> to vector<1x1x4x16xf32>
    tpu.vector_store %arg9[%c1_80, %c0_81, %c0_82, %c0_83], %85 {strides = array<i32>} : memref<2x7x4x16xf32, #tpu.memory_space<vmem>>, vector<1x1x4x16xf32>,
    %c1_84 = arith.constant 1 : index
    %c1_85 = arith.constant 1 : index
    %c0_86 = arith.constant 0 : index
    %c0_87 = arith.constant 0 : index
    %86 = vector.load %arg1[%c1_84, %c1_85, %c0_86, %c0_87] : memref<2x7x4x27xf32, #tpu.memory_space<vmem>>, vector<1x1x4x27xf32>
    %87 = vector.shape_cast %86 : vector<1x1x4x27xf32> to vector<4x27xf32>
    %cst_88 = arith.constant dense<0.000000e+00> : vector<4x16xf32>
    %88 = tpu.matmul %87, %0, %cst_88 {dimension_numbers = #tpu.dot_dimension_numbers<[1], [0], [0], [1], [0, 0, 1, 1], [], []>} : vector<4x27xf32>, vector<27x16xf32>, vector<4x16xf32> -> vector<4x16xf32>
    %89 = vector.broadcast %1 : vector<1x16xf32> to vector<4x16xf32>
    %90 = arith.addf %88, %89 : vector<4x16xf32>
    %cst_89 = arith.constant 0.000000e+00 : f32
    %91 = vector.broadcast %cst_89 : f32 to vector<4x16xf32>
    %92 = arith.maximumf %90, %91 : vector<4x16xf32>
    %c1_90 = arith.constant 1 : index
    %c1_91 = arith.constant 1 : index
    %c0_92 = arith.constant 0 : index
    %c0_93 = arith.constant 0 : index
    %93 = vector.load %arg9[%c1_90, %c1_91, %c0_92, %c0_93] : memref<2x7x4x16xf32, #tpu.memory_space<vmem>>, vector<1x1x4x16xf32>
    %94 = vector.shape_cast %93 : vector<1x1x4x16xf32> to vector<4x16xf32>
    %95 = vector.shape_cast %92 : vector<4x16xf32> to vector<1x1x4x16xf32>
    tpu.vector_store %arg9[%c1_90, %c1_91, %c0_92, %c0_93], %95 {strides = array<i32>} : memref<2x7x4x16xf32, #tpu.memory_space<vmem>>, vector<1x1x4x16xf32>,
    %c1_94 = arith.constant 1 : index
    %c2_95 = arith.constant 2 : index
    %c0_96 = arith.constant 0 : index
    %c0_97 = arith.constant 0 : index
    %96 = vector.load %arg1[%c1_94, %c2_95, %c0_96, %c0_97] : memref<2x7x4x27xf32, #tpu.memory_space<vmem>>, vector<1x1x4x27xf32>
    %97 = vector.shape_cast %96 : vector<1x1x4x27xf32> to vector<4x27xf32>
    %cst_98 = arith.constant dense<0.000000e+00> : vector<4x16xf32>
    %98 = tpu.matmul %97, %0, %cst_98 {dimension_numbers = #tpu.dot_dimension_numbers<[1], [0], [0], [1], [0, 0, 1, 1], [], []>} : vector<4x27xf32>, vector<27x16xf32>, vector<4x16xf32> -> vector<4x16xf32>
    %99 = vector.broadcast %1 : vector<1x16xf32> to vector<4x16xf32>
    %100 = arith.addf %98, %99 : vector<4x16xf32>
    %cst_99 = arith.constant 0.000000e+00 : f32
    %101 = vector.broadcast %cst_99 : f32 to vector<4x16xf32>
    %102 = arith.maximumf %100, %101 : vector<4x16xf32>
    %c1_100 = arith.constant 1 : index
    %c2_101 = arith.constant 2 : index
    %c0_102 = arith.constant 0 : index
    %c0_103 = arith.constant 0 : index
    %103 = vector.load %arg9[%c1_100, %c2_101, %c0_102, %c0_103] : memref<2x7x4x16xf32, #tpu.memory_space<vmem>>, vector<1x1x4x16xf32>
    %104 = vector.shape_cast %103 : vector<1x1x4x16xf32> to vector<4x16xf32>
    %105 = vector.shape_cast %102 : vector<4x16xf32> to vector<1x1x4x16xf32>
    tpu.vector_store %arg9[%c1_100, %c2_101, %c0_102, %c0_103], %105 {strides = array<i32>} : memref<2x7x4x16xf32, #tpu.memory_space<vmem>>, vector<1x1x4x16xf32>,
    %c1_104 = arith.constant 1 : index
    %c3_105 = arith.constant 3 : index
    %c0_106 = arith.constant 0 : index
    %c0_107 = arith.constant 0 : index
    %106 = vector.load %arg1[%c1_104, %c3_105, %c0_106, %c0_107] : memref<2x7x4x27xf32, #tpu.memory_space<vmem>>, vector<1x1x4x27xf32>
    %107 = vector.shape_cast %106 : vector<1x1x4x27xf32> to vector<4x27xf32>
    %cst_108 = arith.constant dense<0.000000e+00> : vector<4x16xf32>
    %108 = tpu.matmul %107, %0, %cst_108 {dimension_numbers = #tpu.dot_dimension_numbers<[1], [0], [0], [1], [0, 0, 1, 1], [], []>} : vector<4x27xf32>, vector<27x16xf32>, vector<4x16xf32> -> vector<4x16xf32>
    %109 = vector.broadcast %1 : vector<1x16xf32> to vector<4x16xf32>
    %110 = arith.addf %108, %109 : vector<4x16xf32>
    %cst_109 = arith.constant 0.000000e+00 : f32
    %111 = vector.broadcast %cst_109 : f32 to vector<4x16xf32>
    %112 = arith.maximumf %110, %111 : vector<4x16xf32>
    %c1_110 = arith.constant 1 : index
    %c3_111 = arith.constant 3 : index
    %c0_112 = arith.constant 0 : index
    %c0_113 = arith.constant 0 : index
    %113 = vector.load %arg9[%c1_110, %c3_111, %c0_112, %c0_113] : memref<2x7x4x16xf32, #tpu.memory_space<vmem>>, vector<1x1x4x16xf32>
    %114 = vector.shape_cast %113 : vector<1x1x4x16xf32> to vector<4x16xf32>
    %115 = vector.shape_cast %112 : vector<4x16xf32> to vector<1x1x4x16xf32>
    tpu.vector_store %arg9[%c1_110, %c3_111, %c0_112, %c0_113], %115 {strides = array<i32>} : memref<2x7x4x16xf32, #tpu.memory_space<vmem>>, vector<1x1x4x16xf32>,
    %c1_114 = arith.constant 1 : index
    %c4_115 = arith.constant 4 : index
    %c0_116 = arith.constant 0 : index
    %c0_117 = arith.constant 0 : index
    %116 = vector.load %arg1[%c1_114, %c4_115, %c0_116, %c0_117] : memref<2x7x4x27xf32, #tpu.memory_space<vmem>>, vector<1x1x4x27xf32>
    %117 = vector.shape_cast %116 : vector<1x1x4x27xf32> to vector<4x27xf32>
    %cst_118 = arith.constant dense<0.000000e+00> : vector<4x16xf32>
    %118 = tpu.matmul %117, %0, %cst_118 {dimension_numbers = #tpu.dot_dimension_numbers<[1], [0], [0], [1], [0, 0, 1, 1], [], []>} : vector<4x27xf32>, vector<27x16xf32>, vector<4x16xf32> -> vector<4x16xf32>
    %119 = vector.broadcast %1 : vector<1x16xf32> to vector<4x16xf32>
    %120 = arith.addf %118, %119 : vector<4x16xf32>
    %cst_119 = arith.constant 0.000000e+00 : f32
    %121 = vector.broadcast %cst_119 : f32 to vector<4x16xf32>
    %122 = arith.maximumf %120, %121 : vector<4x16xf32>
    %c1_120 = arith.constant 1 : index
    %c4_121 = arith.constant 4 : index
    %c0_122 = arith.constant 0 : index
    %c0_123 = arith.constant 0 : index
    %123 = vector.load %arg9[%c1_120, %c4_121, %c0_122, %c0_123] : memref<2x7x4x16xf32, #tpu.memory_space<vmem>>, vector<1x1x4x16xf32>
    %124 = vector.shape_cast %123 : vector<1x1x4x16xf32> to vector<4x16xf32>
    %125 = vector.shape_cast %122 : vector<4x16xf32> to vector<1x1x4x16xf32>
    tpu.vector_store %arg9[%c1_120, %c4_121, %c0_122, %c0_123], %125 {strides = array<i32>} : memref<2x7x4x16xf32, #tpu.memory_space<vmem>>, vector<1x1x4x16xf32>,
    %c1_124 = arith.constant 1 : index
    %c5_125 = arith.constant 5 : index
    %c0_126 = arith.constant 0 : index
    %c0_127 = arith.constant 0 : index
    %126 = vector.load %arg1[%c1_124, %c5_125, %c0_126, %c0_127] : memref<2x7x4x27xf32, #tpu.memory_space<vmem>>, vector<1x1x4x27xf32>
    %127 = vector.shape_cast %126 : vector<1x1x4x27xf32> to vector<4x27xf32>
    %cst_128 = arith.constant dense<0.000000e+00> : vector<4x16xf32>
    %128 = tpu.matmul %127, %0, %cst_128 {dimension_numbers = #tpu.dot_dimension_numbers<[1], [0], [0], [1], [0, 0, 1, 1], [], []>} : vector<4x27xf32>, vector<27x16xf32>, vector<4x16xf32> -> vector<4x16xf32>
    %129 = vector.broadcast %1 : vector<1x16xf32> to vector<4x16xf32>
    %130 = arith.addf %128, %129 : vector<4x16xf32>
    %cst_129 = arith.constant 0.000000e+00 : f32
    %131 = vector.broadcast %cst_129 : f32 to vector<4x16xf32>
    %132 = arith.maximumf %130, %131 : vector<4x16xf32>
    %c1_130 = arith.constant 1 : index
    %c5_131 = arith.constant 5 : index
    %c0_132 = arith.constant 0 : index
    %c0_133 = arith.constant 0 : index
    %133 = vector.load %arg9[%c1_130, %c5_131, %c0_132, %c0_133] : memref<2x7x4x16xf32, #tpu.memory_space<vmem>>, vector<1x1x4x16xf32>
    %134 = vector.shape_cast %133 : vector<1x1x4x16xf32> to vector<4x16xf32>
    %135 = vector.shape_cast %132 : vector<4x16xf32> to vector<1x1x4x16xf32>
    tpu.vector_store %arg9[%c1_130, %c5_131, %c0_132, %c0_133], %135 {strides = array<i32>} : memref<2x7x4x16xf32, #tpu.memory_space<vmem>>, vector<1x1x4x16xf32>,
    %c1_134 = arith.constant 1 : index
    %c6_135 = arith.constant 6 : index
    %c0_136 = arith.constant 0 : index
    %c0_137 = arith.constant 0 : index
    %136 = vector.load %arg1[%c1_134, %c6_135, %c0_136, %c0_137] : memref<2x7x4x27xf32, #tpu.memory_space<vmem>>, vector<1x1x4x27xf32>
    %137 = vector.shape_cast %136 : vector<1x1x4x27xf32> to vector<4x27xf32>
    %cst_138 = arith.constant dense<0.000000e+00> : vector<4x16xf32>
    %138 = tpu.matmul %137, %0, %cst_138 {dimension_numbers = #tpu.dot_dimension_numbers<[1], [0], [0], [1], [0, 0, 1, 1], [], []>} : vector<4x27xf32>, vector<27x16xf32>, vector<4x16xf32> -> vector<4x16xf32>
    %139 = vector.broadcast %1 : vector<1x16xf32> to vector<4x16xf32>
    %140 = arith.addf %138, %139 : vector<4x16xf32>
    %cst_139 = arith.constant 0.000000e+00 : f32
    %141 = vector.broadcast %cst_139 : f32 to vector<4x16xf32>
    %142 = arith.maximumf %140, %141 : vector<4x16xf32>
    %c1_140 = arith.constant 1 : index
    %c6_141 = arith.constant 6 : index
    %c0_142 = arith.constant 0 : index
    %c0_143 = arith.constant 0 : index
    %143 = vector.load %arg9[%c1_140, %c6_141, %c0_142, %c0_143] : memref<2x7x4x16xf32, #tpu.memory_space<vmem>>, vector<1x1x4x16xf32>
    %144 = vector.shape_cast %143 : vector<1x1x4x16xf32> to vector<4x16xf32>
    %145 = vector.shape_cast %142 : vector<4x16xf32> to vector<1x1x4x16xf32>
    tpu.vector_store %arg9[%c1_140, %c6_141, %c0_142, %c0_143], %145 {strides = array<i32>} : memref<2x7x4x16xf32, #tpu.memory_space<vmem>>, vector<1x1x4x16xf32>,
    %cst_144 = arith.constant 0.000000e+00 : f32
    %146 = vector.broadcast %cst_144 : f32 to vector<3x32xf32>
    %c0_145 = arith.constant 0 : index
    %c0_146 = arith.constant 0 : index
    %c0_147 = arith.constant 0 : index
    %c0_148 = arith.constant 0 : index
    %147 = vector.load %arg9[%c0_145, %c0_146, %c0_147, %c0_148] : memref<2x7x4x16xf32, #tpu.memory_space<vmem>>, vector<1x1x3x16xf32>
    %148 = vector.shape_cast %147 : vector<1x1x3x16xf32> to vector<3x16xf32>
    %149 = vector.extract_strided_slice %2 {offsets = [0, 0], sizes = [16, 32], strides = [1, 1]} : vector<144x32xf32> to vector<16x32xf32>
    %cst_149 = arith.constant dense<0.000000e+00> : vector<3x32xf32>
    %150 = tpu.matmul %148, %149, %cst_149 {dimension_numbers = #tpu.dot_dimension_numbers<[1], [0], [0], [1], [0, 0, 1, 1], [], []>} : vector<3x16xf32>, vector<16x32xf32>, vector<3x32xf32> -> vector<3x32xf32>
    %151 = arith.addf %146, %150 : vector<3x32xf32>
    %c1_150 = arith.constant 1 : index
    %c0_151 = arith.constant 0 : index
    %c0_152 = arith.constant 0 : index
    %c0_153 = arith.constant 0 : index
    %152 = vector.load %arg9[%c1_150, %c0_151, %c0_152, %c0_153] : memref<2x7x4x16xf32, #tpu.memory_space<vmem>>, vector<1x1x3x16xf32>
    %153 = vector.shape_cast %152 : vector<1x1x3x16xf32> to vector<3x16xf32>
    %154 = vector.extract_strided_slice %2 {offsets = [16, 0], sizes = [16, 32], strides = [1, 1]} : vector<144x32xf32> to vector<16x32xf32>
    %cst_154 = arith.constant dense<0.000000e+00> : vector<3x32xf32>
    %155 = tpu.matmul %153, %154, %cst_154 {dimension_numbers = #tpu.dot_dimension_numbers<[1], [0], [0], [1], [0, 0, 1, 1], [], []>} : vector<3x16xf32>, vector<16x32xf32>, vector<3x32xf32> -> vector<3x32xf32>
    %156 = arith.addf %151, %155 : vector<3x32xf32>
    %c0_155 = arith.constant 0 : index
    %c0_156 = arith.constant 0 : index
    %c1_157 = arith.constant 1 : index
    %c0_158 = arith.constant 0 : index
    %157 = vector.load %arg9[%c0_155, %c0_156, %c1_157, %c0_158] : memref<2x7x4x16xf32, #tpu.memory_space<vmem>>, vector<1x1x3x16xf32>
    %158 = vector.shape_cast %157 : vector<1x1x3x16xf32> to vector<3x16xf32>
    %159 = vector.extract_strided_slice %2 {offsets = [32, 0], sizes = [16, 32], strides = [1, 1]} : vector<144x32xf32> to vector<16x32xf32>
    %cst_159 = arith.constant dense<0.000000e+00> : vector<3x32xf32>
    %160 = tpu.matmul %158, %159, %cst_159 {dimension_numbers = #tpu.dot_dimension_numbers<[1], [0], [0], [1], [0, 0, 1, 1], [], []>} : vector<3x16xf32>, vector<16x32xf32>, vector<3x32xf32> -> vector<3x32xf32>
    %161 = arith.addf %156, %160 : vector<3x32xf32>
    %c0_160 = arith.constant 0 : index
    %c1_161 = arith.constant 1 : index
    %c0_162 = arith.constant 0 : index
    %c0_163 = arith.constant 0 : index
    %162 = vector.load %arg9[%c0_160, %c1_161, %c0_162, %c0_163] : memref<2x7x4x16xf32, #tpu.memory_space<vmem>>, vector<1x1x3x16xf32>
    %163 = vector.shape_cast %162 : vector<1x1x3x16xf32> to vector<3x16xf32>
    %164 = vector.extract_strided_slice %2 {offsets = [48, 0], sizes = [16, 32], strides = [1, 1]} : vector<144x32xf32> to vector<16x32xf32>
    %cst_164 = arith.constant dense<0.000000e+00> : vector<3x32xf32>
    %165 = tpu.matmul %163, %164, %cst_164 {dimension_numbers = #tpu.dot_dimension_numbers<[1], [0], [0], [1], [0, 0, 1, 1], [], []>} : vector<3x16xf32>, vector<16x32xf32>, vector<3x32xf32> -> vector<3x32xf32>
    %166 = arith.addf %161, %165 : vector<3x32xf32>
    %c1_165 = arith.constant 1 : index
    %c1_166 = arith.constant 1 : index
    %c0_167 = arith.constant 0 : index
    %c0_168 = arith.constant 0 : index
    %167 = vector.load %arg9[%c1_165, %c1_166, %c0_167, %c0_168] : memref<2x7x4x16xf32, #tpu.memory_space<vmem>>, vector<1x1x3x16xf32>
    %168 = vector.shape_cast %167 : vector<1x1x3x16xf32> to vector<3x16xf32>
    %169 = vector.extract_strided_slice %2 {offsets = [64, 0], sizes = [16, 32], strides = [1, 1]} : vector<144x32xf32> to vector<16x32xf32>
    %cst_169 = arith.constant dense<0.000000e+00> : vector<3x32xf32>
    %170 = tpu.matmul %168, %169, %cst_169 {dimension_numbers = #tpu.dot_dimension_numbers<[1], [0], [0], [1], [0, 0, 1, 1], [], []>} : vector<3x16xf32>, vector<16x32xf32>, vector<3x32xf32> -> vector<3x32xf32>
    %171 = arith.addf %166, %170 : vector<3x32xf32>
    %c0_170 = arith.constant 0 : index
    %c1_171 = arith.constant 1 : index
    %c1_172 = arith.constant 1 : index
    %c0_173 = arith.constant 0 : index
    %172 = vector.load %arg9[%c0_170, %c1_171, %c1_172, %c0_173] : memref<2x7x4x16xf32, #tpu.memory_space<vmem>>, vector<1x1x3x16xf32>
    %173 = vector.shape_cast %172 : vector<1x1x3x16xf32> to vector<3x16xf32>
    %174 = vector.extract_strided_slice %2 {offsets = [80, 0], sizes = [16, 32], strides = [1, 1]} : vector<144x32xf32> to vector<16x32xf32>
    %cst_174 = arith.constant dense<0.000000e+00> : vector<3x32xf32>
    %175 = tpu.matmul %173, %174, %cst_174 {dimension_numbers = #tpu.dot_dimension_numbers<[1], [0], [0], [1], [0, 0, 1, 1], [], []>} : vector<3x16xf32>, vector<16x32xf32>, vector<3x32xf32> -> vector<3x32xf32>
    %176 = arith.addf %171, %175 : vector<3x32xf32>
    %c0_175 = arith.constant 0 : index
    %c2_176 = arith.constant 2 : index
    %c0_177 = arith.constant 0 : index
    %c0_178 = arith.constant 0 : index
    %177 = vector.load %arg9[%c0_175, %c2_176, %c0_177, %c0_178] : memref<2x7x4x16xf32, #tpu.memory_space<vmem>>, vector<1x1x3x16xf32>
    %178 = vector.shape_cast %177 : vector<1x1x3x16xf32> to vector<3x16xf32>
    %179 = vector.extract_strided_slice %2 {offsets = [96, 0], sizes = [16, 32], strides = [1, 1]} : vector<144x32xf32> to vector<16x32xf32>
    %cst_179 = arith.constant dense<0.000000e+00> : vector<3x32xf32>
    %180 = tpu.matmul %178, %179, %cst_179 {dimension_numbers = #tpu.dot_dimension_numbers<[1], [0], [0], [1], [0, 0, 1, 1], [], []>} : vector<3x16xf32>, vector<16x32xf32>, vector<3x32xf32> -> vector<3x32xf32>
    %181 = arith.addf %176, %180 : vector<3x32xf32>
    %c1_180 = arith.constant 1 : index
    %c2_181 = arith.constant 2 : index
    %c0_182 = arith.constant 0 : index
    %c0_183 = arith.constant 0 : index
    %182 = vector.load %arg9[%c1_180, %c2_181, %c0_182, %c0_183] : memref<2x7x4x16xf32, #tpu.memory_space<vmem>>, vector<1x1x3x16xf32>
    %183 = vector.shape_cast %182 : vector<1x1x3x16xf32> to vector<3x16xf32>
    %184 = vector.extract_strided_slice %2 {offsets = [112, 0], sizes = [16, 32], strides = [1, 1]} : vector<144x32xf32> to vector<16x32xf32>
    %cst_184 = arith.constant dense<0.000000e+00> : vector<3x32xf32>
    %185 = tpu.matmul %183, %184, %cst_184 {dimension_numbers = #tpu.dot_dimension_numbers<[1], [0], [0], [1], [0, 0, 1, 1], [], []>} : vector<3x16xf32>, vector<16x32xf32>, vector<3x32xf32> -> vector<3x32xf32>
    %186 = arith.addf %181, %185 : vector<3x32xf32>
    %c0_185 = arith.constant 0 : index
    %c2_186 = arith.constant 2 : index
    %c1_187 = arith.constant 1 : index
    %c0_188 = arith.constant 0 : index
    %187 = vector.load %arg9[%c0_185, %c2_186, %c1_187, %c0_188] : memref<2x7x4x16xf32, #tpu.memory_space<vmem>>, vector<1x1x3x16xf32>
    %188 = vector.shape_cast %187 : vector<1x1x3x16xf32> to vector<3x16xf32>
    %189 = vector.extract_strided_slice %2 {offsets = [128, 0], sizes = [16, 32], strides = [1, 1]} : vector<144x32xf32> to vector<16x32xf32>
    %cst_189 = arith.constant dense<0.000000e+00> : vector<3x32xf32>
    %190 = tpu.matmul %188, %189, %cst_189 {dimension_numbers = #tpu.dot_dimension_numbers<[1], [0], [0], [1], [0, 0, 1, 1], [], []>} : vector<3x16xf32>, vector<16x32xf32>, vector<3x32xf32> -> vector<3x32xf32>
    %191 = arith.addf %186, %190 : vector<3x32xf32>
    %192 = vector.broadcast %3 : vector<1x32xf32> to vector<3x32xf32>
    %193 = arith.addf %191, %192 : vector<3x32xf32>
    %cst_190 = arith.constant 0.000000e+00 : f32
    %194 = vector.broadcast %cst_190 : f32 to vector<3x32xf32>
    %195 = arith.maximumf %193, %194 : vector<3x32xf32>
    %cst_191 = arith.constant dense<0.000000e+00> : vector<3x32xf32>
    %196 = tpu.matmul %195, %4, %cst_191 {dimension_numbers = #tpu.dot_dimension_numbers<[1], [0], [0], [1], [0, 0, 1, 1], [], []>} : vector<3x32xf32>, vector<32x32xf32>, vector<3x32xf32> -> vector<3x32xf32>
    %197 = vector.broadcast %5 : vector<1x32xf32> to vector<3x32xf32>
    %198 = arith.addf %196, %197 : vector<3x32xf32>
    %c0_192 = arith.constant 0 : index
    %c0_193 = arith.constant 0 : index
    %c0_194 = arith.constant 0 : index
    %199 = vector.load %arg8[%c0_192, %c0_193, %c0_194] : memref<3x3x32xf32, #tpu.memory_space<vmem>>, vector<1x3x32xf32>
    %200 = vector.shape_cast %199 : vector<1x3x32xf32> to vector<3x32xf32>
    %201 = vector.shape_cast %198 : vector<3x32xf32> to vector<1x3x32xf32>
    tpu.vector_store %arg8[%c0_192, %c0_193, %c0_194], %201 {strides = array<i32>} : memref<3x3x32xf32, #tpu.memory_space<vmem>>, vector<1x3x32xf32>,
    %cst_195 = arith.constant 0.000000e+00 : f32
    %202 = vector.broadcast %cst_195 : f32 to vector<3x32xf32>
    %c0_196 = arith.constant 0 : index
    %c2_197 = arith.constant 2 : index
    %c0_198 = arith.constant 0 : index
    %c0_199 = arith.constant 0 : index
    %203 = vector.load %arg9[%c0_196, %c2_197, %c0_198, %c0_199] : memref<2x7x4x16xf32, #tpu.memory_space<vmem>>, vector<1x1x3x16xf32>
    %204 = vector.shape_cast %203 : vector<1x1x3x16xf32> to vector<3x16xf32>
    %205 = vector.extract_strided_slice %2 {offsets = [0, 0], sizes = [16, 32], strides = [1, 1]} : vector<144x32xf32> to vector<16x32xf32>
    %cst_200 = arith.constant dense<0.000000e+00> : vector<3x32xf32>
    %206 = tpu.matmul %204, %205, %cst_200 {dimension_numbers = #tpu.dot_dimension_numbers<[1], [0], [0], [1], [0, 0, 1, 1], [], []>} : vector<3x16xf32>, vector<16x32xf32>, vector<3x32xf32> -> vector<3x32xf32>
    %207 = arith.addf %202, %206 : vector<3x32xf32>
    %c1_201 = arith.constant 1 : index
    %c2_202 = arith.constant 2 : index
    %c0_203 = arith.constant 0 : index
    %c0_204 = arith.constant 0 : index
    %208 = vector.load %arg9[%c1_201, %c2_202, %c0_203, %c0_204] : memref<2x7x4x16xf32, #tpu.memory_space<vmem>>, vector<1x1x3x16xf32>
    %209 = vector.shape_cast %208 : vector<1x1x3x16xf32> to vector<3x16xf32>
    %210 = vector.extract_strided_slice %2 {offsets = [16, 0], sizes = [16, 32], strides = [1, 1]} : vector<144x32xf32> to vector<16x32xf32>
    %cst_205 = arith.constant dense<0.000000e+00> : vector<3x32xf32>
    %211 = tpu.matmul %209, %210, %cst_205 {dimension_numbers = #tpu.dot_dimension_numbers<[1], [0], [0], [1], [0, 0, 1, 1], [], []>} : vector<3x16xf32>, vector<16x32xf32>, vector<3x32xf32> -> vector<3x32xf32>
    %212 = arith.addf %207, %211 : vector<3x32xf32>
    %c0_206 = arith.constant 0 : index
    %c2_207 = arith.constant 2 : index
    %c1_208 = arith.constant 1 : index
    %c0_209 = arith.constant 0 : index
    %213 = vector.load %arg9[%c0_206, %c2_207, %c1_208, %c0_209] : memref<2x7x4x16xf32, #tpu.memory_space<vmem>>, vector<1x1x3x16xf32>
    %214 = vector.shape_cast %213 : vector<1x1x3x16xf32> to vector<3x16xf32>
    %215 = vector.extract_strided_slice %2 {offsets = [32, 0], sizes = [16, 32], strides = [1, 1]} : vector<144x32xf32> to vector<16x32xf32>
    %cst_210 = arith.constant dense<0.000000e+00> : vector<3x32xf32>
    %216 = tpu.matmul %214, %215, %cst_210 {dimension_numbers = #tpu.dot_dimension_numbers<[1], [0], [0], [1], [0, 0, 1, 1], [], []>} : vector<3x16xf32>, vector<16x32xf32>, vector<3x32xf32> -> vector<3x32xf32>
    %217 = arith.addf %212, %216 : vector<3x32xf32>
    %c0_211 = arith.constant 0 : index
    %c3_212 = arith.constant 3 : index
    %c0_213 = arith.constant 0 : index
    %c0_214 = arith.constant 0 : index
    %218 = vector.load %arg9[%c0_211, %c3_212, %c0_213, %c0_214] : memref<2x7x4x16xf32, #tpu.memory_space<vmem>>, vector<1x1x3x16xf32>
    %219 = vector.shape_cast %218 : vector<1x1x3x16xf32> to vector<3x16xf32>
    %220 = vector.extract_strided_slice %2 {offsets = [48, 0], sizes = [16, 32], strides = [1, 1]} : vector<144x32xf32> to vector<16x32xf32>
    %cst_215 = arith.constant dense<0.000000e+00> : vector<3x32xf32>
    %221 = tpu.matmul %219, %220, %cst_215 {dimension_numbers = #tpu.dot_dimension_numbers<[1], [0], [0], [1], [0, 0, 1, 1], [], []>} : vector<3x16xf32>, vector<16x32xf32>, vector<3x32xf32> -> vector<3x32xf32>
    %222 = arith.addf %217, %221 : vector<3x32xf32>
    %c1_216 = arith.constant 1 : index
    %c3_217 = arith.constant 3 : index
    %c0_218 = arith.constant 0 : index
    %c0_219 = arith.constant 0 : index
    %223 = vector.load %arg9[%c1_216, %c3_217, %c0_218, %c0_219] : memref<2x7x4x16xf32, #tpu.memory_space<vmem>>, vector<1x1x3x16xf32>
    %224 = vector.shape_cast %223 : vector<1x1x3x16xf32> to vector<3x16xf32>
    %225 = vector.extract_strided_slice %2 {offsets = [64, 0], sizes = [16, 32], strides = [1, 1]} : vector<144x32xf32> to vector<16x32xf32>
    %cst_220 = arith.constant dense<0.000000e+00> : vector<3x32xf32>
    %226 = tpu.matmul %224, %225, %cst_220 {dimension_numbers = #tpu.dot_dimension_numbers<[1], [0], [0], [1], [0, 0, 1, 1], [], []>} : vector<3x16xf32>, vector<16x32xf32>, vector<3x32xf32> -> vector<3x32xf32>
    %227 = arith.addf %222, %226 : vector<3x32xf32>
    %c0_221 = arith.constant 0 : index
    %c3_222 = arith.constant 3 : index
    %c1_223 = arith.constant 1 : index
    %c0_224 = arith.constant 0 : index
    %228 = vector.load %arg9[%c0_221, %c3_222, %c1_223, %c0_224] : memref<2x7x4x16xf32, #tpu.memory_space<vmem>>, vector<1x1x3x16xf32>
    %229 = vector.shape_cast %228 : vector<1x1x3x16xf32> to vector<3x16xf32>
    %230 = vector.extract_strided_slice %2 {offsets = [80, 0], sizes = [16, 32], strides = [1, 1]} : vector<144x32xf32> to vector<16x32xf32>
    %cst_225 = arith.constant dense<0.000000e+00> : vector<3x32xf32>
    %231 = tpu.matmul %229, %230, %cst_225 {dimension_numbers = #tpu.dot_dimension_numbers<[1], [0], [0], [1], [0, 0, 1, 1], [], []>} : vector<3x16xf32>, vector<16x32xf32>, vector<3x32xf32> -> vector<3x32xf32>
    %232 = arith.addf %227, %231 : vector<3x32xf32>
    %c0_226 = arith.constant 0 : index
    %c4_227 = arith.constant 4 : index
    %c0_228 = arith.constant 0 : index
    %c0_229 = arith.constant 0 : index
    %233 = vector.load %arg9[%c0_226, %c4_227, %c0_228, %c0_229] : memref<2x7x4x16xf32, #tpu.memory_space<vmem>>, vector<1x1x3x16xf32>
    %234 = vector.shape_cast %233 : vector<1x1x3x16xf32> to vector<3x16xf32>
    %235 = vector.extract_strided_slice %2 {offsets = [96, 0], sizes = [16, 32], strides = [1, 1]} : vector<144x32xf32> to vector<16x32xf32>
    %cst_230 = arith.constant dense<0.000000e+00> : vector<3x32xf32>
    %236 = tpu.matmul %234, %235, %cst_230 {dimension_numbers = #tpu.dot_dimension_numbers<[1], [0], [0], [1], [0, 0, 1, 1], [], []>} : vector<3x16xf32>, vector<16x32xf32>, vector<3x32xf32> -> vector<3x32xf32>
    %237 = arith.addf %232, %236 : vector<3x32xf32>
    %c1_231 = arith.constant 1 : index
    %c4_232 = arith.constant 4 : index
    %c0_233 = arith.constant 0 : index
    %c0_234 = arith.constant 0 : index
    %238 = vector.load %arg9[%c1_231, %c4_232, %c0_233, %c0_234] : memref<2x7x4x16xf32, #tpu.memory_space<vmem>>, vector<1x1x3x16xf32>
    %239 = vector.shape_cast %238 : vector<1x1x3x16xf32> to vector<3x16xf32>
    %240 = vector.extract_strided_slice %2 {offsets = [112, 0], sizes = [16, 32], strides = [1, 1]} : vector<144x32xf32> to vector<16x32xf32>
    %cst_235 = arith.constant dense<0.000000e+00> : vector<3x32xf32>
    %241 = tpu.matmul %239, %240, %cst_235 {dimension_numbers = #tpu.dot_dimension_numbers<[1], [0], [0], [1], [0, 0, 1, 1], [], []>} : vector<3x16xf32>, vector<16x32xf32>, vector<3x32xf32> -> vector<3x32xf32>
    %242 = arith.addf %237, %241 : vector<3x32xf32>
    %c0_236 = arith.constant 0 : index
    %c4_237 = arith.constant 4 : index
    %c1_238 = arith.constant 1 : index
    %c0_239 = arith.constant 0 : index
    %243 = vector.load %arg9[%c0_236, %c4_237, %c1_238, %c0_239] : memref<2x7x4x16xf32, #tpu.memory_space<vmem>>, vector<1x1x3x16xf32>
    %244 = vector.shape_cast %243 : vector<1x1x3x16xf32> to vector<3x16xf32>
    %245 = vector.extract_strided_slice %2 {offsets = [128, 0], sizes = [16, 32], strides = [1, 1]} : vector<144x32xf32> to vector<16x32xf32>
    %cst_240 = arith.constant dense<0.000000e+00> : vector<3x32xf32>
    %246 = tpu.matmul %244, %245, %cst_240 {dimension_numbers = #tpu.dot_dimension_numbers<[1], [0], [0], [1], [0, 0, 1, 1], [], []>} : vector<3x16xf32>, vector<16x32xf32>, vector<3x32xf32> -> vector<3x32xf32>
    %247 = arith.addf %242, %246 : vector<3x32xf32>
    %248 = vector.broadcast %3 : vector<1x32xf32> to vector<3x32xf32>
    %249 = arith.addf %247, %248 : vector<3x32xf32>
    %cst_241 = arith.constant 0.000000e+00 : f32
    %250 = vector.broadcast %cst_241 : f32 to vector<3x32xf32>
    %251 = arith.maximumf %249, %250 : vector<3x32xf32>
    %cst_242 = arith.constant dense<0.000000e+00> : vector<3x32xf32>
    %252 = tpu.matmul %251, %4, %cst_242 {dimension_numbers = #tpu.dot_dimension_numbers<[1], [0], [0], [1], [0, 0, 1, 1], [], []>} : vector<3x32xf32>, vector<32x32xf32>, vector<3x32xf32> -> vector<3x32xf32>
    %253 = vector.broadcast %5 : vector<1x32xf32> to vector<3x32xf32>
    %254 = arith.addf %252, %253 : vector<3x32xf32>
    %c1_243 = arith.constant 1 : index
    %c0_244 = arith.constant 0 : index
    %c0_245 = arith.constant 0 : index
    %255 = vector.load %arg8[%c1_243, %c0_244, %c0_245] : memref<3x3x32xf32, #tpu.memory_space<vmem>>, vector<1x3x32xf32>
    %256 = vector.shape_cast %255 : vector<1x3x32xf32> to vector<3x32xf32>
    %257 = vector.shape_cast %254 : vector<3x32xf32> to vector<1x3x32xf32>
    tpu.vector_store %arg8[%c1_243, %c0_244, %c0_245], %257 {strides = array<i32>} : memref<3x3x32xf32, #tpu.memory_space<vmem>>, vector<1x3x32xf32>,
    %cst_246 = arith.constant 0.000000e+00 : f32
    %258 = vector.broadcast %cst_246 : f32 to vector<3x32xf32>
    %c0_247 = arith.constant 0 : index
    %c4_248 = arith.constant 4 : index
    %c0_249 = arith.constant 0 : index
    %c0_250 = arith.constant 0 : index
    %259 = vector.load %arg9[%c0_247, %c4_248, %c0_249, %c0_250] : memref<2x7x4x16xf32, #tpu.memory_space<vmem>>, vector<1x1x3x16xf32>
    %260 = vector.shape_cast %259 : vector<1x1x3x16xf32> to vector<3x16xf32>
    %261 = vector.extract_strided_slice %2 {offsets = [0, 0], sizes = [16, 32], strides = [1, 1]} : vector<144x32xf32> to vector<16x32xf32>
    %cst_251 = arith.constant dense<0.000000e+00> : vector<3x32xf32>
    %262 = tpu.matmul %260, %261, %cst_251 {dimension_numbers = #tpu.dot_dimension_numbers<[1], [0], [0], [1], [0, 0, 1, 1], [], []>} : vector<3x16xf32>, vector<16x32xf32>, vector<3x32xf32> -> vector<3x32xf32>
    %263 = arith.addf %258, %262 : vector<3x32xf32>
    %c1_252 = arith.constant 1 : index
    %c4_253 = arith.constant 4 : index
    %c0_254 = arith.constant 0 : index
    %c0_255 = arith.constant 0 : index
    %264 = vector.load %arg9[%c1_252, %c4_253, %c0_254, %c0_255] : memref<2x7x4x16xf32, #tpu.memory_space<vmem>>, vector<1x1x3x16xf32>
    %265 = vector.shape_cast %264 : vector<1x1x3x16xf32> to vector<3x16xf32>
    %266 = vector.extract_strided_slice %2 {offsets = [16, 0], sizes = [16, 32], strides = [1, 1]} : vector<144x32xf32> to vector<16x32xf32>
    %cst_256 = arith.constant dense<0.000000e+00> : vector<3x32xf32>
    %267 = tpu.matmul %265, %266, %cst_256 {dimension_numbers = #tpu.dot_dimension_numbers<[1], [0], [0], [1], [0, 0, 1, 1], [], []>} : vector<3x16xf32>, vector<16x32xf32>, vector<3x32xf32> -> vector<3x32xf32>
    %268 = arith.addf %263, %267 : vector<3x32xf32>
    %c0_257 = arith.constant 0 : index
    %c4_258 = arith.constant 4 : index
    %c1_259 = arith.constant 1 : index
    %c0_260 = arith.constant 0 : index
    %269 = vector.load %arg9[%c0_257, %c4_258, %c1_259, %c0_260] : memref<2x7x4x16xf32, #tpu.memory_space<vmem>>, vector<1x1x3x16xf32>
    %270 = vector.shape_cast %269 : vector<1x1x3x16xf32> to vector<3x16xf32>
    %271 = vector.extract_strided_slice %2 {offsets = [32, 0], sizes = [16, 32], strides = [1, 1]} : vector<144x32xf32> to vector<16x32xf32>
    %cst_261 = arith.constant dense<0.000000e+00> : vector<3x32xf32>
    %272 = tpu.matmul %270, %271, %cst_261 {dimension_numbers = #tpu.dot_dimension_numbers<[1], [0], [0], [1], [0, 0, 1, 1], [], []>} : vector<3x16xf32>, vector<16x32xf32>, vector<3x32xf32> -> vector<3x32xf32>
    %273 = arith.addf %268, %272 : vector<3x32xf32>
    %c0_262 = arith.constant 0 : index
    %c5_263 = arith.constant 5 : index
    %c0_264 = arith.constant 0 : index
    %c0_265 = arith.constant 0 : index
    %274 = vector.load %arg9[%c0_262, %c5_263, %c0_264, %c0_265] : memref<2x7x4x16xf32, #tpu.memory_space<vmem>>, vector<1x1x3x16xf32>
    %275 = vector.shape_cast %274 : vector<1x1x3x16xf32> to vector<3x16xf32>
    %276 = vector.extract_strided_slice %2 {offsets = [48, 0], sizes = [16, 32], strides = [1, 1]} : vector<144x32xf32> to vector<16x32xf32>
    %cst_266 = arith.constant dense<0.000000e+00> : vector<3x32xf32>
    %277 = tpu.matmul %275, %276, %cst_266 {dimension_numbers = #tpu.dot_dimension_numbers<[1], [0], [0], [1], [0, 0, 1, 1], [], []>} : vector<3x16xf32>, vector<16x32xf32>, vector<3x32xf32> -> vector<3x32xf32>
    %278 = arith.addf %273, %277 : vector<3x32xf32>
    %c1_267 = arith.constant 1 : index
    %c5_268 = arith.constant 5 : index
    %c0_269 = arith.constant 0 : index
    %c0_270 = arith.constant 0 : index
    %279 = vector.load %arg9[%c1_267, %c5_268, %c0_269, %c0_270] : memref<2x7x4x16xf32, #tpu.memory_space<vmem>>, vector<1x1x3x16xf32>
    %280 = vector.shape_cast %279 : vector<1x1x3x16xf32> to vector<3x16xf32>
    %281 = vector.extract_strided_slice %2 {offsets = [64, 0], sizes = [16, 32], strides = [1, 1]} : vector<144x32xf32> to vector<16x32xf32>
    %cst_271 = arith.constant dense<0.000000e+00> : vector<3x32xf32>
    %282 = tpu.matmul %280, %281, %cst_271 {dimension_numbers = #tpu.dot_dimension_numbers<[1], [0], [0], [1], [0, 0, 1, 1], [], []>} : vector<3x16xf32>, vector<16x32xf32>, vector<3x32xf32> -> vector<3x32xf32>
    %283 = arith.addf %278, %282 : vector<3x32xf32>
    %c0_272 = arith.constant 0 : index
    %c5_273 = arith.constant 5 : index
    %c1_274 = arith.constant 1 : index
    %c0_275 = arith.constant 0 : index
    %284 = vector.load %arg9[%c0_272, %c5_273, %c1_274, %c0_275] : memref<2x7x4x16xf32, #tpu.memory_space<vmem>>, vector<1x1x3x16xf32>
    %285 = vector.shape_cast %284 : vector<1x1x3x16xf32> to vector<3x16xf32>
    %286 = vector.extract_strided_slice %2 {offsets = [80, 0], sizes = [16, 32], strides = [1, 1]} : vector<144x32xf32> to vector<16x32xf32>
    %cst_276 = arith.constant dense<0.000000e+00> : vector<3x32xf32>
    %287 = tpu.matmul %285, %286, %cst_276 {dimension_numbers = #tpu.dot_dimension_numbers<[1], [0], [0], [1], [0, 0, 1, 1], [], []>} : vector<3x16xf32>, vector<16x32xf32>, vector<3x32xf32> -> vector<3x32xf32>
    %288 = arith.addf %283, %287 : vector<3x32xf32>
    %c0_277 = arith.constant 0 : index
    %c6_278 = arith.constant 6 : index
    %c0_279 = arith.constant 0 : index
    %c0_280 = arith.constant 0 : index
    %289 = vector.load %arg9[%c0_277, %c6_278, %c0_279, %c0_280] : memref<2x7x4x16xf32, #tpu.memory_space<vmem>>, vector<1x1x3x16xf32>
    %290 = vector.shape_cast %289 : vector<1x1x3x16xf32> to vector<3x16xf32>
    %291 = vector.extract_strided_slice %2 {offsets = [96, 0], sizes = [16, 32], strides = [1, 1]} : vector<144x32xf32> to vector<16x32xf32>
    %cst_281 = arith.constant dense<0.000000e+00> : vector<3x32xf32>
    %292 = tpu.matmul %290, %291, %cst_281 {dimension_numbers = #tpu.dot_dimension_numbers<[1], [0], [0], [1], [0, 0, 1, 1], [], []>} : vector<3x16xf32>, vector<16x32xf32>, vector<3x32xf32> -> vector<3x32xf32>
    %293 = arith.addf %288, %292 : vector<3x32xf32>
    %c1_282 = arith.constant 1 : index
    %c6_283 = arith.constant 6 : index
    %c0_284 = arith.constant 0 : index
    %c0_285 = arith.constant 0 : index
    %294 = vector.load %arg9[%c1_282, %c6_283, %c0_284, %c0_285] : memref<2x7x4x16xf32, #tpu.memory_space<vmem>>, vector<1x1x3x16xf32>
    %295 = vector.shape_cast %294 : vector<1x1x3x16xf32> to vector<3x16xf32>
    %296 = vector.extract_strided_slice %2 {offsets = [112, 0], sizes = [16, 32], strides = [1, 1]} : vector<144x32xf32> to vector<16x32xf32>
    %cst_286 = arith.constant dense<0.000000e+00> : vector<3x32xf32>
    %297 = tpu.matmul %295, %296, %cst_286 {dimension_numbers = #tpu.dot_dimension_numbers<[1], [0], [0], [1], [0, 0, 1, 1], [], []>} : vector<3x16xf32>, vector<16x32xf32>, vector<3x32xf32> -> vector<3x32xf32>
    %298 = arith.addf %293, %297 : vector<3x32xf32>
    %c0_287 = arith.constant 0 : index
    %c6_288 = arith.constant 6 : index
    %c1_289 = arith.constant 1 : index
    %c0_290 = arith.constant 0 : index
    %299 = vector.load %arg9[%c0_287, %c6_288, %c1_289, %c0_290] : memref<2x7x4x16xf32, #tpu.memory_space<vmem>>, vector<1x1x3x16xf32>
    %300 = vector.shape_cast %299 : vector<1x1x3x16xf32> to vector<3x16xf32>
    %301 = vector.extract_strided_slice %2 {offsets = [128, 0], sizes = [16, 32], strides = [1, 1]} : vector<144x32xf32> to vector<16x32xf32>
    %cst_291 = arith.constant dense<0.000000e+00> : vector<3x32xf32>
    %302 = tpu.matmul %300, %301, %cst_291 {dimension_numbers = #tpu.dot_dimension_numbers<[1], [0], [0], [1], [0, 0, 1, 1], [], []>} : vector<3x16xf32>, vector<16x32xf32>, vector<3x32xf32> -> vector<3x32xf32>
    %303 = arith.addf %298, %302 : vector<3x32xf32>
    %304 = vector.broadcast %3 : vector<1x32xf32> to vector<3x32xf32>
    %305 = arith.addf %303, %304 : vector<3x32xf32>
    %cst_292 = arith.constant 0.000000e+00 : f32
    %306 = vector.broadcast %cst_292 : f32 to vector<3x32xf32>
    %307 = arith.maximumf %305, %306 : vector<3x32xf32>
    %cst_293 = arith.constant dense<0.000000e+00> : vector<3x32xf32>
    %308 = tpu.matmul %307, %4, %cst_293 {dimension_numbers = #tpu.dot_dimension_numbers<[1], [0], [0], [1], [0, 0, 1, 1], [], []>} : vector<3x32xf32>, vector<32x32xf32>, vector<3x32xf32> -> vector<3x32xf32>
    %309 = vector.broadcast %5 : vector<1x32xf32> to vector<3x32xf32>
    %310 = arith.addf %308, %309 : vector<3x32xf32>
    %c2_294 = arith.constant 2 : index
    %c0_295 = arith.constant 0 : index
    %c0_296 = arith.constant 0 : index
    %311 = vector.load %arg8[%c2_294, %c0_295, %c0_296] : memref<3x3x32xf32, #tpu.memory_space<vmem>>, vector<1x3x32xf32>
    %312 = vector.shape_cast %311 : vector<1x3x32xf32> to vector<3x32xf32>
    %313 = vector.shape_cast %310 : vector<3x32xf32> to vector<1x3x32xf32>
    tpu.vector_store %arg8[%c2_294, %c0_295, %c0_296], %313 {strides = array<i32>} : memref<3x3x32xf32, #tpu.memory_space<vmem>>, vector<1x3x32xf32>,
    return
  }
  func.func @transform_0(%arg0: i32) -> (i32, i32, i32, i32) {
    %c0_i32 = arith.constant 0 : i32
    %c0_i32_0 = arith.constant 0 : i32
    %c0_i32_1 = arith.constant 0 : i32
    %c0_i32_2 = arith.constant 0 : i32
    %c0_i32_3 = arith.constant 0 : i32
    return %c0_i32, %c0_i32_0, %c0_i32_1, %c0_i32_2 : i32, i32, i32, i32
  }
  func.func @transform_1(%arg0: i32) -> (i32, i32) {
    %c0_i32 = arith.constant 0 : i32
    %c0_i32_0 = arith.constant 0 : i32
    %c0_i32_1 = arith.constant 0 : i32
    return %c0_i32, %c0_i32_0 : i32, i32
  }
  func.func @transform_2(%arg0: i32) -> (i32, i32) {
    %c0_i32 = arith.constant 0 : i32
    %c0_i32_0 = arith.constant 0 : i32
    %c0_i32_1 = arith.constant 0 : i32
    return %c0_i32, %c0_i32_0 : i32, i32
  }
  func.func @transform_3(%arg0: i32) -> (i32, i32) {
    %c0_i32 = arith.constant 0 : i32
    %c0_i32_0 = arith.constant 0 : i32
    %c0_i32_1 = arith.constant 0 : i32
    return %c0_i32, %c0_i32_0 : i32, i32
  }
  func.func @transform_4(%arg0: i32) -> (i32, i32) {
    %c0_i32 = arith.constant 0 : i32
    %c0_i32_0 = arith.constant 0 : i32
    %c0_i32_1 = arith.constant 0 : i32
    return %c0_i32, %c0_i32_0 : i32, i32
  }
  func.func @transform_5(%arg0: i32) -> (i32, i32) {
    %c0_i32 = arith.constant 0 : i32
    %c0_i32_0 = arith.constant 0 : i32
    %c0_i32_1 = arith.constant 0 : i32
    return %c0_i32, %c0_i32_0 : i32, i32
  }
  func.func @transform_6(%arg0: i32) -> (i32, i32) {
    %c0_i32 = arith.constant 0 : i32
    %c0_i32_0 = arith.constant 0 : i32
    %c0_i32_1 = arith.constant 0 : i32
    return %c0_i32, %c0_i32_0 : i32, i32
  }
  func.func @transform_7(%arg0: i32) -> (i32, i32, i32) {
    %c0_i32 = arith.constant 0 : i32
    %c0_i32_0 = arith.constant 0 : i32
    %c0_i32_1 = arith.constant 0 : i32
    %c0_i32_2 = arith.constant 0 : i32
    return %c0_i32, %c0_i32_0, %c0_i32_1 : i32, i32, i32
  }
}

</mosaic_0001>

<llo_original>
// kernel: _temple_impl.1
$region0: #{_temple_impl.1}
  #allocation0 [shape = 'u32[]', space=smem, size = 0x4, offset = 0x4, fixed_abs, tag = 'smem constant byte address 0x4 - core index']
  #allocation1 [shape = 'u32[144,128]{1,0:T(1,128)}', space=vmem, size = 0x12000, scoped, tag = 'internal scratch']
  #allocation2 [shape = 'f32[2,7,4,16]{3,2,1,0:T(4,128)}', space=vmem, size = 0x7000, scoped, tag = 'scratch operand']
  %s0 = inlined_call_operand.vmem [shape: f32[2,7,4,27], index: 0, kind: input, shape index: {}]
  %s1 = inlined_call_operand.vmem [shape: f32[27,16], index: 1, kind: input, shape index: {}]
  %s2 = inlined_call_operand.vmem [shape: f32[1,16], index: 2, kind: input, shape index: {}]
  %s3 = inlined_call_operand.vmem [shape: f32[144,32], index: 3, kind: input, shape index: {}]
  %s4 = inlined_call_operand.vmem [shape: f32[1,32], index: 4, kind: input, shape index: {}]
  %s5 = inlined_call_operand.vmem [shape: f32[32,32], index: 5, kind: input, shape index: {}]
  %s6 = inlined_call_operand.vmem [shape: f32[1,32], index: 6, kind: input, shape index: {}]
  %s7 = inlined_call_operand.hbm [shape: f32[3,3,32], index: 7, kind: output, shape index: {}]
  %s8 = sld [smem:[#allocation0]]
  $region38: #{_temple_impl.1} parent=0
    _
  %s10 = ssub.s32 1, %s8
  %s11 = scalar_select 0, %s10, %s8
  $region1: #{_temple_impl.1} parent=0
    #allocation3 [shape = 'u8[6144]{0}', space=vmem, size = 0x1800, scoped, tag = 'output window, operand 0, single buffered']
    #allocation4 [shape = 's32[1]{0}', space=sflag, size = 0x4, scoped, tag = 'scoped memory for _temple_impl.1']
    %12 = vsyncpa [#allocation4], 0
    // Predicated region
    $region2: #{_temple_impl.1} parent=1 // pred_check
      _
    $region3: #{_temple_impl.1} parent=1 // pred_check_branch
      %14 = sbr.rel (0) target = $region5
    $region4: #{_temple_impl.1} parent=1 // pred_region
      _
    $region5: #{_temple_impl.1} parent=1 // pred_fallthru
      _
    // Predicated region
    $region6: #{_temple_impl.1} parent=1 // pred_check
      _
    $region7: #{_temple_impl.1} parent=1 // pred_check_branch
      %16 = sbr.rel (0) target = $region9
    $region8: #{_temple_impl.1} parent=1 // pred_region
      _
    $region9: #{_temple_impl.1} parent=1 // pred_fallthru
      _
    // Predicated region
    $region10: #{_temple_impl.1} parent=1 // pred_check
      _
    $region11: #{_temple_impl.1} parent=1 // pred_check_branch
      %18 = sbr.rel (0) target = $region13
    $region12: #{_temple_impl.1} parent=1 // pred_region
      _
    $region13: #{_temple_impl.1} parent=1 // pred_fallthru
      _
    // Predicated region
    $region14: #{_temple_impl.1} parent=1 // pred_check
      _
    $region15: #{_temple_impl.1} parent=1 // pred_check_branch
      %20 = sbr.rel (0) target = $region17
    $region16: #{_temple_impl.1} parent=1 // pred_region
      _
    $region17: #{_temple_impl.1} parent=1 // pred_fallthru
      _
    // Predicated region
    $region18: #{_temple_impl.1} parent=1 // pred_check
      _
    $region19: #{_temple_impl.1} parent=1 // pred_check_branch
      %22 = sbr.rel (0) target = $region21
    $region20: #{_temple_impl.1} parent=1 // pred_region
      _
    $region21: #{_temple_impl.1} parent=1 // pred_fallthru
      _
    // Predicated region
    $region22: #{_temple_impl.1} parent=1 // pred_check
      _
    $region23: #{_temple_impl.1} parent=1 // pred_check_branch
      %24 = sbr.rel (0) target = $region25
    $region24: #{_temple_impl.1} parent=1 // pred_region
      _
    $region25: #{_temple_impl.1} parent=1 // pred_fallthru
      _
    // Predicated region
    $region26: #{_temple_impl.1} parent=1 // pred_check
      _
    $region27: #{_temple_impl.1} parent=1 // pred_check_branch
      %26 = sbr.rel (0) target = $region29
    $region28: #{_temple_impl.1} parent=1 // pred_region
      _
    $region29: #{_temple_impl.1} parent=1 // pred_fallthru
      _
    %v27 = vld [vmem:[%s1] sm:$0xff]
    %v28 = vld [vmem:[%s1 + $0x8] sm:$0xff]
    %v29 = vld [vmem:[%s1 + $0x10] sm:$0xff]
    %v30 = vld [vmem:[%s1 + $0x18] sm:$0x7]
    %v31 = vld [vmem:[%s2] sm:$0x1]
    %v32 = vld [vmem:[%s3] sm:$0xff]
    %v33 = vld [vmem:[%s3 + $0x8] sm:$0xff]
    %v34 = vld [vmem:[%s3 + $0x10] sm:$0xff]
    %v35 = vld [vmem:[%s3 + $0x18] sm:$0xff]
    %v36 = vld [vmem:[%s3 + $0x20] sm:$0xff]
    %v37 = vld [vmem:[%s3 + $0x28] sm:$0xff]
    %v38 = vld [vmem:[%s3 + $0x30] sm:$0xff]
    %v39 = vld [vmem:[%s3 + $0x38] sm:$0xff]
    %v40 = vld [vmem:[%s3 + $0x40] sm:$0xff]
    %v41 = vld [vmem:[%s3 + $0x48] sm:$0xff]
    %v42 = vld [vmem:[%s3 + $0x50] sm:$0xff]
    %v43 = vld [vmem:[%s3 + $0x58] sm:$0xff]
    %v44 = vld [vmem:[%s3 + $0x60] sm:$0xff]
    %v45 = vld [vmem:[%s3 + $0x68] sm:$0xff]
    %v46 = vld [vmem:[%s3 + $0x70] sm:$0xff]
    %v47 = vld [vmem:[%s3 + $0x78] sm:$0xff]
    %v48 = vld [vmem:[%s3 + $0x80] sm:$0xff]
    %v49 = vld [vmem:[%s3 + $0x88] sm:$0xff]
    %v50 = vld [vmem:[%s4] sm:$0x1]
    %v51 = vld [vmem:[%s5] sm:$0xff]
    %v52 = vld [vmem:[%s5 + $0x8] sm:$0xff]
    %v53 = vld [vmem:[%s5 + $0x10] sm:$0xff]
    %v54 = vld [vmem:[%s5 + $0x18] sm:$0xff]
    %v55 = vld [vmem:[%s6] sm:$0x1]
    %v56 = vld [vmem:[%s0] sm:$0xf]
    %v58 = vlaneseq
    %v59 = vshrl.u32 %v58, 7
    %v60 = vsub.s32 0, %v59
    %v61 = vrot.slane %v31, %v60
    %vm63 = vcmask 220160
    %v65 = vsel %vm63, %v56, 0
    %vm67 = vcmask 1042432
    %v69 = vsel %vm67, %v30, 0
    %71 = vmatprep.subr.mxu0 0.0
    %72 = vmatpush1.msra.mxu0 %v27
    %73 = vmatprep.subr.mxu0 0.0
    %74 = vmatpush1.msra.mxu0 %v28
    %75 = vmatprep.subr.mxu0 0.0
    %76 = vmatpush1.msra.mxu0 %v29
    %77 = vmatprep.subr.mxu0 0.0
    %78 = vmatpush1.msra.mxu0 %v69
    %79 = vmatprep.subr.mxu0 0.0
    %80 = vmatpush1.msra.mxu0 0.0
    %81 = vmatprep.subr.mxu0 0.0
    %82 = vmatpush1.msra.mxu0 0.0
    %83 = vmatprep.subr.mxu0 0.0
    %84 = vmatpush1.msra.mxu0 0.0
    %85 = vmatprep.subr.mxu0 0.0
    %86 = vmatpush1.msra.mxu0 0.0
    %87 = vmatprep.subr.mxu0 0.0
    %88 = vmatpush1.msra.mxu0 0.0
    %89 = vmatprep.subr.mxu0 0.0
    %90 = vmatpush1.msra.mxu0 0.0
    %91 = vmatprep.subr.mxu0 0.0
    %92 = vmatpush1.msra.mxu0 0.0
    %93 = vmatprep.subr.mxu0 0.0
    %94 = vmatpush1.msra.mxu0 0.0
    %95 = vmatprep.subr.mxu0 0.0
    %96 = vmatpush1.msra.mxu0 0.0
    %97 = vmatprep.subr.mxu0 0.0
    %98 = vmatpush1.msra.mxu0 0.0
    %99 = vmatprep.subr.mxu0 0.0
    %100 = vmatpush1.msra.mxu0 0.0
    %101 = vmatprep.subr.mxu0 0.0
    %102 = vmatpush1.msra.mxu0 0.0
    %103 = vmatprep.subr.mxu0 0.0
    %104 = vmatpush1.msra.mxu0 0.0
    %105 = vmatprep.subr.mxu0 0.0
    %106 = vmatpush1.msra.mxu0 0.0
    %107 = vmatprep.subr.mxu0 0.0
    %108 = vmatpush1.msra.mxu0 0.0
    %109 = vmatprep.subr.mxu0 0.0
    %110 = vmatpush1.msra.mxu0 0.0
    %111 = vmatprep.subr.mxu0 0.0
    %112 = vmatpush1.msra.mxu0 0.0
    %113 = vmatprep.subr.mxu0 0.0
    %114 = vmatpush1.msra.mxu0 0.0
    %115 = vmatprep.subr.mxu0 0.0
    %116 = vmatpush1.msra.mxu0 0.0
    %117 = vmatprep.subr.mxu0 0.0
    %118 = vmatpush1.msra.mxu0 0.0
    %119 = vmatprep.subr.mxu0 0.0
    %120 = vmatpush1.msra.mxu0 0.0
    %121 = vmatprep.subr.mxu0 0.0
    %122 = vmatpush1.msra.mxu0 0.0
    %123 = vmatprep.subr.mxu0 0.0
    %124 = vmatpush1.msra.mxu0 0.0
    %125 = vmatprep.subr.mxu0 0.0
    %126 = vmatpush1.msra.mxu0 0.0
    %127 = vmatprep.subr.mxu0 0.0
    %128 = vmatpush1.msra.mxu0 0.0
    %129 = vmatprep.subr.mxu0 0.0
    %130 = vmatpush1.msra.mxu0 0.0
    %131 = vmatprep.subr.mxu0 0.0
    %132 = vmatpush1.msra.mxu0 0.0
    %133 = vmatprep.subr.mxu0 0.0
    %134 = vmatpush1.msra.mxu0 0.0
    %135 = vmatprep.mubr.f32.mxu0 0.0
    %136 = vmatmul.mubr.f32.gmra.mrb[0].mxu0 %v65
    %v137 = vpop.f32.mrb[0].mxu0
    %v138 = vadd.f32 %v61, %v137
    %v139 = vpop.f32.mrb[0].mxu0
    %140 = vdwg.mxu0
    %v141 = vmax.f32 %v138, 0.0
    %vm142 = vcmask 125952
    %143 = vst.msk [vmem:[#allocation2] sm:$0xf] %vm142, %v141
    %s144 = scalar_lea.vmem %s0, 4
    %v145 = vld [vmem:[%s144] sm:$0xf]
    %v147 = vsel %vm63, %v145, 0
    %149 = vmatprep.subr.mxu0 0.0
    %150 = vmatpush1.msra.mxu0 %v27
    %151 = vmatprep.subr.mxu0 0.0
    %152 = vmatpush1.msra.mxu0 %v28
    %153 = vmatprep.subr.mxu0 0.0
    %154 = vmatpush1.msra.mxu0 %v29
    %155 = vmatprep.subr.mxu0 0.0
    %156 = vmatpush1.msra.mxu0 %v69
    %157 = vmatprep.subr.mxu0 0.0
    %158 = vmatpush1.msra.mxu0 0.0
    %159 = vmatprep.subr.mxu0 0.0
    %160 = vmatpush1.msra.mxu0 0.0
    %161 = vmatprep.subr.mxu0 0.0
    %162 = vmatpush1.msra.mxu0 0.0
    %163 = vmatprep.subr.mxu0 0.0
    %164 = vmatpush1.msra.mxu0 0.0
    %165 = vmatprep.subr.mxu0 0.0
    %166 = vmatpush1.msra.mxu0 0.0
    %167 = vmatprep.subr.mxu0 0.0
    %168 = vmatpush1.msra.mxu0 0.0
    %169 = vmatprep.subr.mxu0 0.0
    %170 = vmatpush1.msra.mxu0 0.0
    %171 = vmatprep.subr.mxu0 0.0
    %172 = vmatpush1.msra.mxu0 0.0
    %173 = vmatprep.subr.mxu0 0.0
    %174 = vmatpush1.msra.mxu0 0.0
    %175 = vmatprep.subr.mxu0 0.0
    %176 = vmatpush1.msra.mxu0 0.0
    %177 = vmatprep.subr.mxu0 0.0
    %178 = vmatpush1.msra.mxu0 0.0
    %179 = vmatprep.subr.mxu0 0.0
    %180 = vmatpush1.msra.mxu0 0.0
    %181 = vmatprep.subr.mxu0 0.0
    %182 = vmatpush1.msra.mxu0 0.0
    %183 = vmatprep.subr.mxu0 0.0
    %184 = vmatpush1.msra.mxu0 0.0
    %185 = vmatprep.subr.mxu0 0.0
    %186 = vmatpush1.msra.mxu0 0.0
    %187 = vmatprep.subr.mxu0 0.0
    %188 = vmatpush1.msra.mxu0 0.0
    %189 = vmatprep.subr.mxu0 0.0
    %190 = vmatpush1.msra.mxu0 0.0
    %191 = vmatprep.subr.mxu0 0.0
    %192 = vmatpush1.msra.mxu0 0.0
    %193 = vmatprep.subr.mxu0 0.0
    %194 = vmatpush1.msra.mxu0 0.0
    %195 = vmatprep.subr.mxu0 0.0
    %196 = vmatpush1.msra.mxu0 0.0
    %197 = vmatprep.subr.mxu0 0.0
    %198 = vmatpush1.msra.mxu0 0.0
    %199 = vmatprep.subr.mxu0 0.0
    %200 = vmatpush1.msra.mxu0 0.0
    %201 = vmatprep.subr.mxu0 0.0
    %202 = vmatpush1.msra.mxu0 0.0
    %203 = vmatprep.subr.mxu0 0.0
    %204 = vmatpush1.msra.mxu0 0.0
    %205 = vmatprep.subr.mxu0 0.0
    %206 = vmatpush1.msra.mxu0 0.0
    %207 = vmatprep.subr.mxu0 0.0
    %208 = vmatpush1.msra.mxu0 0.0
    %209 = vmatprep.subr.mxu0 0.0
    %210 = vmatpush1.msra.mxu0 0.0
    %211 = vmatprep.subr.mxu0 0.0
    %212 = vmatpush1.msra.mxu0 0.0
    %213 = vmatprep.mubr.f32.mxu0 0.0
    %214 = vmatmul.mubr.f32.gmra.mrb[0].mxu0 %v147
    %v215 = vpop.f32.mrb[0].mxu0
    %v216 = vadd.f32 %v61, %v215
    %v217 = vpop.f32.mrb[0].mxu0
    %218 = vdwg.mxu0
    %v219 = vmax.f32 %v216, 0.0
    %s220 = scalar_lea.vmem [#allocation2], 4
    %221 = vst.msk [vmem:[%s220] sm:$0xf] %vm142, %v219
    %s222 = scalar_lea.vmem %s0, 8
    %v223 = vld [vmem:[%s222] sm:$0xf]
    %v225 = vsel %vm63, %v223, 0
    %227 = vmatprep.subr.mxu0 0.0
    %228 = vmatpush1.msra.mxu0 %v27
    %229 = vmatprep.subr.mxu0 0.0
    %230 = vmatpush1.msra.mxu0 %v28
    %231 = vmatprep.subr.mxu0 0.0
    %232 = vmatpush1.msra.mxu0 %v29
    %233 = vmatprep.subr.mxu0 0.0
    %234 = vmatpush1.msra.mxu0 %v69
    %235 = vmatprep.subr.mxu0 0.0
    %236 = vmatpush1.msra.mxu0 0.0
    %237 = vmatprep.subr.mxu0 0.0
    %238 = vmatpush1.msra.mxu0 0.0
    %239 = vmatprep.subr.mxu0 0.0
    %240 = vmatpush1.msra.mxu0 0.0
    %241 = vmatprep.subr.mxu0 0.0
    %242 = vmatpush1.msra.mxu0 0.0
    %243 = vmatprep.subr.mxu0 0.0
    %244 = vmatpush1.msra.mxu0 0.0
    %245 = vmatprep.subr.mxu0 0.0
    %246 = vmatpush1.msra.mxu0 0.0
    %247 = vmatprep.subr.mxu0 0.0
    %248 = vmatpush1.msra.mxu0 0.0
    %249 = vmatprep.subr.mxu0 0.0
    %250 = vmatpush1.msra.mxu0 0.0
    %251 = vmatprep.subr.mxu0 0.0
    %252 = vmatpush1.msra.mxu0 0.0
    %253 = vmatprep.subr.mxu0 0.0
    %254 = vmatpush1.msra.mxu0 0.0
    %255 = vmatprep.subr.mxu0 0.0
    %256 = vmatpush1.msra.mxu0 0.0
    %257 = vmatprep.subr.mxu0 0.0
    %258 = vmatpush1.msra.mxu0 0.0
    %259 = vmatprep.subr.mxu0 0.0
    %260 = vmatpush1.msra.mxu0 0.0
    %261 = vmatprep.subr.mxu0 0.0
    %262 = vmatpush1.msra.mxu0 0.0
    %263 = vmatprep.subr.mxu0 0.0
    %264 = vmatpush1.msra.mxu0 0.0
    %265 = vmatprep.subr.mxu0 0.0
    %266 = vmatpush1.msra.mxu0 0.0
    %267 = vmatprep.subr.mxu0 0.0
    %268 = vmatpush1.msra.mxu0 0.0
    %269 = vmatprep.subr.mxu0 0.0
    %270 = vmatpush1.msra.mxu0 0.0
    %271 = vmatprep.subr.mxu0 0.0
    %272 = vmatpush1.msra.mxu0 0.0
    %273 = vmatprep.subr.mxu0 0.0
    %274 = vmatpush1.msra.mxu0 0.0
    %275 = vmatprep.subr.mxu0 0.0
    %276 = vmatpush1.msra.mxu0 0.0
    %277 = vmatprep.subr.mxu0 0.0
    %278 = vmatpush1.msra.mxu0 0.0
    %279 = vmatprep.subr.mxu0 0.0
    %280 = vmatpush1.msra.mxu0 0.0
    %281 = vmatprep.subr.mxu0 0.0
    %282 = vmatpush1.msra.mxu0 0.0
    %283 = vmatprep.subr.mxu0 0.0
    %284 = vmatpush1.msra.mxu0 0.0
    %285 = vmatprep.subr.mxu0 0.0
    %286 = vmatpush1.msra.mxu0 0.0
    %287 = vmatprep.subr.mxu0 0.0
    %288 = vmatpush1.msra.mxu0 0.0
    %289 = vmatprep.subr.mxu0 0.0
    %290 = vmatpush1.msra.mxu0 0.0
    %291 = vmatprep.mubr.f32.mxu0 0.0
    %292 = vmatmul.mubr.f32.gmra.mrb[0].mxu0 %v225
    %v293 = vpop.f32.mrb[0].mxu0
    %v294 = vadd.f32 %v61, %v293
    %v295 = vpop.f32.mrb[0].mxu0
    %296 = vdwg.mxu0
    %v297 = vmax.f32 %v294, 0.0
    %s298 = scalar_lea.vmem [#allocation2], 8
    %299 = vst.msk [vmem:[%s298] sm:$0xf] %vm142, %v297
    %s300 = scalar_lea.vmem %s0, 12
    %v301 = vld [vmem:[%s300] sm:$0xf]
    %v303 = vsel %vm63, %v301, 0
    %305 = vmatprep.subr.mxu0 0.0
    %306 = vmatpush1.msra.mxu0 %v27
    %307 = vmatprep.subr.mxu0 0.0
    %308 = vmatpush1.msra.mxu0 %v28
    %309 = vmatprep.subr.mxu0 0.0
    %310 = vmatpush1.msra.mxu0 %v29
    %311 = vmatprep.subr.mxu0 0.0
    %312 = vmatpush1.msra.mxu0 %v69
    %313 = vmatprep.subr.mxu0 0.0
    %314 = vmatpush1.msra.mxu0 0.0
    %315 = vmatprep.subr.mxu0 0.0
    %316 = vmatpush1.msra.mxu0 0.0
    %317 = vmatprep.subr.mxu0 0.0
    %318 = vmatpush1.msra.mxu0 0.0
    %319 = vmatprep.subr.mxu0 0.0
    %320 = vmatpush1.msra.mxu0 0.0
    %321 = vmatprep.subr.mxu0 0.0
    %322 = vmatpush1.msra.mxu0 0.0
    %323 = vmatprep.subr.mxu0 0.0
    %324 = vmatpush1.msra.mxu0 0.0
    %325 = vmatprep.subr.mxu0 0.0
    %326 = vmatpush1.msra.mxu0 0.0
    %327 = vmatprep.subr.mxu0 0.0
    %328 = vmatpush1.msra.mxu0 0.0
    %329 = vmatprep.subr.mxu0 0.0
    %330 = vmatpush1.msra.mxu0 0.0
    %331 = vmatprep.subr.mxu0 0.0
    %332 = vmatpush1.msra.mxu0 0.0
    %333 = vmatprep.subr.mxu0 0.0
    %334 = vmatpush1.msra.mxu0 0.0
    %335 = vmatprep.subr.mxu0 0.0
    %336 = vmatpush1.msra.mxu0 0.0
    %337 = vmatprep.subr.mxu0 0.0
    %338 = vmatpush1.msra.mxu0 0.0
    %339 = vmatprep.subr.mxu0 0.0
    %340 = vmatpush1.msra.mxu0 0.0
    %341 = vmatprep.subr.mxu0 0.0
    %342 = vmatpush1.msra.mxu0 0.0
    %343 = vmatprep.subr.mxu0 0.0
    %344 = vmatpush1.msra.mxu0 0.0
    %345 = vmatprep.subr.mxu0 0.0
    %346 = vmatpush1.msra.mxu0 0.0
    %347 = vmatprep.subr.mxu0 0.0
    %348 = vmatpush1.msra.mxu0 0.0
    %349 = vmatprep.subr.mxu0 0.0
    %350 = vmatpush1.msra.mxu0 0.0
    %351 = vmatprep.subr.mxu0 0.0
    %352 = vmatpush1.msra.mxu0 0.0
    %353 = vmatprep.subr.mxu0 0.0
    %354 = vmatpush1.msra.mxu0 0.0
    %355 = vmatprep.subr.mxu0 0.0
    %356 = vmatpush1.msra.mxu0 0.0
    %357 = vmatprep.subr.mxu0 0.0
    %358 = vmatpush1.msra.mxu0 0.0
    %359 = vmatprep.subr.mxu0 0.0
    %360 = vmatpush1.msra.mxu0 0.0
    %361 = vmatprep.subr.mxu0 0.0
    %362 = vmatpush1.msra.mxu0 0.0
    %363 = vmatprep.subr.mxu0 0.0
    %364 = vmatpush1.msra.mxu0 0.0
    %365 = vmatprep.subr.mxu0 0.0
    %366 = vmatpush1.msra.mxu0 0.0
    %367 = vmatprep.subr.mxu0 0.0
    %368 = vmatpush1.msra.mxu0 0.0
    %369 = vmatprep.mubr.f32.mxu0 0.0
    %370 = vmatmul.mubr.f32.gmra.mrb[0].mxu0 %v303
    %v371 = vpop.f32.mrb[0].mxu0
    %v372 = vadd.f32 %v61, %v371
    %v373 = vpop.f32.mrb[0].mxu0
    %374 = vdwg.mxu0
    %v375 = vmax.f32 %v372, 0.0
    %s376 = scalar_lea.vmem [#allocation2], 12
    %377 = vst.msk [vmem:[%s376] sm:$0xf] %vm142, %v375
    %s378 = scalar_lea.vmem %s0, 16
    %v379 = vld [vmem:[%s378] sm:$0xf]
    %v381 = vsel %vm63, %v379, 0
    %383 = vmatprep.subr.mxu0 0.0
    %384 = vmatpush1.msra.mxu0 %v27
    %385 = vmatprep.subr.mxu0 0.0
    %386 = vmatpush1.msra.mxu0 %v28
    %387 = vmatprep.subr.mxu0 0.0
    %388 = vmatpush1.msra.mxu0 %v29
    %389 = vmatprep.subr.mxu0 0.0
    %390 = vmatpush1.msra.mxu0 %v69
    %391 = vmatprep.subr.mxu0 0.0
    %392 = vmatpush1.msra.mxu0 0.0
    %393 = vmatprep.subr.mxu0 0.0
    %394 = vmatpush1.msra.mxu0 0.0
    %395 = vmatprep.subr.mxu0 0.0
    %396 = vmatpush1.msra.mxu0 0.0
    %397 = vmatprep.subr.mxu0 0.0
    %398 = vmatpush1.msra.mxu0 0.0
    %399 = vmatprep.subr.mxu0 0.0
    %400 = vmatpush1.msra.mxu0 0.0
    %401 = vmatprep.subr.mxu0 0.0
    %402 = vmatpush1.msra.mxu0 0.0
    %403 = vmatprep.subr.mxu0 0.0
    %404 = vmatpush1.msra.mxu0 0.0
    %405 = vmatprep.subr.mxu0 0.0
    %406 = vmatpush1.msra.mxu0 0.0
    %407 = vmatprep.subr.mxu0 0.0
    %408 = vmatpush1.msra.mxu0 0.0
    %409 = vmatprep.subr.mxu0 0.0
    %410 = vmatpush1.msra.mxu0 0.0
    %411 = vmatprep.subr.mxu0 0.0
    %412 = vmatpush1.msra.mxu0 0.0
    %413 = vmatprep.subr.mxu0 0.0
    %414 = vmatpush1.msra.mxu0 0.0
    %415 = vmatprep.subr.mxu0 0.0
    %416 = vmatpush1.msra.mxu0 0.0
    %417 = vmatprep.subr.mxu0 0.0
    %418 = vmatpush1.msra.mxu0 0.0
    %419 = vmatprep.subr.mxu0 0.0
    %420 = vmatpush1.msra.mxu0 0.0
    %421 = vmatprep.subr.mxu0 0.0
    %422 = vmatpush1.msra.mxu0 0.0
    %423 = vmatprep.subr.mxu0 0.0
    %424 = vmatpush1.msra.mxu0 0.0
    %425 = vmatprep.subr.mxu0 0.0
    %426 = vmatpush1.msra.mxu0 0.0
    %427 = vmatprep.subr.mxu0 0.0
    %428 = vmatpush1.msra.mxu0 0.0
    %429 = vmatprep.subr.mxu0 0.0
    %430 = vmatpush1.msra.mxu0 0.0
    %431 = vmatprep.subr.mxu0 0.0
    %432 = vmatpush1.msra.mxu0 0.0
    %433 = vmatprep.subr.mxu0 0.0
    %434 = vmatpush1.msra.mxu0 0.0
    %435 = vmatprep.subr.mxu0 0.0
    %436 = vmatpush1.msra.mxu0 0.0
    %437 = vmatprep.subr.mxu0 0.0
    %438 = vmatpush1.msra.mxu0 0.0
    %439 = vmatprep.subr.mxu0 0.0
    %440 = vmatpush1.msra.mxu0 0.0
    %441 = vmatprep.subr.mxu0 0.0
    %442 = vmatpush1.msra.mxu0 0.0
    %443 = vmatprep.subr.mxu0 0.0
    %444 = vmatpush1.msra.mxu0 0.0
    %445 = vmatprep.subr.mxu0 0.0
    %446 = vmatpush1.msra.mxu0 0.0
    %447 = vmatprep.mubr.f32.mxu0 0.0
    %448 = vmatmul.mubr.f32.gmra.mrb[0].mxu0 %v381
    %v449 = vpop.f32.mrb[0].mxu0
    %v450 = vadd.f32 %v61, %v449
    %v451 = vpop.f32.mrb[0].mxu0
    %452 = vdwg.mxu0
    %v453 = vmax.f32 %v450, 0.0
    %s454 = scalar_lea.vmem [#allocation2], 16
    %455 = vst.msk [vmem:[%s454] sm:$0xf] %vm142, %v453
    %s456 = scalar_lea.vmem %s0, 20
    %v457 = vld [vmem:[%s456] sm:$0xf]
    %v459 = vsel %vm63, %v457, 0
    %461 = vmatprep.subr.mxu0 0.0
    %462 = vmatpush1.msra.mxu0 %v27
    %463 = vmatprep.subr.mxu0 0.0
    %464 = vmatpush1.msra.mxu0 %v28
    %465 = vmatprep.subr.mxu0 0.0
    %466 = vmatpush1.msra.mxu0 %v29
    %467 = vmatprep.subr.mxu0 0.0
    %468 = vmatpush1.msra.mxu0 %v69
    %469 = vmatprep.subr.mxu0 0.0
    %470 = vmatpush1.msra.mxu0 0.0
    %471 = vmatprep.subr.mxu0 0.0
    %472 = vmatpush1.msra.mxu0 0.0
    %473 = vmatprep.subr.mxu0 0.0
    %474 = vmatpush1.msra.mxu0 0.0
    %475 = vmatprep.subr.mxu0 0.0
    %476 = vmatpush1.msra.mxu0 0.0
    %477 = vmatprep.subr.mxu0 0.0
    %478 = vmatpush1.msra.mxu0 0.0
    %479 = vmatprep.subr.mxu0 0.0
    %480 = vmatpush1.msra.mxu0 0.0
    %481 = vmatprep.subr.mxu0 0.0
    %482 = vmatpush1.msra.mxu0 0.0
    %483 = vmatprep.subr.mxu0 0.0
    %484 = vmatpush1.msra.mxu0 0.0
    %485 = vmatprep.subr.mxu0 0.0
    %486 = vmatpush1.msra.mxu0 0.0
    %487 = vmatprep.subr.mxu0 0.0
    %488 = vmatpush1.msra.mxu0 0.0
    %489 = vmatprep.subr.mxu0 0.0
    %490 = vmatpush1.msra.mxu0 0.0
    %491 = vmatprep.subr.mxu0 0.0
    %492 = vmatpush1.msra.mxu0 0.0
    %493 = vmatprep.subr.mxu0 0.0
    %494 = vmatpush1.msra.mxu0 0.0
    %495 = vmatprep.subr.mxu0 0.0
    %496 = vmatpush1.msra.mxu0 0.0
    %497 = vmatprep.subr.mxu0 0.0
    %498 = vmatpush1.msra.mxu0 0.0
    %499 = vmatprep.subr.mxu0 0.0
    %500 = vmatpush1.msra.mxu0 0.0
    %501 = vmatprep.subr.mxu0 0.0
    %502 = vmatpush1.msra.mxu0 0.0
    %503 = vmatprep.subr.mxu0 0.0
    %504 = vmatpush1.msra.mxu0 0.0
    %505 = vmatprep.subr.mxu0 0.0
    %506 = vmatpush1.msra.mxu0 0.0
    %507 = vmatprep.subr.mxu0 0.0
    %508 = vmatpush1.msra.mxu0 0.0
    %509 = vmatprep.subr.mxu0 0.0
    %510 = vmatpush1.msra.mxu0 0.0
    %511 = vmatprep.subr.mxu0 0.0
    %512 = vmatpush1.msra.mxu0 0.0
    %513 = vmatprep.subr.mxu0 0.0
    %514 = vmatpush1.msra.mxu0 0.0
    %515 = vmatprep.subr.mxu0 0.0
    %516 = vmatpush1.msra.mxu0 0.0
    %517 = vmatprep.subr.mxu0 0.0
    %518 = vmatpush1.msra.mxu0 0.0
    %519 = vmatprep.subr.mxu0 0.0
    %520 = vmatpush1.msra.mxu0 0.0
    %521 = vmatprep.subr.mxu0 0.0
    %522 = vmatpush1.msra.mxu0 0.0
    %523 = vmatprep.subr.mxu0 0.0
    %524 = vmatpush1.msra.mxu0 0.0
    %525 = vmatprep.mubr.f32.mxu0 0.0
    %526 = vmatmul.mubr.f32.gmra.mrb[0].mxu0 %v459
    %v527 = vpop.f32.mrb[0].mxu0
    %v528 = vadd.f32 %v61, %v527
    %v529 = vpop.f32.mrb[0].mxu0
    %530 = vdwg.mxu0
    %v531 = vmax.f32 %v528, 0.0
    %s532 = scalar_lea.vmem [#allocation2], 20
    %533 = vst.msk [vmem:[%s532] sm:$0xf] %vm142, %v531
    %s534 = scalar_lea.vmem %s0, 24
    %v535 = vld [vmem:[%s534] sm:$0xf]
    %v537 = vsel %vm63, %v535, 0
    %539 = vmatprep.subr.mxu0 0.0
    %540 = vmatpush1.msra.mxu0 %v27
    %541 = vmatprep.subr.mxu0 0.0
    %542 = vmatpush1.msra.mxu0 %v28
    %543 = vmatprep.subr.mxu0 0.0
    %544 = vmatpush1.msra.mxu0 %v29
    %545 = vmatprep.subr.mxu0 0.0
    %546 = vmatpush1.msra.mxu0 %v69
    %547 = vmatprep.subr.mxu0 0.0
    %548 = vmatpush1.msra.mxu0 0.0
    %549 = vmatprep.subr.mxu0 0.0
    %550 = vmatpush1.msra.mxu0 0.0
    %551 = vmatprep.subr.mxu0 0.0
    %552 = vmatpush1.msra.mxu0 0.0
    %553 = vmatprep.subr.mxu0 0.0
    %554 = vmatpush1.msra.mxu0 0.0
    %555 = vmatprep.subr.mxu0 0.0
    %556 = vmatpush1.msra.mxu0 0.0
    %557 = vmatprep.subr.mxu0 0.0
    %558 = vmatpush1.msra.mxu0 0.0
    %559 = vmatprep.subr.mxu0 0.0
    %560 = vmatpush1.msra.mxu0 0.0
    %561 = vmatprep.subr.mxu0 0.0
    %562 = vmatpush1.msra.mxu0 0.0
    %563 = vmatprep.subr.mxu0 0.0
    %564 = vmatpush1.msra.mxu0 0.0
    %565 = vmatprep.subr.mxu0 0.0
    %566 = vmatpush1.msra.mxu0 0.0
    %567 = vmatprep.subr.mxu0 0.0
    %568 = vmatpush1.msra.mxu0 0.0
    %569 = vmatprep.subr.mxu0 0.0
    %570 = vmatpush1.msra.mxu0 0.0
    %571 = vmatprep.subr.mxu0 0.0
    %572 = vmatpush1.msra.mxu0 0.0
    %573 = vmatprep.subr.mxu0 0.0
    %574 = vmatpush1.msra.mxu0 0.0
    %575 = vmatprep.subr.mxu0 0.0
    %576 = vmatpush1.msra.mxu0 0.0
    %577 = vmatprep.subr.mxu0 0.0
    %578 = vmatpush1.msra.mxu0 0.0
    %579 = vmatprep.subr.mxu0 0.0
    %580 = vmatpush1.msra.mxu0 0.0
    %581 = vmatprep.subr.mxu0 0.0
    %582 = vmatpush1.msra.mxu0 0.0
    %583 = vmatprep.subr.mxu0 0.0
    %584 = vmatpush1.msra.mxu0 0.0
    %585 = vmatprep.subr.mxu0 0.0
    %586 = vmatpush1.msra.mxu0 0.0
    %587 = vmatprep.subr.mxu0 0.0
    %588 = vmatpush1.msra.mxu0 0.0
    %589 = vmatprep.subr.mxu0 0.0
    %590 = vmatpush1.msra.mxu0 0.0
    %591 = vmatprep.subr.mxu0 0.0
    %592 = vmatpush1.msra.mxu0 0.0
    %593 = vmatprep.subr.mxu0 0.0
    %594 = vmatpush1.msra.mxu0 0.0
    %595 = vmatprep.subr.mxu0 0.0
    %596 = vmatpush1.msra.mxu0 0.0
    %597 = vmatprep.subr.mxu0 0.0
    %598 = vmatpush1.msra.mxu0 0.0
    %599 = vmatprep.subr.mxu0 0.0
    %600 = vmatpush1.msra.mxu0 0.0
    %601 = vmatprep.subr.mxu0 0.0
    %602 = vmatpush1.msra.mxu0 0.0
    %603 = vmatprep.mubr.f32.mxu0 0.0
    %604 = vmatmul.mubr.f32.gmra.mrb[0].mxu0 %v537
    %v605 = vpop.f32.mrb[0].mxu0
    %v606 = vadd.f32 %v61, %v605
    %v607 = vpop.f32.mrb[0].mxu0
    %608 = vdwg.mxu0
    %v609 = vmax.f32 %v606, 0.0
    %s610 = scalar_lea.vmem [#allocation2], 24
    %611 = vst.msk [vmem:[%s610] sm:$0xf] %vm142, %v609
    %s612 = scalar_lea.vmem %s0, 28
    %v613 = vld [vmem:[%s612] sm:$0xf]
    %v615 = vsel %vm63, %v613, 0
    %617 = vmatprep.subr.mxu0 0.0
    %618 = vmatpush1.msra.mxu0 %v27
    %619 = vmatprep.subr.mxu0 0.0
    %620 = vmatpush1.msra.mxu0 %v28
    %621 = vmatprep.subr.mxu0 0.0
    %622 = vmatpush1.msra.mxu0 %v29
    %623 = vmatprep.subr.mxu0 0.0
    %624 = vmatpush1.msra.mxu0 %v69
    %625 = vmatprep.subr.mxu0 0.0
    %626 = vmatpush1.msra.mxu0 0.0
    %627 = vmatprep.subr.mxu0 0.0
    %628 = vmatpush1.msra.mxu0 0.0
    %629 = vmatprep.subr.mxu0 0.0
    %630 = vmatpush1.msra.mxu0 0.0
    %631 = vmatprep.subr.mxu0 0.0
    %632 = vmatpush1.msra.mxu0 0.0
    %633 = vmatprep.subr.mxu0 0.0
    %634 = vmatpush1.msra.mxu0 0.0
    %635 = vmatprep.subr.mxu0 0.0
    %636 = vmatpush1.msra.mxu0 0.0
    %637 = vmatprep.subr.mxu0 0.0
    %638 = vmatpush1.msra.mxu0 0.0
    %639 = vmatprep.subr.mxu0 0.0
    %640 = vmatpush1.msra.mxu0 0.0
    %641 = vmatprep.subr.mxu0 0.0
    %642 = vmatpush1.msra.mxu0 0.0
    %643 = vmatprep.subr.mxu0 0.0
    %644 = vmatpush1.msra.mxu0 0.0
    %645 = vmatprep.subr.mxu0 0.0
    %646 = vmatpush1.msra.mxu0 0.0
    %647 = vmatprep.subr.mxu0 0.0
    %648 = vmatpush1.msra.mxu0 0.0
    %649 = vmatprep.subr.mxu0 0.0
    %650 = vmatpush1.msra.mxu0 0.0
    %651 = vmatprep.subr.mxu0 0.0
    %652 = vmatpush1.msra.mxu0 0.0
    %653 = vmatprep.subr.mxu0 0.0
    %654 = vmatpush1.msra.mxu0 0.0
    %655 = vmatprep.subr.mxu0 0.0
    %656 = vmatpush1.msra.mxu0 0.0
    %657 = vmatprep.subr.mxu0 0.0
    %658 = vmatpush1.msra.mxu0 0.0
    %659 = vmatprep.subr.mxu0 0.0
    %660 = vmatpush1.msra.mxu0 0.0
    %661 = vmatprep.subr.mxu0 0.0
    %662 = vmatpush1.msra.mxu0 0.0
    %663 = vmatprep.subr.mxu0 0.0
    %664 = vmatpush1.msra.mxu0 0.0
    %665 = vmatprep.subr.mxu0 0.0
    %666 = vmatpush1.msra.mxu0 0.0
    %667 = vmatprep.subr.mxu0 0.0
    %668 = vmatpush1.msra.mxu0 0.0
    %669 = vmatprep.subr.mxu0 0.0
    %670 = vmatpush1.msra.mxu0 0.0
    %671 = vmatprep.subr.mxu0 0.0
    %672 = vmatpush1.msra.mxu0 0.0
    %673 = vmatprep.subr.mxu0 0.0
    %674 = vmatpush1.msra.mxu0 0.0
    %675 = vmatprep.subr.mxu0 0.0
    %676 = vmatpush1.msra.mxu0 0.0
    %677 = vmatprep.subr.mxu0 0.0
    %678 = vmatpush1.msra.mxu0 0.0
    %679 = vmatprep.subr.mxu0 0.0
    %680 = vmatpush1.msra.mxu0 0.0
    %681 = vmatprep.mubr.f32.mxu0 0.0
    %682 = vmatmul.mubr.f32.gmra.mrb[0].mxu0 %v615
    %v683 = vpop.f32.mrb[0].mxu0
    %v684 = vadd.f32 %v61, %v683
    %v685 = vpop.f32.mrb[0].mxu0
    %686 = vdwg.mxu0
    %v687 = vmax.f32 %v684, 0.0
    %s688 = scalar_lea.vmem [#allocation2], 28
    %689 = vst.msk [vmem:[%s688] sm:$0xf] %vm142, %v687
    %s690 = scalar_lea.vmem %s0, 32
    %v691 = vld [vmem:[%s690] sm:$0xf]
    %v693 = vsel %vm63, %v691, 0
    %695 = vmatprep.subr.mxu0 0.0
    %696 = vmatpush1.msra.mxu0 %v27
    %697 = vmatprep.subr.mxu0 0.0
    %698 = vmatpush1.msra.mxu0 %v28
    %699 = vmatprep.subr.mxu0 0.0
    %700 = vmatpush1.msra.mxu0 %v29
    %701 = vmatprep.subr.mxu0 0.0
    %702 = vmatpush1.msra.mxu0 %v69
    %703 = vmatprep.subr.mxu0 0.0
    %704 = vmatpush1.msra.mxu0 0.0
    %705 = vmatprep.subr.mxu0 0.0
    %706 = vmatpush1.msra.mxu0 0.0
    %707 = vmatprep.subr.mxu0 0.0
    %708 = vmatpush1.msra.mxu0 0.0
    %709 = vmatprep.subr.mxu0 0.0
    %710 = vmatpush1.msra.mxu0 0.0
    %711 = vmatprep.subr.mxu0 0.0
    %712 = vmatpush1.msra.mxu0 0.0
    %713 = vmatprep.subr.mxu0 0.0
    %714 = vmatpush1.msra.mxu0 0.0
    %715 = vmatprep.subr.mxu0 0.0
    %716 = vmatpush1.msra.mxu0 0.0
    %717 = vmatprep.subr.mxu0 0.0
    %718 = vmatpush1.msra.mxu0 0.0
    %719 = vmatprep.subr.mxu0 0.0
    %720 = vmatpush1.msra.mxu0 0.0
    %721 = vmatprep.subr.mxu0 0.0
    %722 = vmatpush1.msra.mxu0 0.0
    %723 = vmatprep.subr.mxu0 0.0
    %724 = vmatpush1.msra.mxu0 0.0
    %725 = vmatprep.subr.mxu0 0.0
    %726 = vmatpush1.msra.mxu0 0.0
    %727 = vmatprep.subr.mxu0 0.0
    %728 = vmatpush1.msra.mxu0 0.0
    %729 = vmatprep.subr.mxu0 0.0
    %730 = vmatpush1.msra.mxu0 0.0
    %731 = vmatprep.subr.mxu0 0.0
    %732 = vmatpush1.msra.mxu0 0.0
    %733 = vmatprep.subr.mxu0 0.0
    %734 = vmatpush1.msra.mxu0 0.0
    %735 = vmatprep.subr.mxu0 0.0
    %736 = vmatpush1.msra.mxu0 0.0
    %737 = vmatprep.subr.mxu0 0.0
    %738 = vmatpush1.msra.mxu0 0.0
    %739 = vmatprep.subr.mxu0 0.0
    %740 = vmatpush1.msra.mxu0 0.0
    %741 = vmatprep.subr.mxu0 0.0
    %742 = vmatpush1.msra.mxu0 0.0
    %743 = vmatprep.subr.mxu0 0.0
    %744 = vmatpush1.msra.mxu0 0.0
    %745 = vmatprep.subr.mxu0 0.0
    %746 = vmatpush1.msra.mxu0 0.0
    %747 = vmatprep.subr.mxu0 0.0
    %748 = vmatpush1.msra.mxu0 0.0
    %749 = vmatprep.subr.mxu0 0.0
    %750 = vmatpush1.msra.mxu0 0.0
    %751 = vmatprep.subr.mxu0 0.0
    %752 = vmatpush1.msra.mxu0 0.0
    %753 = vmatprep.subr.mxu0 0.0
    %754 = vmatpush1.msra.mxu0 0.0
    %755 = vmatprep.subr.mxu0 0.0
    %756 = vmatpush1.msra.mxu0 0.0
    %757 = vmatprep.subr.mxu0 0.0
    %758 = vmatpush1.msra.mxu0 0.0
    %759 = vmatprep.mubr.f32.mxu0 0.0
    %760 = vmatmul.mubr.f32.gmra.mrb[0].mxu0 %v693
    %v761 = vpop.f32.mrb[0].mxu0
    %v762 = vadd.f32 %v61, %v761
    %v763 = vpop.f32.mrb[0].mxu0
    %764 = vdwg.mxu0
    %v765 = vmax.f32 %v762, 0.0
    %s766 = scalar_lea.vmem [#allocation2], 32
    %767 = vst.msk [vmem:[%s766] sm:$0xf] %vm142, %v765
    %s768 = scalar_lea.vmem %s0, 36
    %v769 = vld [vmem:[%s768] sm:$0xf]
    %v771 = vsel %vm63, %v769, 0
    %773 = vmatprep.subr.mxu0 0.0
    %774 = vmatpush1.msra.mxu0 %v27
    %775 = vmatprep.subr.mxu0 0.0
    %776 = vmatpush1.msra.mxu0 %v28
    %777 = vmatprep.subr.mxu0 0.0
    %778 = vmatpush1.msra.mxu0 %v29
    %779 = vmatprep.subr.mxu0 0.0
    %780 = vmatpush1.msra.mxu0 %v69
    %781 = vmatprep.subr.mxu0 0.0
    %782 = vmatpush1.msra.mxu0 0.0
    %783 = vmatprep.subr.mxu0 0.0
    %784 = vmatpush1.msra.mxu0 0.0
    %785 = vmatprep.subr.mxu0 0.0
    %786 = vmatpush1.msra.mxu0 0.0
    %787 = vmatprep.subr.mxu0 0.0
    %788 = vmatpush1.msra.mxu0 0.0
    %789 = vmatprep.subr.mxu0 0.0
    %790 = vmatpush1.msra.mxu0 0.0
    %791 = vmatprep.subr.mxu0 0.0
    %792 = vmatpush1.msra.mxu0 0.0
    %793 = vmatprep.subr.mxu0 0.0
    %794 = vmatpush1.msra.mxu0 0.0
    %795 = vmatprep.subr.mxu0 0.0
    %796 = vmatpush1.msra.mxu0 0.0
    %797 = vmatprep.subr.mxu0 0.0
    %798 = vmatpush1.msra.mxu0 0.0
    %799 = vmatprep.subr.mxu0 0.0
    %800 = vmatpush1.msra.mxu0 0.0
    %801 = vmatprep.subr.mxu0 0.0
    %802 = vmatpush1.msra.mxu0 0.0
    %803 = vmatprep.subr.mxu0 0.0
    %804 = vmatpush1.msra.mxu0 0.0
    %805 = vmatprep.subr.mxu0 0.0
    %806 = vmatpush1.msra.mxu0 0.0
    %807 = vmatprep.subr.mxu0 0.0
    %808 = vmatpush1.msra.mxu0 0.0
    %809 = vmatprep.subr.mxu0 0.0
    %810 = vmatpush1.msra.mxu0 0.0
    %811 = vmatprep.subr.mxu0 0.0
    %812 = vmatpush1.msra.mxu0 0.0
    %813 = vmatprep.subr.mxu0 0.0
    %814 = vmatpush1.msra.mxu0 0.0
    %815 = vmatprep.subr.mxu0 0.0
    %816 = vmatpush1.msra.mxu0 0.0
    %817 = vmatprep.subr.mxu0 0.0
    %818 = vmatpush1.msra.mxu0 0.0
    %819 = vmatprep.subr.mxu0 0.0
    %820 = vmatpush1.msra.mxu0 0.0
    %821 = vmatprep.subr.mxu0 0.0
    %822 = vmatpush1.msra.mxu0 0.0
    %823 = vmatprep.subr.mxu0 0.0
    %824 = vmatpush1.msra.mxu0 0.0
    %825 = vmatprep.subr.mxu0 0.0
    %826 = vmatpush1.msra.mxu0 0.0
    %827 = vmatprep.subr.mxu0 0.0
    %828 = vmatpush1.msra.mxu0 0.0
    %829 = vmatprep.subr.mxu0 0.0
    %830 = vmatpush1.msra.mxu0 0.0
    %831 = vmatprep.subr.mxu0 0.0
    %832 = vmatpush1.msra.mxu0 0.0
    %833 = vmatprep.subr.mxu0 0.0
    %834 = vmatpush1.msra.mxu0 0.0
    %835 = vmatprep.subr.mxu0 0.0
    %836 = vmatpush1.msra.mxu0 0.0
    %837 = vmatprep.mubr.f32.mxu0 0.0
    %838 = vmatmul.mubr.f32.gmra.mrb[0].mxu0 %v771
    %v839 = vpop.f32.mrb[0].mxu0
    %v840 = vadd.f32 %v61, %v839
    %v841 = vpop.f32.mrb[0].mxu0
    %842 = vdwg.mxu0
    %v843 = vmax.f32 %v840, 0.0
    %s844 = scalar_lea.vmem [#allocation2], 36
    %845 = vst.msk [vmem:[%s844] sm:$0xf] %vm142, %v843
    %s846 = scalar_lea.vmem %s0, 40
    %v847 = vld [vmem:[%s846] sm:$0xf]
    %v849 = vsel %vm63, %v847, 0
    %851 = vmatprep.subr.mxu0 0.0
    %852 = vmatpush1.msra.mxu0 %v27
    %853 = vmatprep.subr.mxu0 0.0
    %854 = vmatpush1.msra.mxu0 %v28
    %855 = vmatprep.subr.mxu0 0.0
    %856 = vmatpush1.msra.mxu0 %v29
    %857 = vmatprep.subr.mxu0 0.0
    %858 = vmatpush1.msra.mxu0 %v69
    %859 = vmatprep.subr.mxu0 0.0
    %860 = vmatpush1.msra.mxu0 0.0
    %861 = vmatprep.subr.mxu0 0.0
    %862 = vmatpush1.msra.mxu0 0.0
    %863 = vmatprep.subr.mxu0 0.0
    %864 = vmatpush1.msra.mxu0 0.0
    %865 = vmatprep.subr.mxu0 0.0
    %866 = vmatpush1.msra.mxu0 0.0
    %867 = vmatprep.subr.mxu0 0.0
    %868 = vmatpush1.msra.mxu0 0.0
    %869 = vmatprep.subr.mxu0 0.0
    %870 = vmatpush1.msra.mxu0 0.0
    %871 = vmatprep.subr.mxu0 0.0
    %872 = vmatpush1.msra.mxu0 0.0
    %873 = vmatprep.subr.mxu0 0.0
    %874 = vmatpush1.msra.mxu0 0.0
    %875 = vmatprep.subr.mxu0 0.0
    %876 = vmatpush1.msra.mxu0 0.0
    %877 = vmatprep.subr.mxu0 0.0
    %878 = vmatpush1.msra.mxu0 0.0
    %879 = vmatprep.subr.mxu0 0.0
    %880 = vmatpush1.msra.mxu0 0.0
    %881 = vmatprep.subr.mxu0 0.0
    %882 = vmatpush1.msra.mxu0 0.0
    %883 = vmatprep.subr.mxu0 0.0
    %884 = vmatpush1.msra.mxu0 0.0
    %885 = vmatprep.subr.mxu0 0.0
    %886 = vmatpush1.msra.mxu0 0.0
    %887 = vmatprep.subr.mxu0 0.0
    %888 = vmatpush1.msra.mxu0 0.0
    %889 = vmatprep.subr.mxu0 0.0
    %890 = vmatpush1.msra.mxu0 0.0
    %891 = vmatprep.subr.mxu0 0.0
    %892 = vmatpush1.msra.mxu0 0.0
    %893 = vmatprep.subr.mxu0 0.0
    %894 = vmatpush1.msra.mxu0 0.0
    %895 = vmatprep.subr.mxu0 0.0
    %896 = vmatpush1.msra.mxu0 0.0
    %897 = vmatprep.subr.mxu0 0.0
    %898 = vmatpush1.msra.mxu0 0.0
    %899 = vmatprep.subr.mxu0 0.0
    %900 = vmatpush1.msra.mxu0 0.0
    %901 = vmatprep.subr.mxu0 0.0
    %902 = vmatpush1.msra.mxu0 0.0
    %903 = vmatprep.subr.mxu0 0.0
    %904 = vmatpush1.msra.mxu0 0.0
    %905 = vmatprep.subr.mxu0 0.0
    %906 = vmatpush1.msra.mxu0 0.0
    %907 = vmatprep.subr.mxu0 0.0
    %908 = vmatpush1.msra.mxu0 0.0
    %909 = vmatprep.subr.mxu0 0.0
    %910 = vmatpush1.msra.mxu0 0.0
    %911 = vmatprep.subr.mxu0 0.0
    %912 = vmatpush1.msra.mxu0 0.0
    %913 = vmatprep.subr.mxu0 0.0
    %914 = vmatpush1.msra.mxu0 0.0
    %915 = vmatprep.mubr.f32.mxu0 0.0
    %916 = vmatmul.mubr.f32.gmra.mrb[0].mxu0 %v849
    %v917 = vpop.f32.mrb[0].mxu0
    %v918 = vadd.f32 %v61, %v917
    %v919 = vpop.f32.mrb[0].mxu0
    %920 = vdwg.mxu0
    %v921 = vmax.f32 %v918, 0.0
    %s922 = scalar_lea.vmem [#allocation2], 40
    %923 = vst.msk [vmem:[%s922] sm:$0xf] %vm142, %v921
    %s924 = scalar_lea.vmem %s0, 44
    %v925 = vld [vmem:[%s924] sm:$0xf]
    %v927 = vsel %vm63, %v925, 0
    %929 = vmatprep.subr.mxu0 0.0
    %930 = vmatpush1.msra.mxu0 %v27
    %931 = vmatprep.subr.mxu0 0.0
    %932 = vmatpush1.msra.mxu0 %v28
    %933 = vmatprep.subr.mxu0 0.0
    %934 = vmatpush1.msra.mxu0 %v29
    %935 = vmatprep.subr.mxu0 0.0
    %936 = vmatpush1.msra.mxu0 %v69
    %937 = vmatprep.subr.mxu0 0.0
    %938 = vmatpush1.msra.mxu0 0.0
    %939 = vmatprep.subr.mxu0 0.0
    %940 = vmatpush1.msra.mxu0 0.0
    %941 = vmatprep.subr.mxu0 0.0
    %942 = vmatpush1.msra.mxu0 0.0
    %943 = vmatprep.subr.mxu0 0.0
    %944 = vmatpush1.msra.mxu0 0.0
    %945 = vmatprep.subr.mxu0 0.0
    %946 = vmatpush1.msra.mxu0 0.0
    %947 = vmatprep.subr.mxu0 0.0
    %948 = vmatpush1.msra.mxu0 0.0
    %949 = vmatprep.subr.mxu0 0.0
    %950 = vmatpush1.msra.mxu0 0.0
    %951 = vmatprep.subr.mxu0 0.0
    %952 = vmatpush1.msra.mxu0 0.0
    %953 = vmatprep.subr.mxu0 0.0
    %954 = vmatpush1.msra.mxu0 0.0
    %955 = vmatprep.subr.mxu0 0.0
    %956 = vmatpush1.msra.mxu0 0.0
    %957 = vmatprep.subr.mxu0 0.0
    %958 = vmatpush1.msra.mxu0 0.0
    %959 = vmatprep.subr.mxu0 0.0
    %960 = vmatpush1.msra.mxu0 0.0
    %961 = vmatprep.subr.mxu0 0.0
    %962 = vmatpush1.msra.mxu0 0.0
    %963 = vmatprep.subr.mxu0 0.0
    %964 = vmatpush1.msra.mxu0 0.0
    %965 = vmatprep.subr.mxu0 0.0
    %966 = vmatpush1.msra.mxu0 0.0
    %967 = vmatprep.subr.mxu0 0.0
    %968 = vmatpush1.msra.mxu0 0.0
    %969 = vmatprep.subr.mxu0 0.0
    %970 = vmatpush1.msra.mxu0 0.0
    %971 = vmatprep.subr.mxu0 0.0
    %972 = vmatpush1.msra.mxu0 0.0
    %973 = vmatprep.subr.mxu0 0.0
    %974 = vmatpush1.msra.mxu0 0.0
    %975 = vmatprep.subr.mxu0 0.0
    %976 = vmatpush1.msra.mxu0 0.0
    %977 = vmatprep.subr.mxu0 0.0
    %978 = vmatpush1.msra.mxu0 0.0
    %979 = vmatprep.subr.mxu0 0.0
    %980 = vmatpush1.msra.mxu0 0.0
    %981 = vmatprep.subr.mxu0 0.0
    %982 = vmatpush1.msra.mxu0 0.0
    %983 = vmatprep.subr.mxu0 0.0
    %984 = vmatpush1.msra.mxu0 0.0
    %985 = vmatprep.subr.mxu0 0.0
    %986 = vmatpush1.msra.mxu0 0.0
    %987 = vmatprep.subr.mxu0 0.0
    %988 = vmatpush1.msra.mxu0 0.0
    %989 = vmatprep.subr.mxu0 0.0
    %990 = vmatpush1.msra.mxu0 0.0
    %991 = vmatprep.subr.mxu0 0.0
    %992 = vmatpush1.msra.mxu0 0.0
    %993 = vmatprep.mubr.f32.mxu0 0.0
    %994 = vmatmul.mubr.f32.gmra.mrb[0].mxu0 %v927
    %v995 = vpop.f32.mrb[0].mxu0
    %v996 = vadd.f32 %v61, %v995
    %v997 = vpop.f32.mrb[0].mxu0
    %998 = vdwg.mxu0
    %v999 = vmax.f32 %v996, 0.0
    %s1000 = scalar_lea.vmem [#allocation2], 44
    %1001 = vst.msk [vmem:[%s1000] sm:$0xf] %vm142, %v999
    %s1002 = scalar_lea.vmem %s0, 48
    %v1003 = vld [vmem:[%s1002] sm:$0xf]
    %v1005 = vsel %vm63, %v1003, 0
    %1007 = vmatprep.subr.mxu0 0.0
    %1008 = vmatpush1.msra.mxu0 %v27
    %1009 = vmatprep.subr.mxu0 0.0
    %1010 = vmatpush1.msra.mxu0 %v28
    %1011 = vmatprep.subr.mxu0 0.0
    %1012 = vmatpush1.msra.mxu0 %v29
    %1013 = vmatprep.subr.mxu0 0.0
    %1014 = vmatpush1.msra.mxu0 %v69
    %1015 = vmatprep.subr.mxu0 0.0
    %1016 = vmatpush1.msra.mxu0 0.0
    %1017 = vmatprep.subr.mxu0 0.0
    %1018 = vmatpush1.msra.mxu0 0.0
    %1019 = vmatprep.subr.mxu0 0.0
    %1020 = vmatpush1.msra.mxu0 0.0
    %1021 = vmatprep.subr.mxu0 0.0
    %1022 = vmatpush1.msra.mxu0 0.0
    %1023 = vmatprep.subr.mxu0 0.0
    %1024 = vmatpush1.msra.mxu0 0.0
    %1025 = vmatprep.subr.mxu0 0.0
    %1026 = vmatpush1.msra.mxu0 0.0
    %1027 = vmatprep.subr.mxu0 0.0
    %1028 = vmatpush1.msra.mxu0 0.0
    %1029 = vmatprep.subr.mxu0 0.0
    %1030 = vmatpush1.msra.mxu0 0.0
    %1031 = vmatprep.subr.mxu0 0.0
    %1032 = vmatpush1.msra.mxu0 0.0
    %1033 = vmatprep.subr.mxu0 0.0
    %1034 = vmatpush1.msra.mxu0 0.0
    %1035 = vmatprep.subr.mxu0 0.0
    %1036 = vmatpush1.msra.mxu0 0.0
    %1037 = vmatprep.subr.mxu0 0.0
    %1038 = vmatpush1.msra.mxu0 0.0
    %1039 = vmatprep.subr.mxu0 0.0
    %1040 = vmatpush1.msra.mxu0 0.0
    %1041 = vmatprep.subr.mxu0 0.0
    %1042 = vmatpush1.msra.mxu0 0.0
    %1043 = vmatprep.subr.mxu0 0.0
    %1044 = vmatpush1.msra.mxu0 0.0
    %1045 = vmatprep.subr.mxu0 0.0
    %1046 = vmatpush1.msra.mxu0 0.0
    %1047 = vmatprep.subr.mxu0 0.0
    %1048 = vmatpush1.msra.mxu0 0.0
    %1049 = vmatprep.subr.mxu0 0.0
    %1050 = vmatpush1.msra.mxu0 0.0
    %1051 = vmatprep.subr.mxu0 0.0
    %1052 = vmatpush1.msra.mxu0 0.0
    %1053 = vmatprep.subr.mxu0 0.0
    %1054 = vmatpush1.msra.mxu0 0.0
    %1055 = vmatprep.subr.mxu0 0.0
    %1056 = vmatpush1.msra.mxu0 0.0
    %1057 = vmatprep.subr.mxu0 0.0
    %1058 = vmatpush1.msra.mxu0 0.0
    %1059 = vmatprep.subr.mxu0 0.0
    %1060 = vmatpush1.msra.mxu0 0.0
    %1061 = vmatprep.subr.mxu0 0.0
    %1062 = vmatpush1.msra.mxu0 0.0
    %1063 = vmatprep.subr.mxu0 0.0
    %1064 = vmatpush1.msra.mxu0 0.0
    %1065 = vmatprep.subr.mxu0 0.0
    %1066 = vmatpush1.msra.mxu0 0.0
    %1067 = vmatprep.subr.mxu0 0.0
    %1068 = vmatpush1.msra.mxu0 0.0
    %1069 = vmatprep.subr.mxu0 0.0
    %1070 = vmatpush1.msra.mxu0 0.0
    %1071 = vmatprep.mubr.f32.mxu0 0.0
    %1072 = vmatmul.mubr.f32.gmra.mrb[0].mxu0 %v1005
    %v1073 = vpop.f32.mrb[0].mxu0
    %v1074 = vadd.f32 %v61, %v1073
    %v1075 = vpop.f32.mrb[0].mxu0
    %1076 = vdwg.mxu0
    %v1077 = vmax.f32 %v1074, 0.0
    %s1078 = scalar_lea.vmem [#allocation2], 48
    %1079 = vst.msk [vmem:[%s1078] sm:$0xf] %vm142, %v1077
    %s1080 = scalar_lea.vmem %s0, 52
    %v1081 = vld [vmem:[%s1080] sm:$0xf]
    %v1083 = vsel %vm63, %v1081, 0
    %1085 = vmatprep.subr.mxu0 0.0
    %1086 = vmatpush1.msra.mxu0 %v27
    %1087 = vmatprep.subr.mxu0 0.0
    %1088 = vmatpush1.msra.mxu0 %v28
    %1089 = vmatprep.subr.mxu0 0.0
    %1090 = vmatpush1.msra.mxu0 %v29
    %1091 = vmatprep.subr.mxu0 0.0
    %1092 = vmatpush1.msra.mxu0 %v69
    %1093 = vmatprep.subr.mxu0 0.0
    %1094 = vmatpush1.msra.mxu0 0.0
    %1095 = vmatprep.subr.mxu0 0.0
    %1096 = vmatpush1.msra.mxu0 0.0
    %1097 = vmatprep.subr.mxu0 0.0
    %1098 = vmatpush1.msra.mxu0 0.0
    %1099 = vmatprep.subr.mxu0 0.0
    %1100 = vmatpush1.msra.mxu0 0.0
    %1101 = vmatprep.subr.mxu0 0.0
    %1102 = vmatpush1.msra.mxu0 0.0
    %1103 = vmatprep.subr.mxu0 0.0
    %1104 = vmatpush1.msra.mxu0 0.0
    %1105 = vmatprep.subr.mxu0 0.0
    %1106 = vmatpush1.msra.mxu0 0.0
    %1107 = vmatprep.subr.mxu0 0.0
    %1108 = vmatpush1.msra.mxu0 0.0
    %1109 = vmatprep.subr.mxu0 0.0
    %1110 = vmatpush1.msra.mxu0 0.0
    %1111 = vmatprep.subr.mxu0 0.0
    %1112 = vmatpush1.msra.mxu0 0.0
    %1113 = vmatprep.subr.mxu0 0.0
    %1114 = vmatpush1.msra.mxu0 0.0
    %1115 = vmatprep.subr.mxu0 0.0
    %1116 = vmatpush1.msra.mxu0 0.0
    %1117 = vmatprep.subr.mxu0 0.0
    %1118 = vmatpush1.msra.mxu0 0.0
    %1119 = vmatprep.subr.mxu0 0.0
    %1120 = vmatpush1.msra.mxu0 0.0
    %1121 = vmatprep.subr.mxu0 0.0
    %1122 = vmatpush1.msra.mxu0 0.0
    %1123 = vmatprep.subr.mxu0 0.0
    %1124 = vmatpush1.msra.mxu0 0.0
    %1125 = vmatprep.subr.mxu0 0.0
    %1126 = vmatpush1.msra.mxu0 0.0
    %1127 = vmatprep.subr.mxu0 0.0
    %1128 = vmatpush1.msra.mxu0 0.0
    %1129 = vmatprep.subr.mxu0 0.0
    %1130 = vmatpush1.msra.mxu0 0.0
    %1131 = vmatprep.subr.mxu0 0.0
    %1132 = vmatpush1.msra.mxu0 0.0
    %1133 = vmatprep.subr.mxu0 0.0
    %1134 = vmatpush1.msra.mxu0 0.0
    %1135 = vmatprep.subr.mxu0 0.0
    %1136 = vmatpush1.msra.mxu0 0.0
    %1137 = vmatprep.subr.mxu0 0.0
    %1138 = vmatpush1.msra.mxu0 0.0
    %1139 = vmatprep.subr.mxu0 0.0
    %1140 = vmatpush1.msra.mxu0 0.0
    %1141 = vmatprep.subr.mxu0 0.0
    %1142 = vmatpush1.msra.mxu0 0.0
    %1143 = vmatprep.subr.mxu0 0.0
    %1144 = vmatpush1.msra.mxu0 0.0
    %1145 = vmatprep.subr.mxu0 0.0
    %1146 = vmatpush1.msra.mxu0 0.0
    %1147 = vmatprep.subr.mxu0 0.0
    %1148 = vmatpush1.msra.mxu0 0.0
    %1149 = vmatprep.mubr.f32.mxu0 0.0
    %1150 = vmatmul.mubr.f32.gmra.mrb[0].mxu0 %v1083
    %v1151 = vpop.f32.mrb[0].mxu0
    %v1152 = vadd.f32 %v61, %v1151
    %v1153 = vpop.f32.mrb[0].mxu0
    %1154 = vdwg.mxu0
    %v1155 = vmax.f32 %v1152, 0.0
    %s1156 = scalar_lea.vmem [#allocation2], 52
    %1157 = vst.msk [vmem:[%s1156] sm:$0xf] %vm142, %v1155
    %v1158 = vld [vmem:[#allocation2] sm:$0x7]
    %v1159 = vld [vmem:[%s688] sm:$0x7]
    %vm1160 = vcmask 130048
    %v1162 = vsel %vm1160, %v1159, 0
    %1164 = vmatprep.subr.mxu0 0.0
    %1165 = vmatpush1.msra.mxu0 %v34
    %1166 = vmatprep.subr.mxu0 0.0
    %1167 = vmatpush1.msra.mxu0 %v35
    %1168 = vmatprep.subr.mxu0 0.0
    %1169 = vmatpush1.msra.mxu0 0.0
    %1170 = vmatprep.subr.mxu0 0.0
    %1171 = vmatpush1.msra.mxu0 0.0
    %1172 = vmatprep.subr.mxu0 0.0
    %1173 = vmatpush1.msra.mxu0 0.0
    %1174 = vmatprep.subr.mxu0 0.0
    %1175 = vmatpush1.msra.mxu0 0.0
    %1176 = vmatprep.subr.mxu0 0.0
    %1177 = vmatpush1.msra.mxu0 0.0
    %1178 = vmatprep.subr.mxu0 0.0
    %1179 = vmatpush1.msra.mxu0 0.0
    %1180 = vmatprep.subr.mxu0 0.0
    %1181 = vmatpush1.msra.mxu0 0.0
    %1182 = vmatprep.subr.mxu0 0.0
    %1183 = vmatpush1.msra.mxu0 0.0
    %1184 = vmatprep.subr.mxu0 0.0
    %1185 = vmatpush1.msra.mxu0 0.0
    %1186 = vmatprep.subr.mxu0 0.0
    %1187 = vmatpush1.msra.mxu0 0.0
    %1188 = vmatprep.subr.mxu0 0.0
    %1189 = vmatpush1.msra.mxu0 0.0
    %1190 = vmatprep.subr.mxu0 0.0
    %1191 = vmatpush1.msra.mxu0 0.0
    %1192 = vmatprep.subr.mxu0 0.0
    %1193 = vmatpush1.msra.mxu0 0.0
    %1194 = vmatprep.subr.mxu0 0.0
    %1195 = vmatpush1.msra.mxu0 0.0
    %1196 = vmatprep.subr.mxu0 0.0
    %1197 = vmatpush1.msra.mxu0 0.0
    %1198 = vmatprep.subr.mxu0 0.0
    %1199 = vmatpush1.msra.mxu0 0.0
    %1200 = vmatprep.subr.mxu0 0.0
    %1201 = vmatpush1.msra.mxu0 0.0
    %1202 = vmatprep.subr.mxu0 0.0
    %1203 = vmatpush1.msra.mxu0 0.0
    %1204 = vmatprep.subr.mxu0 0.0
    %1205 = vmatpush1.msra.mxu0 0.0
    %1206 = vmatprep.subr.mxu0 0.0
    %1207 = vmatpush1.msra.mxu0 0.0
    %1208 = vmatprep.subr.mxu0 0.0
    %1209 = vmatpush1.msra.mxu0 0.0
    %1210 = vmatprep.subr.mxu0 0.0
    %1211 = vmatpush1.msra.mxu0 0.0
    %1212 = vmatprep.subr.mxu0 0.0
    %1213 = vmatpush1.msra.mxu0 0.0
    %1214 = vmatprep.subr.mxu0 0.0
    %1215 = vmatpush1.msra.mxu0 0.0
    %1216 = vmatprep.subr.mxu0 0.0
    %1217 = vmatpush1.msra.mxu0 0.0
    %1218 = vmatprep.subr.mxu0 0.0
    %1219 = vmatpush1.msra.mxu0 0.0
    %1220 = vmatprep.subr.mxu0 0.0
    %1221 = vmatpush1.msra.mxu0 0.0
    %1222 = vmatprep.subr.mxu0 0.0
    %1223 = vmatpush1.msra.mxu0 0.0
    %1224 = vmatprep.subr.mxu0 0.0
    %1225 = vmatpush1.msra.mxu0 0.0
    %1226 = vmatprep.subr.mxu0 0.0
    %1227 = vmatpush1.msra.mxu0 0.0
    %1228 = vmatprep.mubr.f32.mxu0 0.0
    %1229 = vmatmul.mubr.f32.gmra.mrb[0].mxu0 %v1162
    %v1230 = vpop.f32.mrb[0].mxu0
    %v1231 = vadd.f32 0.0, %v1230
    %v1232 = vpop.f32.mrb[0].mxu0
    %1233 = vdwg.mxu0
    %v1235 = vsel %vm1160, %v1158, 0
    %1237 = vmatprep.subr.mxu0 0.0
    %1238 = vmatpush1.msra.mxu0 %v32
    %1239 = vmatprep.subr.mxu0 0.0
    %1240 = vmatpush1.msra.mxu0 %v33
    %1241 = vmatprep.subr.mxu0 0.0
    %1242 = vmatpush1.msra.mxu0 0.0
    %1243 = vmatprep.subr.mxu0 0.0
    %1244 = vmatpush1.msra.mxu0 0.0
    %1245 = vmatprep.subr.mxu0 0.0
    %1246 = vmatpush1.msra.mxu0 0.0
    %1247 = vmatprep.subr.mxu0 0.0
    %1248 = vmatpush1.msra.mxu0 0.0
    %1249 = vmatprep.subr.mxu0 0.0
    %1250 = vmatpush1.msra.mxu0 0.0
    %1251 = vmatprep.subr.mxu0 0.0
    %1252 = vmatpush1.msra.mxu0 0.0
    %1253 = vmatprep.subr.mxu0 0.0
    %1254 = vmatpush1.msra.mxu0 0.0
    %1255 = vmatprep.subr.mxu0 0.0
    %1256 = vmatpush1.msra.mxu0 0.0
    %1257 = vmatprep.subr.mxu0 0.0
    %1258 = vmatpush1.msra.mxu0 0.0
    %1259 = vmatprep.subr.mxu0 0.0
    %1260 = vmatpush1.msra.mxu0 0.0
    %1261 = vmatprep.subr.mxu0 0.0
    %1262 = vmatpush1.msra.mxu0 0.0
    %1263 = vmatprep.subr.mxu0 0.0
    %1264 = vmatpush1.msra.mxu0 0.0
    %1265 = vmatprep.subr.mxu0 0.0
    %1266 = vmatpush1.msra.mxu0 0.0
    %1267 = vmatprep.subr.mxu0 0.0
    %1268 = vmatpush1.msra.mxu0 0.0
    %1269 = vmatprep.subr.mxu0 0.0
    %1270 = vmatpush1.msra.mxu0 0.0
    %1271 = vmatprep.subr.mxu0 0.0
    %1272 = vmatpush1.msra.mxu0 0.0
    %1273 = vmatprep.subr.mxu0 0.0
    %1274 = vmatpush1.msra.mxu0 0.0
    %1275 = vmatprep.subr.mxu0 0.0
    %1276 = vmatpush1.msra.mxu0 0.0
    %1277 = vmatprep.subr.mxu0 0.0
    %1278 = vmatpush1.msra.mxu0 0.0
    %1279 = vmatprep.subr.mxu0 0.0
    %1280 = vmatpush1.msra.mxu0 0.0
    %1281 = vmatprep.subr.mxu0 0.0
    %1282 = vmatpush1.msra.mxu0 0.0
    %1283 = vmatprep.subr.mxu0 0.0
    %1284 = vmatpush1.msra.mxu0 0.0
    %1285 = vmatprep.subr.mxu0 0.0
    %1286 = vmatpush1.msra.mxu0 0.0
    %1287 = vmatprep.subr.mxu0 0.0
    %1288 = vmatpush1.msra.mxu0 0.0
    %1289 = vmatprep.subr.mxu0 0.0
    %1290 = vmatpush1.msra.mxu0 0.0
    %1291 = vmatprep.subr.mxu0 0.0
    %1292 = vmatpush1.msra.mxu0 0.0
    %1293 = vmatprep.subr.mxu0 0.0
    %1294 = vmatpush1.msra.mxu0 0.0
    %1295 = vmatprep.subr.mxu0 0.0
    %1296 = vmatpush1.msra.mxu0 0.0
    %1297 = vmatprep.subr.mxu0 0.0
    %1298 = vmatpush1.msra.mxu0 0.0
    %1299 = vmatprep.subr.mxu0 0.0
    %1300 = vmatpush1.msra.mxu0 0.0
    %1301 = vmatprep.mubr.f32.mxu0 0.0
    %1302 = vmatmul.mubr.f32.gmra.mrb[0].mxu0 %v1235
    %v1303 = vpop.f32.mrb[0].mxu0
    %v1304 = vadd.f32 %v1231, %v1303
    %v1305 = vpop.f32.mrb[0].mxu0
    %1306 = vdwg.mxu0
    %v1307 = vld [vmem:[#allocation2 + $0x1] sm:$0x7]
    %v1309 = vsel %vm1160, %v1307, 0
    %1311 = vmatprep.subr.mxu0 0.0
    %1312 = vmatpush1.msra.mxu0 %v36
    %1313 = vmatprep.subr.mxu0 0.0
    %1314 = vmatpush1.msra.mxu0 %v37
    %1315 = vmatprep.subr.mxu0 0.0
    %1316 = vmatpush1.msra.mxu0 0.0
    %1317 = vmatprep.subr.mxu0 0.0
    %1318 = vmatpush1.msra.mxu0 0.0
    %1319 = vmatprep.subr.mxu0 0.0
    %1320 = vmatpush1.msra.mxu0 0.0
    %1321 = vmatprep.subr.mxu0 0.0
    %1322 = vmatpush1.msra.mxu0 0.0
    %1323 = vmatprep.subr.mxu0 0.0
    %1324 = vmatpush1.msra.mxu0 0.0
    %1325 = vmatprep.subr.mxu0 0.0
    %1326 = vmatpush1.msra.mxu0 0.0
    %1327 = vmatprep.subr.mxu0 0.0
    %1328 = vmatpush1.msra.mxu0 0.0
    %1329 = vmatprep.subr.mxu0 0.0
    %1330 = vmatpush1.msra.mxu0 0.0
    %1331 = vmatprep.subr.mxu0 0.0
    %1332 = vmatpush1.msra.mxu0 0.0
    %1333 = vmatprep.subr.mxu0 0.0
    %1334 = vmatpush1.msra.mxu0 0.0
    %1335 = vmatprep.subr.mxu0 0.0
    %1336 = vmatpush1.msra.mxu0 0.0
    %1337 = vmatprep.subr.mxu0 0.0
    %1338 = vmatpush1.msra.mxu0 0.0
    %1339 = vmatprep.subr.mxu0 0.0
    %1340 = vmatpush1.msra.mxu0 0.0
    %1341 = vmatprep.subr.mxu0 0.0
    %1342 = vmatpush1.msra.mxu0 0.0
    %1343 = vmatprep.subr.mxu0 0.0
    %1344 = vmatpush1.msra.mxu0 0.0
    %1345 = vmatprep.subr.mxu0 0.0
    %1346 = vmatpush1.msra.mxu0 0.0
    %1347 = vmatprep.subr.mxu0 0.0
    %1348 = vmatpush1.msra.mxu0 0.0
    %1349 = vmatprep.subr.mxu0 0.0
    %1350 = vmatpush1.msra.mxu0 0.0
    %1351 = vmatprep.subr.mxu0 0.0
    %1352 = vmatpush1.msra.mxu0 0.0
    %1353 = vmatprep.subr.mxu0 0.0
    %1354 = vmatpush1.msra.mxu0 0.0
    %1355 = vmatprep.subr.mxu0 0.0
    %1356 = vmatpush1.msra.mxu0 0.0
    %1357 = vmatprep.subr.mxu0 0.0
    %1358 = vmatpush1.msra.mxu0 0.0
    %1359 = vmatprep.subr.mxu0 0.0
    %1360 = vmatpush1.msra.mxu0 0.0
    %1361 = vmatprep.subr.mxu0 0.0
    %1362 = vmatpush1.msra.mxu0 0.0
    %1363 = vmatprep.subr.mxu0 0.0
    %1364 = vmatpush1.msra.mxu0 0.0
    %1365 = vmatprep.subr.mxu0 0.0
    %1366 = vmatpush1.msra.mxu0 0.0
    %1367 = vmatprep.subr.mxu0 0.0
    %1368 = vmatpush1.msra.mxu0 0.0
    %1369 = vmatprep.subr.mxu0 0.0
    %1370 = vmatpush1.msra.mxu0 0.0
    %1371 = vmatprep.subr.mxu0 0.0
    %1372 = vmatpush1.msra.mxu0 0.0
    %1373 = vmatprep.subr.mxu0 0.0
    %1374 = vmatpush1.msra.mxu0 0.0
    %1375 = vmatprep.mubr.f32.mxu0 0.0
    %1376 = vmatmul.mubr.f32.gmra.mrb[0].mxu0 %v1309
    %v1377 = vpop.f32.mrb[0].mxu0
    %v1378 = vadd.f32 0.0, %v1377
    %v1379 = vpop.f32.mrb[0].mxu0
    %1380 = vdwg.mxu0
    %v1381 = vadd.f32 %v1304, %v1378
    %v1382 = vld [vmem:[%s220] sm:$0x7]
    %v1384 = vsel %vm1160, %v1382, 0
    %1386 = vmatprep.subr.mxu0 0.0
    %1387 = vmatpush1.msra.mxu0 %v38
    %1388 = vmatprep.subr.mxu0 0.0
    %1389 = vmatpush1.msra.mxu0 %v39
    %1390 = vmatprep.subr.mxu0 0.0
    %1391 = vmatpush1.msra.mxu0 0.0
    %1392 = vmatprep.subr.mxu0 0.0
    %1393 = vmatpush1.msra.mxu0 0.0
    %1394 = vmatprep.subr.mxu0 0.0
    %1395 = vmatpush1.msra.mxu0 0.0
    %1396 = vmatprep.subr.mxu0 0.0
    %1397 = vmatpush1.msra.mxu0 0.0
    %1398 = vmatprep.subr.mxu0 0.0
    %1399 = vmatpush1.msra.mxu0 0.0
    %1400 = vmatprep.subr.mxu0 0.0
    %1401 = vmatpush1.msra.mxu0 0.0
    %1402 = vmatprep.subr.mxu0 0.0
    %1403 = vmatpush1.msra.mxu0 0.0
    %1404 = vmatprep.subr.mxu0 0.0
    %1405 = vmatpush1.msra.mxu0 0.0
    %1406 = vmatprep.subr.mxu0 0.0
    %1407 = vmatpush1.msra.mxu0 0.0
    %1408 = vmatprep.subr.mxu0 0.0
    %1409 = vmatpush1.msra.mxu0 0.0
    %1410 = vmatprep.subr.mxu0 0.0
    %1411 = vmatpush1.msra.mxu0 0.0
    %1412 = vmatprep.subr.mxu0 0.0
    %1413 = vmatpush1.msra.mxu0 0.0
    %1414 = vmatprep.subr.mxu0 0.0
    %1415 = vmatpush1.msra.mxu0 0.0
    %1416 = vmatprep.subr.mxu0 0.0
    %1417 = vmatpush1.msra.mxu0 0.0
    %1418 = vmatprep.subr.mxu0 0.0
    %1419 = vmatpush1.msra.mxu0 0.0
    %1420 = vmatprep.subr.mxu0 0.0
    %1421 = vmatpush1.msra.mxu0 0.0
    %1422 = vmatprep.subr.mxu0 0.0
    %1423 = vmatpush1.msra.mxu0 0.0
    %1424 = vmatprep.subr.mxu0 0.0
    %1425 = vmatpush1.msra.mxu0 0.0
    %1426 = vmatprep.subr.mxu0 0.0
    %1427 = vmatpush1.msra.mxu0 0.0
    %1428 = vmatprep.subr.mxu0 0.0
    %1429 = vmatpush1.msra.mxu0 0.0
    %1430 = vmatprep.subr.mxu0 0.0
    %1431 = vmatpush1.msra.mxu0 0.0
    %1432 = vmatprep.subr.mxu0 0.0
    %1433 = vmatpush1.msra.mxu0 0.0
    %1434 = vmatprep.subr.mxu0 0.0
    %1435 = vmatpush1.msra.mxu0 0.0
    %1436 = vmatprep.subr.mxu0 0.0
    %1437 = vmatpush1.msra.mxu0 0.0
    %1438 = vmatprep.subr.mxu0 0.0
    %1439 = vmatpush1.msra.mxu0 0.0
    %1440 = vmatprep.subr.mxu0 0.0
    %1441 = vmatpush1.msra.mxu0 0.0
    %1442 = vmatprep.subr.mxu0 0.0
    %1443 = vmatpush1.msra.mxu0 0.0
    %1444 = vmatprep.subr.mxu0 0.0
    %1445 = vmatpush1.msra.mxu0 0.0
    %1446 = vmatprep.subr.mxu0 0.0
    %1447 = vmatpush1.msra.mxu0 0.0
    %1448 = vmatprep.subr.mxu0 0.0
    %1449 = vmatpush1.msra.mxu0 0.0
    %1450 = vmatprep.mubr.f32.mxu0 0.0
    %1451 = vmatmul.mubr.f32.gmra.mrb[0].mxu0 %v1384
    %v1452 = vpop.f32.mrb[0].mxu0
    %v1453 = vadd.f32 0.0, %v1452
    %v1454 = vpop.f32.mrb[0].mxu0
    %1455 = vdwg.mxu0
    %v1456 = vadd.f32 %v1381, %v1453
    %v1457 = vld [vmem:[%s766] sm:$0x7]
    %v1459 = vsel %vm1160, %v1457, 0
    %1461 = vmatprep.subr.mxu0 0.0
    %1462 = vmatpush1.msra.mxu0 %v40
    %1463 = vmatprep.subr.mxu0 0.0
    %1464 = vmatpush1.msra.mxu0 %v41
    %1465 = vmatprep.subr.mxu0 0.0
    %1466 = vmatpush1.msra.mxu0 0.0
    %1467 = vmatprep.subr.mxu0 0.0
    %1468 = vmatpush1.msra.mxu0 0.0
    %1469 = vmatprep.subr.mxu0 0.0
    %1470 = vmatpush1.msra.mxu0 0.0
    %1471 = vmatprep.subr.mxu0 0.0
    %1472 = vmatpush1.msra.mxu0 0.0
    %1473 = vmatprep.subr.mxu0 0.0
    %1474 = vmatpush1.msra.mxu0 0.0
    %1475 = vmatprep.subr.mxu0 0.0
    %1476 = vmatpush1.msra.mxu0 0.0
    %1477 = vmatprep.subr.mxu0 0.0
    %1478 = vmatpush1.msra.mxu0 0.0
    %1479 = vmatprep.subr.mxu0 0.0
    %1480 = vmatpush1.msra.mxu0 0.0
    %1481 = vmatprep.subr.mxu0 0.0
    %1482 = vmatpush1.msra.mxu0 0.0
    %1483 = vmatprep.subr.mxu0 0.0
    %1484 = vmatpush1.msra.mxu0 0.0
    %1485 = vmatprep.subr.mxu0 0.0
    %1486 = vmatpush1.msra.mxu0 0.0
    %1487 = vmatprep.subr.mxu0 0.0
    %1488 = vmatpush1.msra.mxu0 0.0
    %1489 = vmatprep.subr.mxu0 0.0
    %1490 = vmatpush1.msra.mxu0 0.0
    %1491 = vmatprep.subr.mxu0 0.0
    %1492 = vmatpush1.msra.mxu0 0.0
    %1493 = vmatprep.subr.mxu0 0.0
    %1494 = vmatpush1.msra.mxu0 0.0
    %1495 = vmatprep.subr.mxu0 0.0
    %1496 = vmatpush1.msra.mxu0 0.0
    %1497 = vmatprep.subr.mxu0 0.0
    %1498 = vmatpush1.msra.mxu0 0.0
    %1499 = vmatprep.subr.mxu0 0.0
    %1500 = vmatpush1.msra.mxu0 0.0
    %1501 = vmatprep.subr.mxu0 0.0
    %1502 = vmatpush1.msra.mxu0 0.0
    %1503 = vmatprep.subr.mxu0 0.0
    %1504 = vmatpush1.msra.mxu0 0.0
    %1505 = vmatprep.subr.mxu0 0.0
    %1506 = vmatpush1.msra.mxu0 0.0
    %1507 = vmatprep.subr.mxu0 0.0
    %1508 = vmatpush1.msra.mxu0 0.0
    %1509 = vmatprep.subr.mxu0 0.0
    %1510 = vmatpush1.msra.mxu0 0.0
    %1511 = vmatprep.subr.mxu0 0.0
    %1512 = vmatpush1.msra.mxu0 0.0
    %1513 = vmatprep.subr.mxu0 0.0
    %1514 = vmatpush1.msra.mxu0 0.0
    %1515 = vmatprep.subr.mxu0 0.0
    %1516 = vmatpush1.msra.mxu0 0.0
    %1517 = vmatprep.subr.mxu0 0.0
    %1518 = vmatpush1.msra.mxu0 0.0
    %1519 = vmatprep.subr.mxu0 0.0
    %1520 = vmatpush1.msra.mxu0 0.0
    %1521 = vmatprep.subr.mxu0 0.0
    %1522 = vmatpush1.msra.mxu0 0.0
    %1523 = vmatprep.subr.mxu0 0.0
    %1524 = vmatpush1.msra.mxu0 0.0
    %1525 = vmatprep.mubr.f32.mxu0 0.0
    %1526 = vmatmul.mubr.f32.gmra.mrb[0].mxu0 %v1459
    %v1527 = vpop.f32.mrb[0].mxu0
    %v1528 = vadd.f32 0.0, %v1527
    %v1529 = vpop.f32.mrb[0].mxu0
    %1530 = vdwg.mxu0
    %v1531 = vadd.f32 %v1456, %v1528
    %v1532 = vld [vmem:[%s220 + $0x1] sm:$0x7]
    %v1534 = vsel %vm1160, %v1532, 0
    %1536 = vmatprep.subr.mxu0 0.0
    %1537 = vmatpush1.msra.mxu0 %v42
    %1538 = vmatprep.subr.mxu0 0.0
    %1539 = vmatpush1.msra.mxu0 %v43
    %1540 = vmatprep.subr.mxu0 0.0
    %1541 = vmatpush1.msra.mxu0 0.0
    %1542 = vmatprep.subr.mxu0 0.0
    %1543 = vmatpush1.msra.mxu0 0.0
    %1544 = vmatprep.subr.mxu0 0.0
    %1545 = vmatpush1.msra.mxu0 0.0
    %1546 = vmatprep.subr.mxu0 0.0
    %1547 = vmatpush1.msra.mxu0 0.0
    %1548 = vmatprep.subr.mxu0 0.0
    %1549 = vmatpush1.msra.mxu0 0.0
    %1550 = vmatprep.subr.mxu0 0.0
    %1551 = vmatpush1.msra.mxu0 0.0
    %1552 = vmatprep.subr.mxu0 0.0
    %1553 = vmatpush1.msra.mxu0 0.0
    %1554 = vmatprep.subr.mxu0 0.0
    %1555 = vmatpush1.msra.mxu0 0.0
    %1556 = vmatprep.subr.mxu0 0.0
    %1557 = vmatpush1.msra.mxu0 0.0
    %1558 = vmatprep.subr.mxu0 0.0
    %1559 = vmatpush1.msra.mxu0 0.0
    %1560 = vmatprep.subr.mxu0 0.0
    %1561 = vmatpush1.msra.mxu0 0.0
    %1562 = vmatprep.subr.mxu0 0.0
    %1563 = vmatpush1.msra.mxu0 0.0
    %1564 = vmatprep.subr.mxu0 0.0
    %1565 = vmatpush1.msra.mxu0 0.0
    %1566 = vmatprep.subr.mxu0 0.0
    %1567 = vmatpush1.msra.mxu0 0.0
    %1568 = vmatprep.subr.mxu0 0.0
    %1569 = vmatpush1.msra.mxu0 0.0
    %1570 = vmatprep.subr.mxu0 0.0
    %1571 = vmatpush1.msra.mxu0 0.0
    %1572 = vmatprep.subr.mxu0 0.0
    %1573 = vmatpush1.msra.mxu0 0.0
    %1574 = vmatprep.subr.mxu0 0.0
    %1575 = vmatpush1.msra.mxu0 0.0
    %1576 = vmatprep.subr.mxu0 0.0
    %1577 = vmatpush1.msra.mxu0 0.0
    %1578 = vmatprep.subr.mxu0 0.0
    %1579 = vmatpush1.msra.mxu0 0.0
    %1580 = vmatprep.subr.mxu0 0.0
    %1581 = vmatpush1.msra.mxu0 0.0
    %1582 = vmatprep.subr.mxu0 0.0
    %1583 = vmatpush1.msra.mxu0 0.0
    %1584 = vmatprep.subr.mxu0 0.0
    %1585 = vmatpush1.msra.mxu0 0.0
    %1586 = vmatprep.subr.mxu0 0.0
    %1587 = vmatpush1.msra.mxu0 0.0
    %1588 = vmatprep.subr.mxu0 0.0
    %1589 = vmatpush1.msra.mxu0 0.0
    %1590 = vmatprep.subr.mxu0 0.0
    %1591 = vmatpush1.msra.mxu0 0.0
    %1592 = vmatprep.subr.mxu0 0.0
    %1593 = vmatpush1.msra.mxu0 0.0
    %1594 = vmatprep.subr.mxu0 0.0
    %1595 = vmatpush1.msra.mxu0 0.0
    %1596 = vmatprep.subr.mxu0 0.0
    %1597 = vmatpush1.msra.mxu0 0.0
    %1598 = vmatprep.subr.mxu0 0.0
    %1599 = vmatpush1.msra.mxu0 0.0
    %1600 = vmatprep.mubr.f32.mxu0 0.0
    %1601 = vmatmul.mubr.f32.gmra.mrb[0].mxu0 %v1534
    %v1602 = vpop.f32.mrb[0].mxu0
    %v1603 = vadd.f32 0.0, %v1602
    %v1604 = vpop.f32.mrb[0].mxu0
    %1605 = vdwg.mxu0
    %v1606 = vadd.f32 %v1531, %v1603
    %v1607 = vld [vmem:[%s298] sm:$0x7]
    %v1609 = vsel %vm1160, %v1607, 0
    %1611 = vmatprep.subr.mxu0 0.0
    %1612 = vmatpush1.msra.mxu0 %v44
    %1613 = vmatprep.subr.mxu0 0.0
    %1614 = vmatpush1.msra.mxu0 %v45
    %1615 = vmatprep.subr.mxu0 0.0
    %1616 = vmatpush1.msra.mxu0 0.0
    %1617 = vmatprep.subr.mxu0 0.0
    %1618 = vmatpush1.msra.mxu0 0.0
    %1619 = vmatprep.subr.mxu0 0.0
    %1620 = vmatpush1.msra.mxu0 0.0
    %1621 = vmatprep.subr.mxu0 0.0
    %1622 = vmatpush1.msra.mxu0 0.0
    %1623 = vmatprep.subr.mxu0 0.0
    %1624 = vmatpush1.msra.mxu0 0.0
    %1625 = vmatprep.subr.mxu0 0.0
    %1626 = vmatpush1.msra.mxu0 0.0
    %1627 = vmatprep.subr.mxu0 0.0
    %1628 = vmatpush1.msra.mxu0 0.0
    %1629 = vmatprep.subr.mxu0 0.0
    %1630 = vmatpush1.msra.mxu0 0.0
    %1631 = vmatprep.subr.mxu0 0.0
    %1632 = vmatpush1.msra.mxu0 0.0
    %1633 = vmatprep.subr.mxu0 0.0
    %1634 = vmatpush1.msra.mxu0 0.0
    %1635 = vmatprep.subr.mxu0 0.0
    %1636 = vmatpush1.msra.mxu0 0.0
    %1637 = vmatprep.subr.mxu0 0.0
    %1638 = vmatpush1.msra.mxu0 0.0
    %1639 = vmatprep.subr.mxu0 0.0
    %1640 = vmatpush1.msra.mxu0 0.0
    %1641 = vmatprep.subr.mxu0 0.0
    %1642 = vmatpush1.msra.mxu0 0.0
    %1643 = vmatprep.subr.mxu0 0.0
    %1644 = vmatpush1.msra.mxu0 0.0
    %1645 = vmatprep.subr.mxu0 0.0
    %1646 = vmatpush1.msra.mxu0 0.0
    %1647 = vmatprep.subr.mxu0 0.0
    %1648 = vmatpush1.msra.mxu0 0.0
    %1649 = vmatprep.subr.mxu0 0.0
    %1650 = vmatpush1.msra.mxu0 0.0
    %1651 = vmatprep.subr.mxu0 0.0
    %1652 = vmatpush1.msra.mxu0 0.0
    %1653 = vmatprep.subr.mxu0 0.0
    %1654 = vmatpush1.msra.mxu0 0.0
    %1655 = vmatprep.subr.mxu0 0.0
    %1656 = vmatpush1.msra.mxu0 0.0
    %1657 = vmatprep.subr.mxu0 0.0
    %1658 = vmatpush1.msra.mxu0 0.0
    %1659 = vmatprep.subr.mxu0 0.0
    %1660 = vmatpush1.msra.mxu0 0.0
    %1661 = vmatprep.subr.mxu0 0.0
    %1662 = vmatpush1.msra.mxu0 0.0
    %1663 = vmatprep.subr.mxu0 0.0
    %1664 = vmatpush1.msra.mxu0 0.0
    %1665 = vmatprep.subr.mxu0 0.0
    %1666 = vmatpush1.msra.mxu0 0.0
    %1667 = vmatprep.subr.mxu0 0.0
    %1668 = vmatpush1.msra.mxu0 0.0
    %1669 = vmatprep.subr.mxu0 0.0
    %1670 = vmatpush1.msra.mxu0 0.0
    %1671 = vmatprep.subr.mxu0 0.0
    %1672 = vmatpush1.msra.mxu0 0.0
    %1673 = vmatprep.subr.mxu0 0.0
    %1674 = vmatpush1.msra.mxu0 0.0
    %1675 = vmatprep.mubr.f32.mxu0 0.0
    %1676 = vmatmul.mubr.f32.gmra.mrb[0].mxu0 %v1609
    %v1677 = vpop.f32.mrb[0].mxu0
    %v1678 = vadd.f32 0.0, %v1677
    %v1679 = vpop.f32.mrb[0].mxu0
    %1680 = vdwg.mxu0
    %v1681 = vadd.f32 %v1606, %v1678
    %v1682 = vld [vmem:[%s844] sm:$0x7]
    %v1684 = vsel %vm1160, %v1682, 0
    %1686 = vmatprep.subr.mxu0 0.0
    %1687 = vmatpush1.msra.mxu0 %v46
    %1688 = vmatprep.subr.mxu0 0.0
    %1689 = vmatpush1.msra.mxu0 %v47
    %1690 = vmatprep.subr.mxu0 0.0
    %1691 = vmatpush1.msra.mxu0 0.0
    %1692 = vmatprep.subr.mxu0 0.0
    %1693 = vmatpush1.msra.mxu0 0.0
    %1694 = vmatprep.subr.mxu0 0.0
    %1695 = vmatpush1.msra.mxu0 0.0
    %1696 = vmatprep.subr.mxu0 0.0
    %1697 = vmatpush1.msra.mxu0 0.0
    %1698 = vmatprep.subr.mxu0 0.0
    %1699 = vmatpush1.msra.mxu0 0.0
    %1700 = vmatprep.subr.mxu0 0.0
    %1701 = vmatpush1.msra.mxu0 0.0
    %1702 = vmatprep.subr.mxu0 0.0
    %1703 = vmatpush1.msra.mxu0 0.0
    %1704 = vmatprep.subr.mxu0 0.0
    %1705 = vmatpush1.msra.mxu0 0.0
    %1706 = vmatprep.subr.mxu0 0.0
    %1707 = vmatpush1.msra.mxu0 0.0
    %1708 = vmatprep.subr.mxu0 0.0
    %1709 = vmatpush1.msra.mxu0 0.0
    %1710 = vmatprep.subr.mxu0 0.0
    %1711 = vmatpush1.msra.mxu0 0.0
    %1712 = vmatprep.subr.mxu0 0.0
    %1713 = vmatpush1.msra.mxu0 0.0
    %1714 = vmatprep.subr.mxu0 0.0
    %1715 = vmatpush1.msra.mxu0 0.0
    %1716 = vmatprep.subr.mxu0 0.0
    %1717 = vmatpush1.msra.mxu0 0.0
    %1718 = vmatprep.subr.mxu0 0.0
    %1719 = vmatpush1.msra.mxu0 0.0
    %1720 = vmatprep.subr.mxu0 0.0
    %1721 = vmatpush1.msra.mxu0 0.0
    %1722 = vmatprep.subr.mxu0 0.0
    %1723 = vmatpush1.msra.mxu0 0.0
    %1724 = vmatprep.subr.mxu0 0.0
    %1725 = vmatpush1.msra.mxu0 0.0
    %1726 = vmatprep.subr.mxu0 0.0
    %1727 = vmatpush1.msra.mxu0 0.0
    %1728 = vmatprep.subr.mxu0 0.0
    %1729 = vmatpush1.msra.mxu0 0.0
    %1730 = vmatprep.subr.mxu0 0.0
    %1731 = vmatpush1.msra.mxu0 0.0
    %1732 = vmatprep.subr.mxu0 0.0
    %1733 = vmatpush1.msra.mxu0 0.0
    %1734 = vmatprep.subr.mxu0 0.0
    %1735 = vmatpush1.msra.mxu0 0.0
    %1736 = vmatprep.subr.mxu0 0.0
    %1737 = vmatpush1.msra.mxu0 0.0
    %1738 = vmatprep.subr.mxu0 0.0
    %1739 = vmatpush1.msra.mxu0 0.0
    %1740 = vmatprep.subr.mxu0 0.0
    %1741 = vmatpush1.msra.mxu0 0.0
    %1742 = vmatprep.subr.mxu0 0.0
    %1743 = vmatpush1.msra.mxu0 0.0
    %1744 = vmatprep.subr.mxu0 0.0
    %1745 = vmatpush1.msra.mxu0 0.0
    %1746 = vmatprep.subr.mxu0 0.0
    %1747 = vmatpush1.msra.mxu0 0.0
    %1748 = vmatprep.subr.mxu0 0.0
    %1749 = vmatpush1.msra.mxu0 0.0
    %1750 = vmatprep.mubr.f32.mxu0 0.0
    %1751 = vmatmul.mubr.f32.gmra.mrb[0].mxu0 %v1684
    %v1752 = vpop.f32.mrb[0].mxu0
    %v1753 = vadd.f32 0.0, %v1752
    %v1754 = vpop.f32.mrb[0].mxu0
    %1755 = vdwg.mxu0
    %v1756 = vadd.f32 %v1681, %v1753
    %v1757 = vld [vmem:[%s298 + $0x1] sm:$0x7]
    %v1759 = vsel %vm1160, %v1757, 0
    %1761 = vmatprep.subr.mxu0 0.0
    %1762 = vmatpush1.msra.mxu0 %v48
    %1763 = vmatprep.subr.mxu0 0.0
    %1764 = vmatpush1.msra.mxu0 %v49
    %1765 = vmatprep.subr.mxu0 0.0
    %1766 = vmatpush1.msra.mxu0 0.0
    %1767 = vmatprep.subr.mxu0 0.0
    %1768 = vmatpush1.msra.mxu0 0.0
    %1769 = vmatprep.subr.mxu0 0.0
    %1770 = vmatpush1.msra.mxu0 0.0
    %1771 = vmatprep.subr.mxu0 0.0
    %1772 = vmatpush1.msra.mxu0 0.0
    %1773 = vmatprep.subr.mxu0 0.0
    %1774 = vmatpush1.msra.mxu0 0.0
    %1775 = vmatprep.subr.mxu0 0.0
    %1776 = vmatpush1.msra.mxu0 0.0
    %1777 = vmatprep.subr.mxu0 0.0
    %1778 = vmatpush1.msra.mxu0 0.0
    %1779 = vmatprep.subr.mxu0 0.0
    %1780 = vmatpush1.msra.mxu0 0.0
    %1781 = vmatprep.subr.mxu0 0.0
    %1782 = vmatpush1.msra.mxu0 0.0
    %1783 = vmatprep.subr.mxu0 0.0
    %1784 = vmatpush1.msra.mxu0 0.0
    %1785 = vmatprep.subr.mxu0 0.0
    %1786 = vmatpush1.msra.mxu0 0.0
    %1787 = vmatprep.subr.mxu0 0.0
    %1788 = vmatpush1.msra.mxu0 0.0
    %1789 = vmatprep.subr.mxu0 0.0
    %1790 = vmatpush1.msra.mxu0 0.0
    %1791 = vmatprep.subr.mxu0 0.0
    %1792 = vmatpush1.msra.mxu0 0.0
    %1793 = vmatprep.subr.mxu0 0.0
    %1794 = vmatpush1.msra.mxu0 0.0
    %1795 = vmatprep.subr.mxu0 0.0
    %1796 = vmatpush1.msra.mxu0 0.0
    %1797 = vmatprep.subr.mxu0 0.0
    %1798 = vmatpush1.msra.mxu0 0.0
    %1799 = vmatprep.subr.mxu0 0.0
    %1800 = vmatpush1.msra.mxu0 0.0
    %1801 = vmatprep.subr.mxu0 0.0
    %1802 = vmatpush1.msra.mxu0 0.0
    %1803 = vmatprep.subr.mxu0 0.0
    %1804 = vmatpush1.msra.mxu0 0.0
    %1805 = vmatprep.subr.mxu0 0.0
    %1806 = vmatpush1.msra.mxu0 0.0
    %1807 = vmatprep.subr.mxu0 0.0
    %1808 = vmatpush1.msra.mxu0 0.0
    %1809 = vmatprep.subr.mxu0 0.0
    %1810 = vmatpush1.msra.mxu0 0.0
    %1811 = vmatprep.subr.mxu0 0.0
    %1812 = vmatpush1.msra.mxu0 0.0
    %1813 = vmatprep.subr.mxu0 0.0
    %1814 = vmatpush1.msra.mxu0 0.0
    %1815 = vmatprep.subr.mxu0 0.0
    %1816 = vmatpush1.msra.mxu0 0.0
    %1817 = vmatprep.subr.mxu0 0.0
    %1818 = vmatpush1.msra.mxu0 0.0
    %1819 = vmatprep.subr.mxu0 0.0
    %1820 = vmatpush1.msra.mxu0 0.0
    %1821 = vmatprep.subr.mxu0 0.0
    %1822 = vmatpush1.msra.mxu0 0.0
    %1823 = vmatprep.subr.mxu0 0.0
    %1824 = vmatpush1.msra.mxu0 0.0
    %1825 = vmatprep.mubr.f32.mxu0 0.0
    %1826 = vmatmul.mubr.f32.gmra.mrb[0].mxu0 %v1759
    %v1827 = vpop.f32.mrb[0].mxu0
    %v1828 = vadd.f32 0.0, %v1827
    %v1829 = vpop.f32.mrb[0].mxu0
    %1830 = vdwg.mxu0
    %v1831 = vadd.f32 %v1756, %v1828
    %v1833 = vlaneseq
    %v1834 = vshrl.u32 %v1833, 7
    %v1835 = vsub.s32 0, %v1834
    %v1836 = vrot.slane %v50, %v1835
    %v1838 = vadd.f32 %v1831, %v1836
    %v1839 = vmax.f32 %v1838, 0.0
    %v1841 = vlaneseq
    %v1842 = vshrl.u32 %v1841, 7
    %v1843 = vsub.s32 0, %v1842
    %v1844 = vrot.slane %v55, %v1843
    %vm1846 = vcmask 261120
    %v1848 = vsel %vm1846, %v1839, 0
    %1850 = vmatprep.subr.mxu0 0.0
    %1851 = vmatpush1.msra.mxu0 %v51
    %1852 = vmatprep.subr.mxu0 0.0
    %1853 = vmatpush1.msra.mxu0 %v52
    %1854 = vmatprep.subr.mxu0 0.0
    %1855 = vmatpush1.msra.mxu0 %v53
    %1856 = vmatprep.subr.mxu0 0.0
    %1857 = vmatpush1.msra.mxu0 %v54
    %1858 = vmatprep.subr.mxu0 0.0
    %1859 = vmatpush1.msra.mxu0 0.0
    %1860 = vmatprep.subr.mxu0 0.0
    %1861 = vmatpush1.msra.mxu0 0.0
    %1862 = vmatprep.subr.mxu0 0.0
    %1863 = vmatpush1.msra.mxu0 0.0
    %1864 = vmatprep.subr.mxu0 0.0
    %1865 = vmatpush1.msra.mxu0 0.0
    %1866 = vmatprep.subr.mxu0 0.0
    %1867 = vmatpush1.msra.mxu0 0.0
    %1868 = vmatprep.subr.mxu0 0.0
    %1869 = vmatpush1.msra.mxu0 0.0
    %1870 = vmatprep.subr.mxu0 0.0
    %1871 = vmatpush1.msra.mxu0 0.0
    %1872 = vmatprep.subr.mxu0 0.0
    %1873 = vmatpush1.msra.mxu0 0.0
    %1874 = vmatprep.subr.mxu0 0.0
    %1875 = vmatpush1.msra.mxu0 0.0
    %1876 = vmatprep.subr.mxu0 0.0
    %1877 = vmatpush1.msra.mxu0 0.0
    %1878 = vmatprep.subr.mxu0 0.0
    %1879 = vmatpush1.msra.mxu0 0.0
    %1880 = vmatprep.subr.mxu0 0.0
    %1881 = vmatpush1.msra.mxu0 0.0
    %1882 = vmatprep.subr.mxu0 0.0
    %1883 = vmatpush1.msra.mxu0 0.0
    %1884 = vmatprep.subr.mxu0 0.0
    %1885 = vmatpush1.msra.mxu0 0.0
    %1886 = vmatprep.subr.mxu0 0.0
    %1887 = vmatpush1.msra.mxu0 0.0
    %1888 = vmatprep.subr.mxu0 0.0
    %1889 = vmatpush1.msra.mxu0 0.0
    %1890 = vmatprep.subr.mxu0 0.0
    %1891 = vmatpush1.msra.mxu0 0.0
    %1892 = vmatprep.subr.mxu0 0.0
    %1893 = vmatpush1.msra.mxu0 0.0
    %1894 = vmatprep.subr.mxu0 0.0
    %1895 = vmatpush1.msra.mxu0 0.0
    %1896 = vmatprep.subr.mxu0 0.0
    %1897 = vmatpush1.msra.mxu0 0.0
    %1898 = vmatprep.subr.mxu0 0.0
    %1899 = vmatpush1.msra.mxu0 0.0
    %1900 = vmatprep.subr.mxu0 0.0
    %1901 = vmatpush1.msra.mxu0 0.0
    %1902 = vmatprep.subr.mxu0 0.0
    %1903 = vmatpush1.msra.mxu0 0.0
    %1904 = vmatprep.subr.mxu0 0.0
    %1905 = vmatpush1.msra.mxu0 0.0
    %1906 = vmatprep.subr.mxu0 0.0
    %1907 = vmatpush1.msra.mxu0 0.0
    %1908 = vmatprep.subr.mxu0 0.0
    %1909 = vmatpush1.msra.mxu0 0.0
    %1910 = vmatprep.subr.mxu0 0.0
    %1911 = vmatpush1.msra.mxu0 0.0
    %1912 = vmatprep.subr.mxu0 0.0
    %1913 = vmatpush1.msra.mxu0 0.0
    %1914 = vmatprep.mubr.f32.mxu0 0.0
    %1915 = vmatmul.mubr.f32.gmra.mrb[0].mxu0 %v1848
    %v1916 = vpop.f32.mrb[0].mxu0
    %v1917 = vadd.f32 %v1844, %v1916
    %v1918 = vpop.f32.mrb[0].mxu0
    %1919 = vdwg.mxu0
    %vm1920 = vcmask 256000
    %1921 = vst.msk [vmem:[#allocation3] sm:$0x7] %vm1920, %v1917
    %v1922 = vld [vmem:[%s298] sm:$0x7]
    %v1923 = vld [vmem:[%s844] sm:$0x7]
    %v1925 = vsel %vm1160, %v1923, 0
    %1927 = vmatprep.subr.mxu0 0.0
    %1928 = vmatpush1.msra.mxu0 %v34
    %1929 = vmatprep.subr.mxu0 0.0
    %1930 = vmatpush1.msra.mxu0 %v35
    %1931 = vmatprep.subr.mxu0 0.0
    %1932 = vmatpush1.msra.mxu0 0.0
    %1933 = vmatprep.subr.mxu0 0.0
    %1934 = vmatpush1.msra.mxu0 0.0
    %1935 = vmatprep.subr.mxu0 0.0
    %1936 = vmatpush1.msra.mxu0 0.0
    %1937 = vmatprep.subr.mxu0 0.0
    %1938 = vmatpush1.msra.mxu0 0.0
    %1939 = vmatprep.subr.mxu0 0.0
    %1940 = vmatpush1.msra.mxu0 0.0
    %1941 = vmatprep.subr.mxu0 0.0
    %1942 = vmatpush1.msra.mxu0 0.0
    %1943 = vmatprep.subr.mxu0 0.0
    %1944 = vmatpush1.msra.mxu0 0.0
    %1945 = vmatprep.subr.mxu0 0.0
    %1946 = vmatpush1.msra.mxu0 0.0
    %1947 = vmatprep.subr.mxu0 0.0
    %1948 = vmatpush1.msra.mxu0 0.0
    %1949 = vmatprep.subr.mxu0 0.0
    %1950 = vmatpush1.msra.mxu0 0.0
    %1951 = vmatprep.subr.mxu0 0.0
    %1952 = vmatpush1.msra.mxu0 0.0
    %1953 = vmatprep.subr.mxu0 0.0
    %1954 = vmatpush1.msra.mxu0 0.0
    %1955 = vmatprep.subr.mxu0 0.0
    %1956 = vmatpush1.msra.mxu0 0.0
    %1957 = vmatprep.subr.mxu0 0.0
    %1958 = vmatpush1.msra.mxu0 0.0
    %1959 = vmatprep.subr.mxu0 0.0
    %1960 = vmatpush1.msra.mxu0 0.0
    %1961 = vmatprep.subr.mxu0 0.0
    %1962 = vmatpush1.msra.mxu0 0.0
    %1963 = vmatprep.subr.mxu0 0.0
    %1964 = vmatpush1.msra.mxu0 0.0
    %1965 = vmatprep.subr.mxu0 0.0
    %1966 = vmatpush1.msra.mxu0 0.0
    %1967 = vmatprep.subr.mxu0 0.0
    %1968 = vmatpush1.msra.mxu0 0.0
    %1969 = vmatprep.subr.mxu0 0.0
    %1970 = vmatpush1.msra.mxu0 0.0
    %1971 = vmatprep.subr.mxu0 0.0
    %1972 = vmatpush1.msra.mxu0 0.0
    %1973 = vmatprep.subr.mxu0 0.0
    %1974 = vmatpush1.msra.mxu0 0.0
    %1975 = vmatprep.subr.mxu0 0.0
    %1976 = vmatpush1.msra.mxu0 0.0
    %1977 = vmatprep.subr.mxu0 0.0
    %1978 = vmatpush1.msra.mxu0 0.0
    %1979 = vmatprep.subr.mxu0 0.0
    %1980 = vmatpush1.msra.mxu0 0.0
    %1981 = vmatprep.subr.mxu0 0.0
    %1982 = vmatpush1.msra.mxu0 0.0
    %1983 = vmatprep.subr.mxu0 0.0
    %1984 = vmatpush1.msra.mxu0 0.0
    %1985 = vmatprep.subr.mxu0 0.0
    %1986 = vmatpush1.msra.mxu0 0.0
    %1987 = vmatprep.subr.mxu0 0.0
    %1988 = vmatpush1.msra.mxu0 0.0
    %1989 = vmatprep.subr.mxu0 0.0
    %1990 = vmatpush1.msra.mxu0 0.0
    %1991 = vmatprep.mubr.f32.mxu0 0.0
    %1992 = vmatmul.mubr.f32.gmra.mrb[0].mxu0 %v1925
    %v1993 = vpop.f32.mrb[0].mxu0
    %v1994 = vadd.f32 0.0, %v1993
    %v1995 = vpop.f32.mrb[0].mxu0
    %1996 = vdwg.mxu0
    %v1998 = vsel %vm1160, %v1922, 0
    %2000 = vmatprep.subr.mxu0 0.0
    %2001 = vmatpush1.msra.mxu0 %v32
    %2002 = vmatprep.subr.mxu0 0.0
    %2003 = vmatpush1.msra.mxu0 %v33
    %2004 = vmatprep.subr.mxu0 0.0
    %2005 = vmatpush1.msra.mxu0 0.0
    %2006 = vmatprep.subr.mxu0 0.0
    %2007 = vmatpush1.msra.mxu0 0.0
    %2008 = vmatprep.subr.mxu0 0.0
    %2009 = vmatpush1.msra.mxu0 0.0
    %2010 = vmatprep.subr.mxu0 0.0
    %2011 = vmatpush1.msra.mxu0 0.0
    %2012 = vmatprep.subr.mxu0 0.0
    %2013 = vmatpush1.msra.mxu0 0.0
    %2014 = vmatprep.subr.mxu0 0.0
    %2015 = vmatpush1.msra.mxu0 0.0
    %2016 = vmatprep.subr.mxu0 0.0
    %2017 = vmatpush1.msra.mxu0 0.0
    %2018 = vmatprep.subr.mxu0 0.0
    %2019 = vmatpush1.msra.mxu0 0.0
    %2020 = vmatprep.subr.mxu0 0.0
    %2021 = vmatpush1.msra.mxu0 0.0
    %2022 = vmatprep.subr.mxu0 0.0
    %2023 = vmatpush1.msra.mxu0 0.0
    %2024 = vmatprep.subr.mxu0 0.0
    %2025 = vmatpush1.msra.mxu0 0.0
    %2026 = vmatprep.subr.mxu0 0.0
    %2027 = vmatpush1.msra.mxu0 0.0
    %2028 = vmatprep.subr.mxu0 0.0
    %2029 = vmatpush1.msra.mxu0 0.0
    %2030 = vmatprep.subr.mxu0 0.0
    %2031 = vmatpush1.msra.mxu0 0.0
    %2032 = vmatprep.subr.mxu0 0.0
    %2033 = vmatpush1.msra.mxu0 0.0
    %2034 = vmatprep.subr.mxu0 0.0
    %2035 = vmatpush1.msra.mxu0 0.0
    %2036 = vmatprep.subr.mxu0 0.0
    %2037 = vmatpush1.msra.mxu0 0.0
    %2038 = vmatprep.subr.mxu0 0.0
    %2039 = vmatpush1.msra.mxu0 0.0
    %2040 = vmatprep.subr.mxu0 0.0
    %2041 = vmatpush1.msra.mxu0 0.0
    %2042 = vmatprep.subr.mxu0 0.0
    %2043 = vmatpush1.msra.mxu0 0.0
    %2044 = vmatprep.subr.mxu0 0.0
    %2045 = vmatpush1.msra.mxu0 0.0
    %2046 = vmatprep.subr.mxu0 0.0
    %2047 = vmatpush1.msra.mxu0 0.0
    %2048 = vmatprep.subr.mxu0 0.0
    %2049 = vmatpush1.msra.mxu0 0.0
    %2050 = vmatprep.subr.mxu0 0.0
    %2051 = vmatpush1.msra.mxu0 0.0
    %2052 = vmatprep.subr.mxu0 0.0
    %2053 = vmatpush1.msra.mxu0 0.0
    %2054 = vmatprep.subr.mxu0 0.0
    %2055 = vmatpush1.msra.mxu0 0.0
    %2056 = vmatprep.subr.mxu0 0.0
    %2057 = vmatpush1.msra.mxu0 0.0
    %2058 = vmatprep.subr.mxu0 0.0
    %2059 = vmatpush1.msra.mxu0 0.0
    %2060 = vmatprep.subr.mxu0 0.0
    %2061 = vmatpush1.msra.mxu0 0.0
    %2062 = vmatprep.subr.mxu0 0.0
    %2063 = vmatpush1.msra.mxu0 0.0
    %2064 = vmatprep.mubr.f32.mxu0 0.0
    %2065 = vmatmul.mubr.f32.gmra.mrb[0].mxu0 %v1998
    %v2066 = vpop.f32.mrb[0].mxu0
    %v2067 = vadd.f32 %v1994, %v2066
    %v2068 = vpop.f32.mrb[0].mxu0
    %2069 = vdwg.mxu0
    %v2070 = vld [vmem:[%s298 + $0x1] sm:$0x7]
    %v2072 = vsel %vm1160, %v2070, 0
    %2074 = vmatprep.subr.mxu0 0.0
    %2075 = vmatpush1.msra.mxu0 %v36
    %2076 = vmatprep.subr.mxu0 0.0
    %2077 = vmatpush1.msra.mxu0 %v37
    %2078 = vmatprep.subr.mxu0 0.0
    %2079 = vmatpush1.msra.mxu0 0.0
    %2080 = vmatprep.subr.mxu0 0.0
    %2081 = vmatpush1.msra.mxu0 0.0
    %2082 = vmatprep.subr.mxu0 0.0
    %2083 = vmatpush1.msra.mxu0 0.0
    %2084 = vmatprep.subr.mxu0 0.0
    %2085 = vmatpush1.msra.mxu0 0.0
    %2086 = vmatprep.subr.mxu0 0.0
    %2087 = vmatpush1.msra.mxu0 0.0
    %2088 = vmatprep.subr.mxu0 0.0
    %2089 = vmatpush1.msra.mxu0 0.0
    %2090 = vmatprep.subr.mxu0 0.0
    %2091 = vmatpush1.msra.mxu0 0.0
    %2092 = vmatprep.subr.mxu0 0.0
    %2093 = vmatpush1.msra.mxu0 0.0
    %2094 = vmatprep.subr.mxu0 0.0
    %2095 = vmatpush1.msra.mxu0 0.0
    %2096 = vmatprep.subr.mxu0 0.0
    %2097 = vmatpush1.msra.mxu0 0.0
    %2098 = vmatprep.subr.mxu0 0.0
    %2099 = vmatpush1.msra.mxu0 0.0
    %2100 = vmatprep.subr.mxu0 0.0
    %2101 = vmatpush1.msra.mxu0 0.0
    %2102 = vmatprep.subr.mxu0 0.0
    %2103 = vmatpush1.msra.mxu0 0.0
    %2104 = vmatprep.subr.mxu0 0.0
    %2105 = vmatpush1.msra.mxu0 0.0
    %2106 = vmatprep.subr.mxu0 0.0
    %2107 = vmatpush1.msra.mxu0 0.0
    %2108 = vmatprep.subr.mxu0 0.0
    %2109 = vmatpush1.msra.mxu0 0.0
    %2110 = vmatprep.subr.mxu0 0.0
    %2111 = vmatpush1.msra.mxu0 0.0
    %2112 = vmatprep.subr.mxu0 0.0
    %2113 = vmatpush1.msra.mxu0 0.0
    %2114 = vmatprep.subr.mxu0 0.0
    %2115 = vmatpush1.msra.mxu0 0.0
    %2116 = vmatprep.subr.mxu0 0.0
    %2117 = vmatpush1.msra.mxu0 0.0
    %2118 = vmatprep.subr.mxu0 0.0
    %2119 = vmatpush1.msra.mxu0 0.0
    %2120 = vmatprep.subr.mxu0 0.0
    %2121 = vmatpush1.msra.mxu0 0.0
    %2122 = vmatprep.subr.mxu0 0.0
    %2123 = vmatpush1.msra.mxu0 0.0
    %2124 = vmatprep.subr.mxu0 0.0
    %2125 = vmatpush1.msra.mxu0 0.0
    %2126 = vmatprep.subr.mxu0 0.0
    %2127 = vmatpush1.msra.mxu0 0.0
    %2128 = vmatprep.subr.mxu0 0.0
    %2129 = vmatpush1.msra.mxu0 0.0
    %2130 = vmatprep.subr.mxu0 0.0
    %2131 = vmatpush1.msra.mxu0 0.0
    %2132 = vmatprep.subr.mxu0 0.0
    %2133 = vmatpush1.msra.mxu0 0.0
    %2134 = vmatprep.subr.mxu0 0.0
    %2135 = vmatpush1.msra.mxu0 0.0
    %2136 = vmatprep.subr.mxu0 0.0
    %2137 = vmatpush1.msra.mxu0 0.0
    %2138 = vmatprep.mubr.f32.mxu0 0.0
    %2139 = vmatmul.mubr.f32.gmra.mrb[0].mxu0 %v2072
    %v2140 = vpop.f32.mrb[0].mxu0
    %v2141 = vadd.f32 0.0, %v2140
    %v2142 = vpop.f32.mrb[0].mxu0
    %2143 = vdwg.mxu0
    %v2144 = vadd.f32 %v2067, %v2141
    %v2145 = vld [vmem:[%s376] sm:$0x7]
    %v2147 = vsel %vm1160, %v2145, 0
    %2149 = vmatprep.subr.mxu0 0.0
    %2150 = vmatpush1.msra.mxu0 %v38
    %2151 = vmatprep.subr.mxu0 0.0
    %2152 = vmatpush1.msra.mxu0 %v39
    %2153 = vmatprep.subr.mxu0 0.0
    %2154 = vmatpush1.msra.mxu0 0.0
    %2155 = vmatprep.subr.mxu0 0.0
    %2156 = vmatpush1.msra.mxu0 0.0
    %2157 = vmatprep.subr.mxu0 0.0
    %2158 = vmatpush1.msra.mxu0 0.0
    %2159 = vmatprep.subr.mxu0 0.0
    %2160 = vmatpush1.msra.mxu0 0.0
    %2161 = vmatprep.subr.mxu0 0.0
    %2162 = vmatpush1.msra.mxu0 0.0
    %2163 = vmatprep.subr.mxu0 0.0
    %2164 = vmatpush1.msra.mxu0 0.0
    %2165 = vmatprep.subr.mxu0 0.0
    %2166 = vmatpush1.msra.mxu0 0.0
    %2167 = vmatprep.subr.mxu0 0.0
    %2168 = vmatpush1.msra.mxu0 0.0
    %2169 = vmatprep.subr.mxu0 0.0
    %2170 = vmatpush1.msra.mxu0 0.0
    %2171 = vmatprep.subr.mxu0 0.0
    %2172 = vmatpush1.msra.mxu0 0.0
    %2173 = vmatprep.subr.mxu0 0.0
    %2174 = vmatpush1.msra.mxu0 0.0
    %2175 = vmatprep.subr.mxu0 0.0
    %2176 = vmatpush1.msra.mxu0 0.0
    %2177 = vmatprep.subr.mxu0 0.0
    %2178 = vmatpush1.msra.mxu0 0.0
    %2179 = vmatprep.subr.mxu0 0.0
    %2180 = vmatpush1.msra.mxu0 0.0
    %2181 = vmatprep.subr.mxu0 0.0
    %2182 = vmatpush1.msra.mxu0 0.0
    %2183 = vmatprep.subr.mxu0 0.0
    %2184 = vmatpush1.msra.mxu0 0.0
    %2185 = vmatprep.subr.mxu0 0.0
    %2186 = vmatpush1.msra.mxu0 0.0
    %2187 = vmatprep.subr.mxu0 0.0
    %2188 = vmatpush1.msra.mxu0 0.0
    %2189 = vmatprep.subr.mxu0 0.0
    %2190 = vmatpush1.msra.mxu0 0.0
    %2191 = vmatprep.subr.mxu0 0.0
    %2192 = vmatpush1.msra.mxu0 0.0
    %2193 = vmatprep.subr.mxu0 0.0
    %2194 = vmatpush1.msra.mxu0 0.0
    %2195 = vmatprep.subr.mxu0 0.0
    %2196 = vmatpush1.msra.mxu0 0.0
    %2197 = vmatprep.subr.mxu0 0.0
    %2198 = vmatpush1.msra.mxu0 0.0
    %2199 = vmatprep.subr.mxu0 0.0
    %2200 = vmatpush1.msra.mxu0 0.0
    %2201 = vmatprep.subr.mxu0 0.0
    %2202 = vmatpush1.msra.mxu0 0.0
    %2203 = vmatprep.subr.mxu0 0.0
    %2204 = vmatpush1.msra.mxu0 0.0
    %2205 = vmatprep.subr.mxu0 0.0
    %2206 = vmatpush1.msra.mxu0 0.0
    %2207 = vmatprep.subr.mxu0 0.0
    %2208 = vmatpush1.msra.mxu0 0.0
    %2209 = vmatprep.subr.mxu0 0.0
    %2210 = vmatpush1.msra.mxu0 0.0
    %2211 = vmatprep.subr.mxu0 0.0
    %2212 = vmatpush1.msra.mxu0 0.0
    %2213 = vmatprep.mubr.f32.mxu0 0.0
    %2214 = vmatmul.mubr.f32.gmra.mrb[0].mxu0 %v2147
    %v2215 = vpop.f32.mrb[0].mxu0
    %v2216 = vadd.f32 0.0, %v2215
    %v2217 = vpop.f32.mrb[0].mxu0
    %2218 = vdwg.mxu0
    %v2219 = vadd.f32 %v2144, %v2216
    %v2220 = vld [vmem:[%s922] sm:$0x7]
    %v2222 = vsel %vm1160, %v2220, 0
    %2224 = vmatprep.subr.mxu0 0.0
    %2225 = vmatpush1.msra.mxu0 %v40
    %2226 = vmatprep.subr.mxu0 0.0
    %2227 = vmatpush1.msra.mxu0 %v41
    %2228 = vmatprep.subr.mxu0 0.0
    %2229 = vmatpush1.msra.mxu0 0.0
    %2230 = vmatprep.subr.mxu0 0.0
    %2231 = vmatpush1.msra.mxu0 0.0
    %2232 = vmatprep.subr.mxu0 0.0
    %2233 = vmatpush1.msra.mxu0 0.0
    %2234 = vmatprep.subr.mxu0 0.0
    %2235 = vmatpush1.msra.mxu0 0.0
    %2236 = vmatprep.subr.mxu0 0.0
    %2237 = vmatpush1.msra.mxu0 0.0
    %2238 = vmatprep.subr.mxu0 0.0
    %2239 = vmatpush1.msra.mxu0 0.0
    %2240 = vmatprep.subr.mxu0 0.0
    %2241 = vmatpush1.msra.mxu0 0.0
    %2242 = vmatprep.subr.mxu0 0.0
    %2243 = vmatpush1.msra.mxu0 0.0
    %2244 = vmatprep.subr.mxu0 0.0
    %2245 = vmatpush1.msra.mxu0 0.0
    %2246 = vmatprep.subr.mxu0 0.0
    %2247 = vmatpush1.msra.mxu0 0.0
    %2248 = vmatprep.subr.mxu0 0.0
    %2249 = vmatpush1.msra.mxu0 0.0
    %2250 = vmatprep.subr.mxu0 0.0
    %2251 = vmatpush1.msra.mxu0 0.0
    %2252 = vmatprep.subr.mxu0 0.0
    %2253 = vmatpush1.msra.mxu0 0.0
    %2254 = vmatprep.subr.mxu0 0.0
    %2255 = vmatpush1.msra.mxu0 0.0
    %2256 = vmatprep.subr.mxu0 0.0
    %2257 = vmatpush1.msra.mxu0 0.0
    %2258 = vmatprep.subr.mxu0 0.0
    %2259 = vmatpush1.msra.mxu0 0.0
    %2260 = vmatprep.subr.mxu0 0.0
    %2261 = vmatpush1.msra.mxu0 0.0
    %2262 = vmatprep.subr.mxu0 0.0
    %2263 = vmatpush1.msra.mxu0 0.0
    %2264 = vmatprep.subr.mxu0 0.0
    %2265 = vmatpush1.msra.mxu0 0.0
    %2266 = vmatprep.subr.mxu0 0.0
    %2267 = vmatpush1.msra.mxu0 0.0
    %2268 = vmatprep.subr.mxu0 0.0
    %2269 = vmatpush1.msra.mxu0 0.0
    %2270 = vmatprep.subr.mxu0 0.0
    %2271 = vmatpush1.msra.mxu0 0.0
    %2272 = vmatprep.subr.mxu0 0.0
    %2273 = vmatpush1.msra.mxu0 0.0
    %2274 = vmatprep.subr.mxu0 0.0
    %2275 = vmatpush1.msra.mxu0 0.0
    %2276 = vmatprep.subr.mxu0 0.0
    %2277 = vmatpush1.msra.mxu0 0.0
    %2278 = vmatprep.subr.mxu0 0.0
    %2279 = vmatpush1.msra.mxu0 0.0
    %2280 = vmatprep.subr.mxu0 0.0
    %2281 = vmatpush1.msra.mxu0 0.0
    %2282 = vmatprep.subr.mxu0 0.0
    %2283 = vmatpush1.msra.mxu0 0.0
    %2284 = vmatprep.subr.mxu0 0.0
    %2285 = vmatpush1.msra.mxu0 0.0
    %2286 = vmatprep.subr.mxu0 0.0
    %2287 = vmatpush1.msra.mxu0 0.0
    %2288 = vmatprep.mubr.f32.mxu0 0.0
    %2289 = vmatmul.mubr.f32.gmra.mrb[0].mxu0 %v2222
    %v2290 = vpop.f32.mrb[0].mxu0
    %v2291 = vadd.f32 0.0, %v2290
    %v2292 = vpop.f32.mrb[0].mxu0
    %2293 = vdwg.mxu0
    %v2294 = vadd.f32 %v2219, %v2291
    %v2295 = vld [vmem:[%s376 + $0x1] sm:$0x7]
    %v2297 = vsel %vm1160, %v2295, 0
    %2299 = vmatprep.subr.mxu0 0.0
    %2300 = vmatpush1.msra.mxu0 %v42
    %2301 = vmatprep.subr.mxu0 0.0
    %2302 = vmatpush1.msra.mxu0 %v43
    %2303 = vmatprep.subr.mxu0 0.0
    %2304 = vmatpush1.msra.mxu0 0.0
    %2305 = vmatprep.subr.mxu0 0.0
    %2306 = vmatpush1.msra.mxu0 0.0
    %2307 = vmatprep.subr.mxu0 0.0
    %2308 = vmatpush1.msra.mxu0 0.0
    %2309 = vmatprep.subr.mxu0 0.0
    %2310 = vmatpush1.msra.mxu0 0.0
    %2311 = vmatprep.subr.mxu0 0.0
    %2312 = vmatpush1.msra.mxu0 0.0
    %2313 = vmatprep.subr.mxu0 0.0
    %2314 = vmatpush1.msra.mxu0 0.0
    %2315 = vmatprep.subr.mxu0 0.0
    %2316 = vmatpush1.msra.mxu0 0.0
    %2317 = vmatprep.subr.mxu0 0.0
    %2318 = vmatpush1.msra.mxu0 0.0
    %2319 = vmatprep.subr.mxu0 0.0
    %2320 = vmatpush1.msra.mxu0 0.0
    %2321 = vmatprep.subr.mxu0 0.0
    %2322 = vmatpush1.msra.mxu0 0.0
    %2323 = vmatprep.subr.mxu0 0.0
    %2324 = vmatpush1.msra.mxu0 0.0
    %2325 = vmatprep.subr.mxu0 0.0
    %2326 = vmatpush1.msra.mxu0 0.0
    %2327 = vmatprep.subr.mxu0 0.0
    %2328 = vmatpush1.msra.mxu0 0.0
    %2329 = vmatprep.subr.mxu0 0.0
    %2330 = vmatpush1.msra.mxu0 0.0
    %2331 = vmatprep.subr.mxu0 0.0
    %2332 = vmatpush1.msra.mxu0 0.0
    %2333 = vmatprep.subr.mxu0 0.0
    %2334 = vmatpush1.msra.mxu0 0.0
    %2335 = vmatprep.subr.mxu0 0.0
    %2336 = vmatpush1.msra.mxu0 0.0
    %2337 = vmatprep.subr.mxu0 0.0
    %2338 = vmatpush1.msra.mxu0 0.0
    %2339 = vmatprep.subr.mxu0 0.0
    %2340 = vmatpush1.msra.mxu0 0.0
    %2341 = vmatprep.subr.mxu0 0.0
    %2342 = vmatpush1.msra.mxu0 0.0
    %2343 = vmatprep.subr.mxu0 0.0
    %2344 = vmatpush1.msra.mxu0 0.0
    %2345 = vmatprep.subr.mxu0 0.0
    %2346 = vmatpush1.msra.mxu0 0.0
    %2347 = vmatprep.subr.mxu0 0.0
    %2348 = vmatpush1.msra.mxu0 0.0
    %2349 = vmatprep.subr.mxu0 0.0
    %2350 = vmatpush1.msra.mxu0 0.0
    %2351 = vmatprep.subr.mxu0 0.0
    %2352 = vmatpush1.msra.mxu0 0.0
    %2353 = vmatprep.subr.mxu0 0.0
    %2354 = vmatpush1.msra.mxu0 0.0
    %2355 = vmatprep.subr.mxu0 0.0
    %2356 = vmatpush1.msra.mxu0 0.0
    %2357 = vmatprep.subr.mxu0 0.0
    %2358 = vmatpush1.msra.mxu0 0.0
    %2359 = vmatprep.subr.mxu0 0.0
    %2360 = vmatpush1.msra.mxu0 0.0
    %2361 = vmatprep.subr.mxu0 0.0
    %2362 = vmatpush1.msra.mxu0 0.0
    %2363 = vmatprep.mubr.f32.mxu0 0.0
    %2364 = vmatmul.mubr.f32.gmra.mrb[0].mxu0 %v2297
    %v2365 = vpop.f32.mrb[0].mxu0
    %v2366 = vadd.f32 0.0, %v2365
    %v2367 = vpop.f32.mrb[0].mxu0
    %2368 = vdwg.mxu0
    %v2369 = vadd.f32 %v2294, %v2366
    %v2370 = vld [vmem:[%s454] sm:$0x7]
    %v2372 = vsel %vm1160, %v2370, 0
    %2374 = vmatprep.subr.mxu0 0.0
    %2375 = vmatpush1.msra.mxu0 %v44
    %2376 = vmatprep.subr.mxu0 0.0
    %2377 = vmatpush1.msra.mxu0 %v45
    %2378 = vmatprep.subr.mxu0 0.0
    %2379 = vmatpush1.msra.mxu0 0.0
    %2380 = vmatprep.subr.mxu0 0.0
    %2381 = vmatpush1.msra.mxu0 0.0
    %2382 = vmatprep.subr.mxu0 0.0
    %2383 = vmatpush1.msra.mxu0 0.0
    %2384 = vmatprep.subr.mxu0 0.0
    %2385 = vmatpush1.msra.mxu0 0.0
    %2386 = vmatprep.subr.mxu0 0.0
    %2387 = vmatpush1.msra.mxu0 0.0
    %2388 = vmatprep.subr.mxu0 0.0
    %2389 = vmatpush1.msra.mxu0 0.0
    %2390 = vmatprep.subr.mxu0 0.0
    %2391 = vmatpush1.msra.mxu0 0.0
    %2392 = vmatprep.subr.mxu0 0.0
    %2393 = vmatpush1.msra.mxu0 0.0
    %2394 = vmatprep.subr.mxu0 0.0
    %2395 = vmatpush1.msra.mxu0 0.0
    %2396 = vmatprep.subr.mxu0 0.0
    %2397 = vmatpush1.msra.mxu0 0.0
    %2398 = vmatprep.subr.mxu0 0.0
    %2399 = vmatpush1.msra.mxu0 0.0
    %2400 = vmatprep.subr.mxu0 0.0
    %2401 = vmatpush1.msra.mxu0 0.0
    %2402 = vmatprep.subr.mxu0 0.0
    %2403 = vmatpush1.msra.mxu0 0.0
    %2404 = vmatprep.subr.mxu0 0.0
    %2405 = vmatpush1.msra.mxu0 0.0
    %2406 = vmatprep.subr.mxu0 0.0
    %2407 = vmatpush1.msra.mxu0 0.0
    %2408 = vmatprep.subr.mxu0 0.0
    %2409 = vmatpush1.msra.mxu0 0.0
    %2410 = vmatprep.subr.mxu0 0.0
    %2411 = vmatpush1.msra.mxu0 0.0
    %2412 = vmatprep.subr.mxu0 0.0
    %2413 = vmatpush1.msra.mxu0 0.0
    %2414 = vmatprep.subr.mxu0 0.0
    %2415 = vmatpush1.msra.mxu0 0.0
    %2416 = vmatprep.subr.mxu0 0.0
    %2417 = vmatpush1.msra.mxu0 0.0
    %2418 = vmatprep.subr.mxu0 0.0
    %2419 = vmatpush1.msra.mxu0 0.0
    %2420 = vmatprep.subr.mxu0 0.0
    %2421 = vmatpush1.msra.mxu0 0.0
    %2422 = vmatprep.subr.mxu0 0.0
    %2423 = vmatpush1.msra.mxu0 0.0
    %2424 = vmatprep.subr.mxu0 0.0
    %2425 = vmatpush1.msra.mxu0 0.0
    %2426 = vmatprep.subr.mxu0 0.0
    %2427 = vmatpush1.msra.mxu0 0.0
    %2428 = vmatprep.subr.mxu0 0.0
    %2429 = vmatpush1.msra.mxu0 0.0
    %2430 = vmatprep.subr.mxu0 0.0
    %2431 = vmatpush1.msra.mxu0 0.0
    %2432 = vmatprep.subr.mxu0 0.0
    %2433 = vmatpush1.msra.mxu0 0.0
    %2434 = vmatprep.subr.mxu0 0.0
    %2435 = vmatpush1.msra.mxu0 0.0
    %2436 = vmatprep.subr.mxu0 0.0
    %2437 = vmatpush1.msra.mxu0 0.0
    %2438 = vmatprep.mubr.f32.mxu0 0.0
    %2439 = vmatmul.mubr.f32.gmra.mrb[0].mxu0 %v2372
    %v2440 = vpop.f32.mrb[0].mxu0
    %v2441 = vadd.f32 0.0, %v2440
    %v2442 = vpop.f32.mrb[0].mxu0
    %2443 = vdwg.mxu0
    %v2444 = vadd.f32 %v2369, %v2441
    %v2445 = vld [vmem:[%s1000] sm:$0x7]
    %v2447 = vsel %vm1160, %v2445, 0
    %2449 = vmatprep.subr.mxu0 0.0
    %2450 = vmatpush1.msra.mxu0 %v46
    %2451 = vmatprep.subr.mxu0 0.0
    %2452 = vmatpush1.msra.mxu0 %v47
    %2453 = vmatprep.subr.mxu0 0.0
    %2454 = vmatpush1.msra.mxu0 0.0
    %2455 = vmatprep.subr.mxu0 0.0
    %2456 = vmatpush1.msra.mxu0 0.0
    %2457 = vmatprep.subr.mxu0 0.0
    %2458 = vmatpush1.msra.mxu0 0.0
    %2459 = vmatprep.subr.mxu0 0.0
    %2460 = vmatpush1.msra.mxu0 0.0
    %2461 = vmatprep.subr.mxu0 0.0
    %2462 = vmatpush1.msra.mxu0 0.0
    %2463 = vmatprep.subr.mxu0 0.0
    %2464 = vmatpush1.msra.mxu0 0.0
    %2465 = vmatprep.subr.mxu0 0.0
    %2466 = vmatpush1.msra.mxu0 0.0
    %2467 = vmatprep.subr.mxu0 0.0
    %2468 = vmatpush1.msra.mxu0 0.0
    %2469 = vmatprep.subr.mxu0 0.0
    %2470 = vmatpush1.msra.mxu0 0.0
    %2471 = vmatprep.subr.mxu0 0.0
    %2472 = vmatpush1.msra.mxu0 0.0
    %2473 = vmatprep.subr.mxu0 0.0
    %2474 = vmatpush1.msra.mxu0 0.0
    %2475 = vmatprep.subr.mxu0 0.0
    %2476 = vmatpush1.msra.mxu0 0.0
    %2477 = vmatprep.subr.mxu0 0.0
    %2478 = vmatpush1.msra.mxu0 0.0
    %2479 = vmatprep.subr.mxu0 0.0
    %2480 = vmatpush1.msra.mxu0 0.0
    %2481 = vmatprep.subr.mxu0 0.0
    %2482 = vmatpush1.msra.mxu0 0.0
    %2483 = vmatprep.subr.mxu0 0.0
    %2484 = vmatpush1.msra.mxu0 0.0
    %2485 = vmatprep.subr.mxu0 0.0
    %2486 = vmatpush1.msra.mxu0 0.0
    %2487 = vmatprep.subr.mxu0 0.0
    %2488 = vmatpush1.msra.mxu0 0.0
    %2489 = vmatprep.subr.mxu0 0.0
    %2490 = vmatpush1.msra.mxu0 0.0
    %2491 = vmatprep.subr.mxu0 0.0
    %2492 = vmatpush1.msra.mxu0 0.0
    %2493 = vmatprep.subr.mxu0 0.0
    %2494 = vmatpush1.msra.mxu0 0.0
    %2495 = vmatprep.subr.mxu0 0.0
    %2496 = vmatpush1.msra.mxu0 0.0
    %2497 = vmatprep.subr.mxu0 0.0
    %2498 = vmatpush1.msra.mxu0 0.0
    %2499 = vmatprep.subr.mxu0 0.0
    %2500 = vmatpush1.msra.mxu0 0.0
    %2501 = vmatprep.subr.mxu0 0.0
    %2502 = vmatpush1.msra.mxu0 0.0
    %2503 = vmatprep.subr.mxu0 0.0
    %2504 = vmatpush1.msra.mxu0 0.0
    %2505 = vmatprep.subr.mxu0 0.0
    %2506 = vmatpush1.msra.mxu0 0.0
    %2507 = vmatprep.subr.mxu0 0.0
    %2508 = vmatpush1.msra.mxu0 0.0
    %2509 = vmatprep.subr.mxu0 0.0
    %2510 = vmatpush1.msra.mxu0 0.0
    %2511 = vmatprep.subr.mxu0 0.0
    %2512 = vmatpush1.msra.mxu0 0.0
    %2513 = vmatprep.mubr.f32.mxu0 0.0
    %2514 = vmatmul.mubr.f32.gmra.mrb[0].mxu0 %v2447
    %v2515 = vpop.f32.mrb[0].mxu0
    %v2516 = vadd.f32 0.0, %v2515
    %v2517 = vpop.f32.mrb[0].mxu0
    %2518 = vdwg.mxu0
    %v2519 = vadd.f32 %v2444, %v2516
    %v2520 = vld [vmem:[%s454 + $0x1] sm:$0x7]
    %v2522 = vsel %vm1160, %v2520, 0
    %2524 = vmatprep.subr.mxu0 0.0
    %2525 = vmatpush1.msra.mxu0 %v48
    %2526 = vmatprep.subr.mxu0 0.0
    %2527 = vmatpush1.msra.mxu0 %v49
    %2528 = vmatprep.subr.mxu0 0.0
    %2529 = vmatpush1.msra.mxu0 0.0
    %2530 = vmatprep.subr.mxu0 0.0
    %2531 = vmatpush1.msra.mxu0 0.0
    %2532 = vmatprep.subr.mxu0 0.0
    %2533 = vmatpush1.msra.mxu0 0.0
    %2534 = vmatprep.subr.mxu0 0.0
    %2535 = vmatpush1.msra.mxu0 0.0
    %2536 = vmatprep.subr.mxu0 0.0
    %2537 = vmatpush1.msra.mxu0 0.0
    %2538 = vmatprep.subr.mxu0 0.0
    %2539 = vmatpush1.msra.mxu0 0.0
    %2540 = vmatprep.subr.mxu0 0.0
    %2541 = vmatpush1.msra.mxu0 0.0
    %2542 = vmatprep.subr.mxu0 0.0
    %2543 = vmatpush1.msra.mxu0 0.0
    %2544 = vmatprep.subr.mxu0 0.0
    %2545 = vmatpush1.msra.mxu0 0.0
    %2546 = vmatprep.subr.mxu0 0.0
    %2547 = vmatpush1.msra.mxu0 0.0
    %2548 = vmatprep.subr.mxu0 0.0
    %2549 = vmatpush1.msra.mxu0 0.0
    %2550 = vmatprep.subr.mxu0 0.0
    %2551 = vmatpush1.msra.mxu0 0.0
    %2552 = vmatprep.subr.mxu0 0.0
    %2553 = vmatpush1.msra.mxu0 0.0
    %2554 = vmatprep.subr.mxu0 0.0
    %2555 = vmatpush1.msra.mxu0 0.0
    %2556 = vmatprep.subr.mxu0 0.0
    %2557 = vmatpush1.msra.mxu0 0.0
    %2558 = vmatprep.subr.mxu0 0.0
    %2559 = vmatpush1.msra.mxu0 0.0
    %2560 = vmatprep.subr.mxu0 0.0
    %2561 = vmatpush1.msra.mxu0 0.0
    %2562 = vmatprep.subr.mxu0 0.0
    %2563 = vmatpush1.msra.mxu0 0.0
    %2564 = vmatprep.subr.mxu0 0.0
    %2565 = vmatpush1.msra.mxu0 0.0
    %2566 = vmatprep.subr.mxu0 0.0
    %2567 = vmatpush1.msra.mxu0 0.0
    %2568 = vmatprep.subr.mxu0 0.0
    %2569 = vmatpush1.msra.mxu0 0.0
    %2570 = vmatprep.subr.mxu0 0.0
    %2571 = vmatpush1.msra.mxu0 0.0
    %2572 = vmatprep.subr.mxu0 0.0
    %2573 = vmatpush1.msra.mxu0 0.0
    %2574 = vmatprep.subr.mxu0 0.0
    %2575 = vmatpush1.msra.mxu0 0.0
    %2576 = vmatprep.subr.mxu0 0.0
    %2577 = vmatpush1.msra.mxu0 0.0
    %2578 = vmatprep.subr.mxu0 0.0
    %2579 = vmatpush1.msra.mxu0 0.0
    %2580 = vmatprep.subr.mxu0 0.0
    %2581 = vmatpush1.msra.mxu0 0.0
    %2582 = vmatprep.subr.mxu0 0.0
    %2583 = vmatpush1.msra.mxu0 0.0
    %2584 = vmatprep.subr.mxu0 0.0
    %2585 = vmatpush1.msra.mxu0 0.0
    %2586 = vmatprep.subr.mxu0 0.0
    %2587 = vmatpush1.msra.mxu0 0.0
    %2588 = vmatprep.mubr.f32.mxu0 0.0
    %2589 = vmatmul.mubr.f32.gmra.mrb[0].mxu0 %v2522
    %v2590 = vpop.f32.mrb[0].mxu0
    %v2591 = vadd.f32 0.0, %v2590
    %v2592 = vpop.f32.mrb[0].mxu0
    %2593 = vdwg.mxu0
    %v2594 = vadd.f32 %v2519, %v2591
    %v2595 = vadd.f32 %v2594, %v1836
    %v2596 = vmax.f32 %v2595, 0.0
    %v2598 = vsel %vm1846, %v2596, 0
    %2600 = vmatprep.subr.mxu0 0.0
    %2601 = vmatpush1.msra.mxu0 %v51
    %2602 = vmatprep.subr.mxu0 0.0
    %2603 = vmatpush1.msra.mxu0 %v52
    %2604 = vmatprep.subr.mxu0 0.0
    %2605 = vmatpush1.msra.mxu0 %v53
    %2606 = vmatprep.subr.mxu0 0.0
    %2607 = vmatpush1.msra.mxu0 %v54
    %2608 = vmatprep.subr.mxu0 0.0
    %2609 = vmatpush1.msra.mxu0 0.0
    %2610 = vmatprep.subr.mxu0 0.0
    %2611 = vmatpush1.msra.mxu0 0.0
    %2612 = vmatprep.subr.mxu0 0.0
    %2613 = vmatpush1.msra.mxu0 0.0
    %2614 = vmatprep.subr.mxu0 0.0
    %2615 = vmatpush1.msra.mxu0 0.0
    %2616 = vmatprep.subr.mxu0 0.0
    %2617 = vmatpush1.msra.mxu0 0.0
    %2618 = vmatprep.subr.mxu0 0.0
    %2619 = vmatpush1.msra.mxu0 0.0
    %2620 = vmatprep.subr.mxu0 0.0
    %2621 = vmatpush1.msra.mxu0 0.0
    %2622 = vmatprep.subr.mxu0 0.0
    %2623 = vmatpush1.msra.mxu0 0.0
    %2624 = vmatprep.subr.mxu0 0.0
    %2625 = vmatpush1.msra.mxu0 0.0
    %2626 = vmatprep.subr.mxu0 0.0
    %2627 = vmatpush1.msra.mxu0 0.0
    %2628 = vmatprep.subr.mxu0 0.0
    %2629 = vmatpush1.msra.mxu0 0.0
    %2630 = vmatprep.subr.mxu0 0.0
    %2631 = vmatpush1.msra.mxu0 0.0
    %2632 = vmatprep.subr.mxu0 0.0
    %2633 = vmatpush1.msra.mxu0 0.0
    %2634 = vmatprep.subr.mxu0 0.0
    %2635 = vmatpush1.msra.mxu0 0.0
    %2636 = vmatprep.subr.mxu0 0.0
    %2637 = vmatpush1.msra.mxu0 0.0
    %2638 = vmatprep.subr.mxu0 0.0
    %2639 = vmatpush1.msra.mxu0 0.0
    %2640 = vmatprep.subr.mxu0 0.0
    %2641 = vmatpush1.msra.mxu0 0.0
    %2642 = vmatprep.subr.mxu0 0.0
    %2643 = vmatpush1.msra.mxu0 0.0
    %2644 = vmatprep.subr.mxu0 0.0
    %2645 = vmatpush1.msra.mxu0 0.0
    %2646 = vmatprep.subr.mxu0 0.0
    %2647 = vmatpush1.msra.mxu0 0.0
    %2648 = vmatprep.subr.mxu0 0.0
    %2649 = vmatpush1.msra.mxu0 0.0
    %2650 = vmatprep.subr.mxu0 0.0
    %2651 = vmatpush1.msra.mxu0 0.0
    %2652 = vmatprep.subr.mxu0 0.0
    %2653 = vmatpush1.msra.mxu0 0.0
    %2654 = vmatprep.subr.mxu0 0.0
    %2655 = vmatpush1.msra.mxu0 0.0
    %2656 = vmatprep.subr.mxu0 0.0
    %2657 = vmatpush1.msra.mxu0 0.0
    %2658 = vmatprep.subr.mxu0 0.0
    %2659 = vmatpush1.msra.mxu0 0.0
    %2660 = vmatprep.subr.mxu0 0.0
    %2661 = vmatpush1.msra.mxu0 0.0
    %2662 = vmatprep.subr.mxu0 0.0
    %2663 = vmatpush1.msra.mxu0 0.0
    %2664 = vmatprep.mubr.f32.mxu0 0.0
    %2665 = vmatmul.mubr.f32.gmra.mrb[0].mxu0 %v2598
    %v2666 = vpop.f32.mrb[0].mxu0
    %v2667 = vadd.f32 %v1844, %v2666
    %v2668 = vpop.f32.mrb[0].mxu0
    %2669 = vdwg.mxu0
    %s2670 = scalar_lea.vmem [#allocation3], 4
    %2671 = vst.msk [vmem:[%s2670] sm:$0x7] %vm1920, %v2667
    %v2672 = vld [vmem:[%s454] sm:$0x7]
    %v2673 = vld [vmem:[%s1000] sm:$0x7]
    %v2675 = vsel %vm1160, %v2673, 0
    %2677 = vmatprep.subr.mxu0 0.0
    %2678 = vmatpush1.msra.mxu0 %v34
    %2679 = vmatprep.subr.mxu0 0.0
    %2680 = vmatpush1.msra.mxu0 %v35
    %2681 = vmatprep.subr.mxu0 0.0
    %2682 = vmatpush1.msra.mxu0 0.0
    %2683 = vmatprep.subr.mxu0 0.0
    %2684 = vmatpush1.msra.mxu0 0.0
    %2685 = vmatprep.subr.mxu0 0.0
    %2686 = vmatpush1.msra.mxu0 0.0
    %2687 = vmatprep.subr.mxu0 0.0
    %2688 = vmatpush1.msra.mxu0 0.0
    %2689 = vmatprep.subr.mxu0 0.0
    %2690 = vmatpush1.msra.mxu0 0.0
    %2691 = vmatprep.subr.mxu0 0.0
    %2692 = vmatpush1.msra.mxu0 0.0
    %2693 = vmatprep.subr.mxu0 0.0
    %2694 = vmatpush1.msra.mxu0 0.0
    %2695 = vmatprep.subr.mxu0 0.0
    %2696 = vmatpush1.msra.mxu0 0.0
    %2697 = vmatprep.subr.mxu0 0.0
    %2698 = vmatpush1.msra.mxu0 0.0
    %2699 = vmatprep.subr.mxu0 0.0
    %2700 = vmatpush1.msra.mxu0 0.0
    %2701 = vmatprep.subr.mxu0 0.0
    %2702 = vmatpush1.msra.mxu0 0.0
    %2703 = vmatprep.subr.mxu0 0.0
    %2704 = vmatpush1.msra.mxu0 0.0
    %2705 = vmatprep.subr.mxu0 0.0
    %2706 = vmatpush1.msra.mxu0 0.0
    %2707 = vmatprep.subr.mxu0 0.0
    %2708 = vmatpush1.msra.mxu0 0.0
    %2709 = vmatprep.subr.mxu0 0.0
    %2710 = vmatpush1.msra.mxu0 0.0
    %2711 = vmatprep.subr.mxu0 0.0
    %2712 = vmatpush1.msra.mxu0 0.0
    %2713 = vmatprep.subr.mxu0 0.0
    %2714 = vmatpush1.msra.mxu0 0.0
    %2715 = vmatprep.subr.mxu0 0.0
    %2716 = vmatpush1.msra.mxu0 0.0
    %2717 = vmatprep.subr.mxu0 0.0
    %2718 = vmatpush1.msra.mxu0 0.0
    %2719 = vmatprep.subr.mxu0 0.0
    %2720 = vmatpush1.msra.mxu0 0.0
    %2721 = vmatprep.subr.mxu0 0.0
    %2722 = vmatpush1.msra.mxu0 0.0
    %2723 = vmatprep.subr.mxu0 0.0
    %2724 = vmatpush1.msra.mxu0 0.0
    %2725 = vmatprep.subr.mxu0 0.0
    %2726 = vmatpush1.msra.mxu0 0.0
    %2727 = vmatprep.subr.mxu0 0.0
    %2728 = vmatpush1.msra.mxu0 0.0
    %2729 = vmatprep.subr.mxu0 0.0
    %2730 = vmatpush1.msra.mxu0 0.0
    %2731 = vmatprep.subr.mxu0 0.0
    %2732 = vmatpush1.msra.mxu0 0.0
    %2733 = vmatprep.subr.mxu0 0.0
    %2734 = vmatpush1.msra.mxu0 0.0
    %2735 = vmatprep.subr.mxu0 0.0
    %2736 = vmatpush1.msra.mxu0 0.0
    %2737 = vmatprep.subr.mxu0 0.0
    %2738 = vmatpush1.msra.mxu0 0.0
    %2739 = vmatprep.subr.mxu0 0.0
    %2740 = vmatpush1.msra.mxu0 0.0
    %2741 = vmatprep.mubr.f32.mxu0 0.0
    %2742 = vmatmul.mubr.f32.gmra.mrb[0].mxu0 %v2675
    %v2743 = vpop.f32.mrb[0].mxu0
    %v2744 = vadd.f32 0.0, %v2743
    %v2745 = vpop.f32.mrb[0].mxu0
    %2746 = vdwg.mxu0
    %v2748 = vsel %vm1160, %v2672, 0
    %2750 = vmatprep.subr.mxu0 0.0
    %2751 = vmatpush1.msra.mxu0 %v32
    %2752 = vmatprep.subr.mxu0 0.0
    %2753 = vmatpush1.msra.mxu0 %v33
    %2754 = vmatprep.subr.mxu0 0.0
    %2755 = vmatpush1.msra.mxu0 0.0
    %2756 = vmatprep.subr.mxu0 0.0
    %2757 = vmatpush1.msra.mxu0 0.0
    %2758 = vmatprep.subr.mxu0 0.0
    %2759 = vmatpush1.msra.mxu0 0.0
    %2760 = vmatprep.subr.mxu0 0.0
    %2761 = vmatpush1.msra.mxu0 0.0
    %2762 = vmatprep.subr.mxu0 0.0
    %2763 = vmatpush1.msra.mxu0 0.0
    %2764 = vmatprep.subr.mxu0 0.0
    %2765 = vmatpush1.msra.mxu0 0.0
    %2766 = vmatprep.subr.mxu0 0.0
    %2767 = vmatpush1.msra.mxu0 0.0
    %2768 = vmatprep.subr.mxu0 0.0
    %2769 = vmatpush1.msra.mxu0 0.0
    %2770 = vmatprep.subr.mxu0 0.0
    %2771 = vmatpush1.msra.mxu0 0.0
    %2772 = vmatprep.subr.mxu0 0.0
    %2773 = vmatpush1.msra.mxu0 0.0
    %2774 = vmatprep.subr.mxu0 0.0
    %2775 = vmatpush1.msra.mxu0 0.0
    %2776 = vmatprep.subr.mxu0 0.0
    %2777 = vmatpush1.msra.mxu0 0.0
    %2778 = vmatprep.subr.mxu0 0.0
    %2779 = vmatpush1.msra.mxu0 0.0
    %2780 = vmatprep.subr.mxu0 0.0
    %2781 = vmatpush1.msra.mxu0 0.0
    %2782 = vmatprep.subr.mxu0 0.0
    %2783 = vmatpush1.msra.mxu0 0.0
    %2784 = vmatprep.subr.mxu0 0.0
    %2785 = vmatpush1.msra.mxu0 0.0
    %2786 = vmatprep.subr.mxu0 0.0
    %2787 = vmatpush1.msra.mxu0 0.0
    %2788 = vmatprep.subr.mxu0 0.0
    %2789 = vmatpush1.msra.mxu0 0.0
    %2790 = vmatprep.subr.mxu0 0.0
    %2791 = vmatpush1.msra.mxu0 0.0
    %2792 = vmatprep.subr.mxu0 0.0
    %2793 = vmatpush1.msra.mxu0 0.0
    %2794 = vmatprep.subr.mxu0 0.0
    %2795 = vmatpush1.msra.mxu0 0.0
    %2796 = vmatprep.subr.mxu0 0.0
    %2797 = vmatpush1.msra.mxu0 0.0
    %2798 = vmatprep.subr.mxu0 0.0
    %2799 = vmatpush1.msra.mxu0 0.0
    %2800 = vmatprep.subr.mxu0 0.0
    %2801 = vmatpush1.msra.mxu0 0.0
    %2802 = vmatprep.subr.mxu0 0.0
    %2803 = vmatpush1.msra.mxu0 0.0
    %2804 = vmatprep.subr.mxu0 0.0
    %2805 = vmatpush1.msra.mxu0 0.0
    %2806 = vmatprep.subr.mxu0 0.0
    %2807 = vmatpush1.msra.mxu0 0.0
    %2808 = vmatprep.subr.mxu0 0.0
    %2809 = vmatpush1.msra.mxu0 0.0
    %2810 = vmatprep.subr.mxu0 0.0
    %2811 = vmatpush1.msra.mxu0 0.0
    %2812 = vmatprep.subr.mxu0 0.0
    %2813 = vmatpush1.msra.mxu0 0.0
    %2814 = vmatprep.mubr.f32.mxu0 0.0
    %2815 = vmatmul.mubr.f32.gmra.mrb[0].mxu0 %v2748
    %v2816 = vpop.f32.mrb[0].mxu0
    %v2817 = vadd.f32 %v2744, %v2816
    %v2818 = vpop.f32.mrb[0].mxu0
    %2819 = vdwg.mxu0
    %v2820 = vld [vmem:[%s454 + $0x1] sm:$0x7]
    %v2822 = vsel %vm1160, %v2820, 0
    %2824 = vmatprep.subr.mxu0 0.0
    %2825 = vmatpush1.msra.mxu0 %v36
    %2826 = vmatprep.subr.mxu0 0.0
    %2827 = vmatpush1.msra.mxu0 %v37
    %2828 = vmatprep.subr.mxu0 0.0
    %2829 = vmatpush1.msra.mxu0 0.0
    %2830 = vmatprep.subr.mxu0 0.0
    %2831 = vmatpush1.msra.mxu0 0.0
    %2832 = vmatprep.subr.mxu0 0.0
    %2833 = vmatpush1.msra.mxu0 0.0
    %2834 = vmatprep.subr.mxu0 0.0
    %2835 = vmatpush1.msra.mxu0 0.0
    %2836 = vmatprep.subr.mxu0 0.0
    %2837 = vmatpush1.msra.mxu0 0.0
    %2838 = vmatprep.subr.mxu0 0.0
    %2839 = vmatpush1.msra.mxu0 0.0
    %2840 = vmatprep.subr.mxu0 0.0
    %2841 = vmatpush1.msra.mxu0 0.0
    %2842 = vmatprep.subr.mxu0 0.0
    %2843 = vmatpush1.msra.mxu0 0.0
    %2844 = vmatprep.subr.mxu0 0.0
    %2845 = vmatpush1.msra.mxu0 0.0
    %2846 = vmatprep.subr.mxu0 0.0
    %2847 = vmatpush1.msra.mxu0 0.0
    %2848 = vmatprep.subr.mxu0 0.0
    %2849 = vmatpush1.msra.mxu0 0.0
    %2850 = vmatprep.subr.mxu0 0.0
    %2851 = vmatpush1.msra.mxu0 0.0
    %2852 = vmatprep.subr.mxu0 0.0
    %2853 = vmatpush1.msra.mxu0 0.0
    %2854 = vmatprep.subr.mxu0 0.0
    %2855 = vmatpush1.msra.mxu0 0.0
    %2856 = vmatprep.subr.mxu0 0.0
    %2857 = vmatpush1.msra.mxu0 0.0
    %2858 = vmatprep.subr.mxu0 0.0
    %2859 = vmatpush1.msra.mxu0 0.0
    %2860 = vmatprep.subr.mxu0 0.0
    %2861 = vmatpush1.msra.mxu0 0.0
    %2862 = vmatprep.subr.mxu0 0.0
    %2863 = vmatpush1.msra.mxu0 0.0
    %2864 = vmatprep.subr.mxu0 0.0
    %2865 = vmatpush1.msra.mxu0 0.0
    %2866 = vmatprep.subr.mxu0 0.0
    %2867 = vmatpush1.msra.mxu0 0.0
    %2868 = vmatprep.subr.mxu0 0.0
    %2869 = vmatpush1.msra.mxu0 0.0
    %2870 = vmatprep.subr.mxu0 0.0
    %2871 = vmatpush1.msra.mxu0 0.0
    %2872 = vmatprep.subr.mxu0 0.0
    %2873 = vmatpush1.msra.mxu0 0.0
    %2874 = vmatprep.subr.mxu0 0.0
    %2875 = vmatpush1.msra.mxu0 0.0
    %2876 = vmatprep.subr.mxu0 0.0
    %2877 = vmatpush1.msra.mxu0 0.0
    %2878 = vmatprep.subr.mxu0 0.0
    %2879 = vmatpush1.msra.mxu0 0.0
    %2880 = vmatprep.subr.mxu0 0.0
    %2881 = vmatpush1.msra.mxu0 0.0
    %2882 = vmatprep.subr.mxu0 0.0
    %2883 = vmatpush1.msra.mxu0 0.0
    %2884 = vmatprep.subr.mxu0 0.0
    %2885 = vmatpush1.msra.mxu0 0.0
    %2886 = vmatprep.subr.mxu0 0.0
    %2887 = vmatpush1.msra.mxu0 0.0
    %2888 = vmatprep.mubr.f32.mxu0 0.0
    %2889 = vmatmul.mubr.f32.gmra.mrb[0].mxu0 %v2822
    %v2890 = vpop.f32.mrb[0].mxu0
    %v2891 = vadd.f32 0.0, %v2890
    %v2892 = vpop.f32.mrb[0].mxu0
    %2893 = vdwg.mxu0
    %v2894 = vadd.f32 %v2817, %v2891
    %v2895 = vld [vmem:[%s532] sm:$0x7]
    %v2897 = vsel %vm1160, %v2895, 0
    %2899 = vmatprep.subr.mxu0 0.0
    %2900 = vmatpush1.msra.mxu0 %v38
    %2901 = vmatprep.subr.mxu0 0.0
    %2902 = vmatpush1.msra.mxu0 %v39
    %2903 = vmatprep.subr.mxu0 0.0
    %2904 = vmatpush1.msra.mxu0 0.0
    %2905 = vmatprep.subr.mxu0 0.0
    %2906 = vmatpush1.msra.mxu0 0.0
    %2907 = vmatprep.subr.mxu0 0.0
    %2908 = vmatpush1.msra.mxu0 0.0
    %2909 = vmatprep.subr.mxu0 0.0
    %2910 = vmatpush1.msra.mxu0 0.0
    %2911 = vmatprep.subr.mxu0 0.0
    %2912 = vmatpush1.msra.mxu0 0.0
    %2913 = vmatprep.subr.mxu0 0.0
    %2914 = vmatpush1.msra.mxu0 0.0
    %2915 = vmatprep.subr.mxu0 0.0
    %2916 = vmatpush1.msra.mxu0 0.0
    %2917 = vmatprep.subr.mxu0 0.0
    %2918 = vmatpush1.msra.mxu0 0.0
    %2919 = vmatprep.subr.mxu0 0.0
    %2920 = vmatpush1.msra.mxu0 0.0
    %2921 = vmatprep.subr.mxu0 0.0
    %2922 = vmatpush1.msra.mxu0 0.0
    %2923 = vmatprep.subr.mxu0 0.0
    %2924 = vmatpush1.msra.mxu0 0.0
    %2925 = vmatprep.subr.mxu0 0.0
    %2926 = vmatpush1.msra.mxu0 0.0
    %2927 = vmatprep.subr.mxu0 0.0
    %2928 = vmatpush1.msra.mxu0 0.0
    %2929 = vmatprep.subr.mxu0 0.0
    %2930 = vmatpush1.msra.mxu0 0.0
    %2931 = vmatprep.subr.mxu0 0.0
    %2932 = vmatpush1.msra.mxu0 0.0
    %2933 = vmatprep.subr.mxu0 0.0
    %2934 = vmatpush1.msra.mxu0 0.0
    %2935 = vmatprep.subr.mxu0 0.0
    %2936 = vmatpush1.msra.mxu0 0.0
    %2937 = vmatprep.subr.mxu0 0.0
    %2938 = vmatpush1.msra.mxu0 0.0
    %2939 = vmatprep.subr.mxu0 0.0
    %2940 = vmatpush1.msra.mxu0 0.0
    %2941 = vmatprep.subr.mxu0 0.0
    %2942 = vmatpush1.msra.mxu0 0.0
    %2943 = vmatprep.subr.mxu0 0.0
    %2944 = vmatpush1.msra.mxu0 0.0
    %2945 = vmatprep.subr.mxu0 0.0
    %2946 = vmatpush1.msra.mxu0 0.0
    %2947 = vmatprep.subr.mxu0 0.0
    %2948 = vmatpush1.msra.mxu0 0.0
    %2949 = vmatprep.subr.mxu0 0.0
    %2950 = vmatpush1.msra.mxu0 0.0
    %2951 = vmatprep.subr.mxu0 0.0
    %2952 = vmatpush1.msra.mxu0 0.0
    %2953 = vmatprep.subr.mxu0 0.0
    %2954 = vmatpush1.msra.mxu0 0.0
    %2955 = vmatprep.subr.mxu0 0.0
    %2956 = vmatpush1.msra.mxu0 0.0
    %2957 = vmatprep.subr.mxu0 0.0
    %2958 = vmatpush1.msra.mxu0 0.0
    %2959 = vmatprep.subr.mxu0 0.0
    %2960 = vmatpush1.msra.mxu0 0.0
    %2961 = vmatprep.subr.mxu0 0.0
    %2962 = vmatpush1.msra.mxu0 0.0
    %2963 = vmatprep.mubr.f32.mxu0 0.0
    %2964 = vmatmul.mubr.f32.gmra.mrb[0].mxu0 %v2897
    %v2965 = vpop.f32.mrb[0].mxu0
    %v2966 = vadd.f32 0.0, %v2965
    %v2967 = vpop.f32.mrb[0].mxu0
    %2968 = vdwg.mxu0
    %v2969 = vadd.f32 %v2894, %v2966
    %v2970 = vld [vmem:[%s1078] sm:$0x7]
    %v2972 = vsel %vm1160, %v2970, 0
    %2974 = vmatprep.subr.mxu0 0.0
    %2975 = vmatpush1.msra.mxu0 %v40
    %2976 = vmatprep.subr.mxu0 0.0
    %2977 = vmatpush1.msra.mxu0 %v41
    %2978 = vmatprep.subr.mxu0 0.0
    %2979 = vmatpush1.msra.mxu0 0.0
    %2980 = vmatprep.subr.mxu0 0.0
    %2981 = vmatpush1.msra.mxu0 0.0
    %2982 = vmatprep.subr.mxu0 0.0
    %2983 = vmatpush1.msra.mxu0 0.0
    %2984 = vmatprep.subr.mxu0 0.0
    %2985 = vmatpush1.msra.mxu0 0.0
    %2986 = vmatprep.subr.mxu0 0.0
    %2987 = vmatpush1.msra.mxu0 0.0
    %2988 = vmatprep.subr.mxu0 0.0
    %2989 = vmatpush1.msra.mxu0 0.0
    %2990 = vmatprep.subr.mxu0 0.0
    %2991 = vmatpush1.msra.mxu0 0.0
    %2992 = vmatprep.subr.mxu0 0.0
    %2993 = vmatpush1.msra.mxu0 0.0
    %2994 = vmatprep.subr.mxu0 0.0
    %2995 = vmatpush1.msra.mxu0 0.0
    %2996 = vmatprep.subr.mxu0 0.0
    %2997 = vmatpush1.msra.mxu0 0.0
    %2998 = vmatprep.subr.mxu0 0.0
    %2999 = vmatpush1.msra.mxu0 0.0
    %3000 = vmatprep.subr.mxu0 0.0
    %3001 = vmatpush1.msra.mxu0 0.0
    %3002 = vmatprep.subr.mxu0 0.0
    %3003 = vmatpush1.msra.mxu0 0.0
    %3004 = vmatprep.subr.mxu0 0.0
    %3005 = vmatpush1.msra.mxu0 0.0
    %3006 = vmatprep.subr.mxu0 0.0
    %3007 = vmatpush1.msra.mxu0 0.0
    %3008 = vmatprep.subr.mxu0 0.0
    %3009 = vmatpush1.msra.mxu0 0.0
    %3010 = vmatprep.subr.mxu0 0.0
    %3011 = vmatpush1.msra.mxu0 0.0
    %3012 = vmatprep.subr.mxu0 0.0
    %3013 = vmatpush1.msra.mxu0 0.0
    %3014 = vmatprep.subr.mxu0 0.0
    %3015 = vmatpush1.msra.mxu0 0.0
    %3016 = vmatprep.subr.mxu0 0.0
    %3017 = vmatpush1.msra.mxu0 0.0
    %3018 = vmatprep.subr.mxu0 0.0
    %3019 = vmatpush1.msra.mxu0 0.0
    %3020 = vmatprep.subr.mxu0 0.0
    %3021 = vmatpush1.msra.mxu0 0.0
    %3022 = vmatprep.subr.mxu0 0.0
    %3023 = vmatpush1.msra.mxu0 0.0
    %3024 = vmatprep.subr.mxu0 0.0
    %3025 = vmatpush1.msra.mxu0 0.0
    %3026 = vmatprep.subr.mxu0 0.0
    %3027 = vmatpush1.msra.mxu0 0.0
    %3028 = vmatprep.subr.mxu0 0.0
    %3029 = vmatpush1.msra.mxu0 0.0
    %3030 = vmatprep.subr.mxu0 0.0
    %3031 = vmatpush1.msra.mxu0 0.0
    %3032 = vmatprep.subr.mxu0 0.0
    %3033 = vmatpush1.msra.mxu0 0.0
    %3034 = vmatprep.subr.mxu0 0.0
    %3035 = vmatpush1.msra.mxu0 0.0
    %3036 = vmatprep.subr.mxu0 0.0
    %3037 = vmatpush1.msra.mxu0 0.0
    %3038 = vmatprep.mubr.f32.mxu0 0.0
    %3039 = vmatmul.mubr.f32.gmra.mrb[0].mxu0 %v2972
    %v3040 = vpop.f32.mrb[0].mxu0
    %v3041 = vadd.f32 0.0, %v3040
    %v3042 = vpop.f32.mrb[0].mxu0
    %3043 = vdwg.mxu0
    %v3044 = vadd.f32 %v2969, %v3041
    %v3045 = vld [vmem:[%s532 + $0x1] sm:$0x7]
    %v3047 = vsel %vm1160, %v3045, 0
    %3049 = vmatprep.subr.mxu0 0.0
    %3050 = vmatpush1.msra.mxu0 %v42
    %3051 = vmatprep.subr.mxu0 0.0
    %3052 = vmatpush1.msra.mxu0 %v43
    %3053 = vmatprep.subr.mxu0 0.0
    %3054 = vmatpush1.msra.mxu0 0.0
    %3055 = vmatprep.subr.mxu0 0.0
    %3056 = vmatpush1.msra.mxu0 0.0
    %3057 = vmatprep.subr.mxu0 0.0
    %3058 = vmatpush1.msra.mxu0 0.0
    %3059 = vmatprep.subr.mxu0 0.0
    %3060 = vmatpush1.msra.mxu0 0.0
    %3061 = vmatprep.subr.mxu0 0.0
    %3062 = vmatpush1.msra.mxu0 0.0
    %3063 = vmatprep.subr.mxu0 0.0
    %3064 = vmatpush1.msra.mxu0 0.0
    %3065 = vmatprep.subr.mxu0 0.0
    %3066 = vmatpush1.msra.mxu0 0.0
    %3067 = vmatprep.subr.mxu0 0.0
    %3068 = vmatpush1.msra.mxu0 0.0
    %3069 = vmatprep.subr.mxu0 0.0
    %3070 = vmatpush1.msra.mxu0 0.0
    %3071 = vmatprep.subr.mxu0 0.0
    %3072 = vmatpush1.msra.mxu0 0.0
    %3073 = vmatprep.subr.mxu0 0.0
    %3074 = vmatpush1.msra.mxu0 0.0
    %3075 = vmatprep.subr.mxu0 0.0
    %3076 = vmatpush1.msra.mxu0 0.0
    %3077 = vmatprep.subr.mxu0 0.0
    %3078 = vmatpush1.msra.mxu0 0.0
    %3079 = vmatprep.subr.mxu0 0.0
    %3080 = vmatpush1.msra.mxu0 0.0
    %3081 = vmatprep.subr.mxu0 0.0
    %3082 = vmatpush1.msra.mxu0 0.0
    %3083 = vmatprep.subr.mxu0 0.0
    %3084 = vmatpush1.msra.mxu0 0.0
    %3085 = vmatprep.subr.mxu0 0.0
    %3086 = vmatpush1.msra.mxu0 0.0
    %3087 = vmatprep.subr.mxu0 0.0
    %3088 = vmatpush1.msra.mxu0 0.0
    %3089 = vmatprep.subr.mxu0 0.0
    %3090 = vmatpush1.msra.mxu0 0.0
    %3091 = vmatprep.subr.mxu0 0.0
    %3092 = vmatpush1.msra.mxu0 0.0
    %3093 = vmatprep.subr.mxu0 0.0
    %3094 = vmatpush1.msra.mxu0 0.0
    %3095 = vmatprep.subr.mxu0 0.0
    %3096 = vmatpush1.msra.mxu0 0.0
    %3097 = vmatprep.subr.mxu0 0.0
    %3098 = vmatpush1.msra.mxu0 0.0
    %3099 = vmatprep.subr.mxu0 0.0
    %3100 = vmatpush1.msra.mxu0 0.0
    %3101 = vmatprep.subr.mxu0 0.0
    %3102 = vmatpush1.msra.mxu0 0.0
    %3103 = vmatprep.subr.mxu0 0.0
    %3104 = vmatpush1.msra.mxu0 0.0
    %3105 = vmatprep.subr.mxu0 0.0
    %3106 = vmatpush1.msra.mxu0 0.0
    %3107 = vmatprep.subr.mxu0 0.0
    %3108 = vmatpush1.msra.mxu0 0.0
    %3109 = vmatprep.subr.mxu0 0.0
    %3110 = vmatpush1.msra.mxu0 0.0
    %3111 = vmatprep.subr.mxu0 0.0
    %3112 = vmatpush1.msra.mxu0 0.0
    %3113 = vmatprep.mubr.f32.mxu0 0.0
    %3114 = vmatmul.mubr.f32.gmra.mrb[0].mxu0 %v3047
    %v3115 = vpop.f32.mrb[0].mxu0
    %v3116 = vadd.f32 0.0, %v3115
    %v3117 = vpop.f32.mrb[0].mxu0
    %3118 = vdwg.mxu0
    %v3119 = vadd.f32 %v3044, %v3116
    %v3120 = vld [vmem:[%s610] sm:$0x7]
    %v3122 = vsel %vm1160, %v3120, 0
    %3124 = vmatprep.subr.mxu0 0.0
    %3125 = vmatpush1.msra.mxu0 %v44
    %3126 = vmatprep.subr.mxu0 0.0
    %3127 = vmatpush1.msra.mxu0 %v45
    %3128 = vmatprep.subr.mxu0 0.0
    %3129 = vmatpush1.msra.mxu0 0.0
    %3130 = vmatprep.subr.mxu0 0.0
    %3131 = vmatpush1.msra.mxu0 0.0
    %3132 = vmatprep.subr.mxu0 0.0
    %3133 = vmatpush1.msra.mxu0 0.0
    %3134 = vmatprep.subr.mxu0 0.0
    %3135 = vmatpush1.msra.mxu0 0.0
    %3136 = vmatprep.subr.mxu0 0.0
    %3137 = vmatpush1.msra.mxu0 0.0
    %3138 = vmatprep.subr.mxu0 0.0
    %3139 = vmatpush1.msra.mxu0 0.0
    %3140 = vmatprep.subr.mxu0 0.0
    %3141 = vmatpush1.msra.mxu0 0.0
    %3142 = vmatprep.subr.mxu0 0.0
    %3143 = vmatpush1.msra.mxu0 0.0
    %3144 = vmatprep.subr.mxu0 0.0
    %3145 = vmatpush1.msra.mxu0 0.0
    %3146 = vmatprep.subr.mxu0 0.0
    %3147 = vmatpush1.msra.mxu0 0.0
    %3148 = vmatprep.subr.mxu0 0.0
    %3149 = vmatpush1.msra.mxu0 0.0
    %3150 = vmatprep.subr.mxu0 0.0
    %3151 = vmatpush1.msra.mxu0 0.0
    %3152 = vmatprep.subr.mxu0 0.0
    %3153 = vmatpush1.msra.mxu0 0.0
    %3154 = vmatprep.subr.mxu0 0.0
    %3155 = vmatpush1.msra.mxu0 0.0
    %3156 = vmatprep.subr.mxu0 0.0
    %3157 = vmatpush1.msra.mxu0 0.0
    %3158 = vmatprep.subr.mxu0 0.0
    %3159 = vmatpush1.msra.mxu0 0.0
    %3160 = vmatprep.subr.mxu0 0.0
    %3161 = vmatpush1.msra.mxu0 0.0
    %3162 = vmatprep.subr.mxu0 0.0
    %3163 = vmatpush1.msra.mxu0 0.0
    %3164 = vmatprep.subr.mxu0 0.0
    %3165 = vmatpush1.msra.mxu0 0.0
    %3166 = vmatprep.subr.mxu0 0.0
    %3167 = vmatpush1.msra.mxu0 0.0
    %3168 = vmatprep.subr.mxu0 0.0
    %3169 = vmatpush1.msra.mxu0 0.0
    %3170 = vmatprep.subr.mxu0 0.0
    %3171 = vmatpush1.msra.mxu0 0.0
    %3172 = vmatprep.subr.mxu0 0.0
    %3173 = vmatpush1.msra.mxu0 0.0
    %3174 = vmatprep.subr.mxu0 0.0
    %3175 = vmatpush1.msra.mxu0 0.0
    %3176 = vmatprep.subr.mxu0 0.0
    %3177 = vmatpush1.msra.mxu0 0.0
    %3178 = vmatprep.subr.mxu0 0.0
    %3179 = vmatpush1.msra.mxu0 0.0
    %3180 = vmatprep.subr.mxu0 0.0
    %3181 = vmatpush1.msra.mxu0 0.0
    %3182 = vmatprep.subr.mxu0 0.0
    %3183 = vmatpush1.msra.mxu0 0.0
    %3184 = vmatprep.subr.mxu0 0.0
    %3185 = vmatpush1.msra.mxu0 0.0
    %3186 = vmatprep.subr.mxu0 0.0
    %3187 = vmatpush1.msra.mxu0 0.0
    %3188 = vmatprep.mubr.f32.mxu0 0.0
    %3189 = vmatmul.mubr.f32.gmra.mrb[0].mxu0 %v3122
    %v3190 = vpop.f32.mrb[0].mxu0
    %v3191 = vadd.f32 0.0, %v3190
    %v3192 = vpop.f32.mrb[0].mxu0
    %3193 = vdwg.mxu0
    %v3194 = vadd.f32 %v3119, %v3191
    %v3195 = vld [vmem:[%s1156] sm:$0x7]
    %v3197 = vsel %vm1160, %v3195, 0
    %3199 = vmatprep.subr.mxu0 0.0
    %3200 = vmatpush1.msra.mxu0 %v46
    %3201 = vmatprep.subr.mxu0 0.0
    %3202 = vmatpush1.msra.mxu0 %v47
    %3203 = vmatprep.subr.mxu0 0.0
    %3204 = vmatpush1.msra.mxu0 0.0
    %3205 = vmatprep.subr.mxu0 0.0
    %3206 = vmatpush1.msra.mxu0 0.0
    %3207 = vmatprep.subr.mxu0 0.0
    %3208 = vmatpush1.msra.mxu0 0.0
    %3209 = vmatprep.subr.mxu0 0.0
    %3210 = vmatpush1.msra.mxu0 0.0
    %3211 = vmatprep.subr.mxu0 0.0
    %3212 = vmatpush1.msra.mxu0 0.0
    %3213 = vmatprep.subr.mxu0 0.0
    %3214 = vmatpush1.msra.mxu0 0.0
    %3215 = vmatprep.subr.mxu0 0.0
    %3216 = vmatpush1.msra.mxu0 0.0
    %3217 = vmatprep.subr.mxu0 0.0
    %3218 = vmatpush1.msra.mxu0 0.0
    %3219 = vmatprep.subr.mxu0 0.0
    %3220 = vmatpush1.msra.mxu0 0.0
    %3221 = vmatprep.subr.mxu0 0.0
    %3222 = vmatpush1.msra.mxu0 0.0
    %3223 = vmatprep.subr.mxu0 0.0
    %3224 = vmatpush1.msra.mxu0 0.0
    %3225 = vmatprep.subr.mxu0 0.0
    %3226 = vmatpush1.msra.mxu0 0.0
    %3227 = vmatprep.subr.mxu0 0.0
    %3228 = vmatpush1.msra.mxu0 0.0
    %3229 = vmatprep.subr.mxu0 0.0
    %3230 = vmatpush1.msra.mxu0 0.0
    %3231 = vmatprep.subr.mxu0 0.0
    %3232 = vmatpush1.msra.mxu0 0.0
    %3233 = vmatprep.subr.mxu0 0.0
    %3234 = vmatpush1.msra.mxu0 0.0
    %3235 = vmatprep.subr.mxu0 0.0
    %3236 = vmatpush1.msra.mxu0 0.0
    %3237 = vmatprep.subr.mxu0 0.0
    %3238 = vmatpush1.msra.mxu0 0.0
    %3239 = vmatprep.subr.mxu0 0.0
    %3240 = vmatpush1.msra.mxu0 0.0
    %3241 = vmatprep.subr.mxu0 0.0
    %3242 = vmatpush1.msra.mxu0 0.0
    %3243 = vmatprep.subr.mxu0 0.0
    %3244 = vmatpush1.msra.mxu0 0.0
    %3245 = vmatprep.subr.mxu0 0.0
    %3246 = vmatpush1.msra.mxu0 0.0
    %3247 = vmatprep.subr.mxu0 0.0
    %3248 = vmatpush1.msra.mxu0 0.0
    %3249 = vmatprep.subr.mxu0 0.0
    %3250 = vmatpush1.msra.mxu0 0.0
    %3251 = vmatprep.subr.mxu0 0.0
    %3252 = vmatpush1.msra.mxu0 0.0
    %3253 = vmatprep.subr.mxu0 0.0
    %3254 = vmatpush1.msra.mxu0 0.0
    %3255 = vmatprep.subr.mxu0 0.0
    %3256 = vmatpush1.msra.mxu0 0.0
    %3257 = vmatprep.subr.mxu0 0.0
    %3258 = vmatpush1.msra.mxu0 0.0
    %3259 = vmatprep.subr.mxu0 0.0
    %3260 = vmatpush1.msra.mxu0 0.0
    %3261 = vmatprep.subr.mxu0 0.0
    %3262 = vmatpush1.msra.mxu0 0.0
    %3263 = vmatprep.mubr.f32.mxu0 0.0
    %3264 = vmatmul.mubr.f32.gmra.mrb[0].mxu0 %v3197
    %v3265 = vpop.f32.mrb[0].mxu0
    %v3266 = vadd.f32 0.0, %v3265
    %v3267 = vpop.f32.mrb[0].mxu0
    %3268 = vdwg.mxu0
    %v3269 = vadd.f32 %v3194, %v3266
    %v3270 = vld [vmem:[%s610 + $0x1] sm:$0x7]
    %v3272 = vsel %vm1160, %v3270, 0
    %3274 = vmatprep.subr.mxu0 0.0
    %3275 = vmatpush1.msra.mxu0 %v48
    %3276 = vmatprep.subr.mxu0 0.0
    %3277 = vmatpush1.msra.mxu0 %v49
    %3278 = vmatprep.subr.mxu0 0.0
    %3279 = vmatpush1.msra.mxu0 0.0
    %3280 = vmatprep.subr.mxu0 0.0
    %3281 = vmatpush1.msra.mxu0 0.0
    %3282 = vmatprep.subr.mxu0 0.0
    %3283 = vmatpush1.msra.mxu0 0.0
    %3284 = vmatprep.subr.mxu0 0.0
    %3285 = vmatpush1.msra.mxu0 0.0
    %3286 = vmatprep.subr.mxu0 0.0
    %3287 = vmatpush1.msra.mxu0 0.0
    %3288 = vmatprep.subr.mxu0 0.0
    %3289 = vmatpush1.msra.mxu0 0.0
    %3290 = vmatprep.subr.mxu0 0.0
    %3291 = vmatpush1.msra.mxu0 0.0
    %3292 = vmatprep.subr.mxu0 0.0
    %3293 = vmatpush1.msra.mxu0 0.0
    %3294 = vmatprep.subr.mxu0 0.0
    %3295 = vmatpush1.msra.mxu0 0.0
    %3296 = vmatprep.subr.mxu0 0.0
    %3297 = vmatpush1.msra.mxu0 0.0
    %3298 = vmatprep.subr.mxu0 0.0
    %3299 = vmatpush1.msra.mxu0 0.0
    %3300 = vmatprep.subr.mxu0 0.0
    %3301 = vmatpush1.msra.mxu0 0.0
    %3302 = vmatprep.subr.mxu0 0.0
    %3303 = vmatpush1.msra.mxu0 0.0
    %3304 = vmatprep.subr.mxu0 0.0
    %3305 = vmatpush1.msra.mxu0 0.0
    %3306 = vmatprep.subr.mxu0 0.0
    %3307 = vmatpush1.msra.mxu0 0.0
    %3308 = vmatprep.subr.mxu0 0.0
    %3309 = vmatpush1.msra.mxu0 0.0
    %3310 = vmatprep.subr.mxu0 0.0
    %3311 = vmatpush1.msra.mxu0 0.0
    %3312 = vmatprep.subr.mxu0 0.0
    %3313 = vmatpush1.msra.mxu0 0.0
    %3314 = vmatprep.subr.mxu0 0.0
    %3315 = vmatpush1.msra.mxu0 0.0
    %3316 = vmatprep.subr.mxu0 0.0
    %3317 = vmatpush1.msra.mxu0 0.0
    %3318 = vmatprep.subr.mxu0 0.0
    %3319 = vmatpush1.msra.mxu0 0.0
    %3320 = vmatprep.subr.mxu0 0.0
    %3321 = vmatpush1.msra.mxu0 0.0
    %3322 = vmatprep.subr.mxu0 0.0
    %3323 = vmatpush1.msra.mxu0 0.0
    %3324 = vmatprep.subr.mxu0 0.0
    %3325 = vmatpush1.msra.mxu0 0.0
    %3326 = vmatprep.subr.mxu0 0.0
    %3327 = vmatpush1.msra.mxu0 0.0
    %3328 = vmatprep.subr.mxu0 0.0
    %3329 = vmatpush1.msra.mxu0 0.0
    %3330 = vmatprep.subr.mxu0 0.0
    %3331 = vmatpush1.msra.mxu0 0.0
    %3332 = vmatprep.subr.mxu0 0.0
    %3333 = vmatpush1.msra.mxu0 0.0
    %3334 = vmatprep.subr.mxu0 0.0
    %3335 = vmatpush1.msra.mxu0 0.0
    %3336 = vmatprep.subr.mxu0 0.0
    %3337 = vmatpush1.msra.mxu0 0.0
    %3338 = vmatprep.mubr.f32.mxu0 0.0
    %3339 = vmatmul.mubr.f32.gmra.mrb[0].mxu0 %v3272
    %v3340 = vpop.f32.mrb[0].mxu0
    %v3341 = vadd.f32 0.0, %v3340
    %v3342 = vpop.f32.mrb[0].mxu0
    %3343 = vdwg.mxu0
    %v3344 = vadd.f32 %v3269, %v3341
    %v3345 = vadd.f32 %v3344, %v1836
    %v3346 = vmax.f32 %v3345, 0.0
    %v3348 = vsel %vm1846, %v3346, 0
    %3350 = vmatprep.subr.mxu0 0.0
    %3351 = vmatpush1.msra.mxu0 %v51
    %3352 = vmatprep.subr.mxu0 0.0
    %3353 = vmatpush1.msra.mxu0 %v52
    %3354 = vmatprep.subr.mxu0 0.0
    %3355 = vmatpush1.msra.mxu0 %v53
    %3356 = vmatprep.subr.mxu0 0.0
    %3357 = vmatpush1.msra.mxu0 %v54
    %3358 = vmatprep.subr.mxu0 0.0
    %3359 = vmatpush1.msra.mxu0 0.0
    %3360 = vmatprep.subr.mxu0 0.0
    %3361 = vmatpush1.msra.mxu0 0.0
    %3362 = vmatprep.subr.mxu0 0.0
    %3363 = vmatpush1.msra.mxu0 0.0
    %3364 = vmatprep.subr.mxu0 0.0
    %3365 = vmatpush1.msra.mxu0 0.0
    %3366 = vmatprep.subr.mxu0 0.0
    %3367 = vmatpush1.msra.mxu0 0.0
    %3368 = vmatprep.subr.mxu0 0.0
    %3369 = vmatpush1.msra.mxu0 0.0
    %3370 = vmatprep.subr.mxu0 0.0
    %3371 = vmatpush1.msra.mxu0 0.0
    %3372 = vmatprep.subr.mxu0 0.0
    %3373 = vmatpush1.msra.mxu0 0.0
    %3374 = vmatprep.subr.mxu0 0.0
    %3375 = vmatpush1.msra.mxu0 0.0
    %3376 = vmatprep.subr.mxu0 0.0
    %3377 = vmatpush1.msra.mxu0 0.0
    %3378 = vmatprep.subr.mxu0 0.0
    %3379 = vmatpush1.msra.mxu0 0.0
    %3380 = vmatprep.subr.mxu0 0.0
    %3381 = vmatpush1.msra.mxu0 0.0
    %3382 = vmatprep.subr.mxu0 0.0
    %3383 = vmatpush1.msra.mxu0 0.0
    %3384 = vmatprep.subr.mxu0 0.0
    %3385 = vmatpush1.msra.mxu0 0.0
    %3386 = vmatprep.subr.mxu0 0.0
    %3387 = vmatpush1.msra.mxu0 0.0
    %3388 = vmatprep.subr.mxu0 0.0
    %3389 = vmatpush1.msra.mxu0 0.0
    %3390 = vmatprep.subr.mxu0 0.0
    %3391 = vmatpush1.msra.mxu0 0.0
    %3392 = vmatprep.subr.mxu0 0.0
    %3393 = vmatpush1.msra.mxu0 0.0
    %3394 = vmatprep.subr.mxu0 0.0
    %3395 = vmatpush1.msra.mxu0 0.0
    %3396 = vmatprep.subr.mxu0 0.0
    %3397 = vmatpush1.msra.mxu0 0.0
    %3398 = vmatprep.subr.mxu0 0.0
    %3399 = vmatpush1.msra.mxu0 0.0
    %3400 = vmatprep.subr.mxu0 0.0
    %3401 = vmatpush1.msra.mxu0 0.0
    %3402 = vmatprep.subr.mxu0 0.0
    %3403 = vmatpush1.msra.mxu0 0.0
    %3404 = vmatprep.subr.mxu0 0.0
    %3405 = vmatpush1.msra.mxu0 0.0
    %3406 = vmatprep.subr.mxu0 0.0
    %3407 = vmatpush1.msra.mxu0 0.0
    %3408 = vmatprep.subr.mxu0 0.0
    %3409 = vmatpush1.msra.mxu0 0.0
    %3410 = vmatprep.subr.mxu0 0.0
    %3411 = vmatpush1.msra.mxu0 0.0
    %3412 = vmatprep.subr.mxu0 0.0
    %3413 = vmatpush1.msra.mxu0 0.0
    %3414 = vmatprep.mubr.f32.mxu0 0.0
    %3415 = vmatmul.mubr.f32.gmra.mrb[0].mxu0 %v3348
    %v3416 = vpop.f32.mrb[0].mxu0
    %v3417 = vadd.f32 %v1844, %v3416
    %v3418 = vpop.f32.mrb[0].mxu0
    %3419 = vdwg.mxu0
    %s3420 = scalar_lea.vmem [#allocation3], 8
    %3421 = vst.msk [vmem:[%s3420] sm:$0x7] %vm1920, %v3417
    // Predicated region
    $region30: #{_temple_impl.1} parent=1 // pred_check
      _
    $region31: #{_temple_impl.1} parent=1 // pred_check_branch
      %3423 = sbr.rel (0) target = $region33
    $region32: #{_temple_impl.1} parent=1 // pred_region
      %s3425 = ssub.s32 192, 192
      %3426 = vsyncadd [#allocation4], %s3425
      %s3427 = sshll.u32 [#allocation3], 4
      %s3428 = int_to_ptr.vmem [resolvable:$true] %s3427
      %3433 = dma.vmem_to_hbm [thread:$0]  %s3428, 192, %s7, [#allocation4], 64, 64, 4
    $region33: #{_temple_impl.1} parent=1 // pred_fallthru
      _
    // Predicated region
    $region34: #{_temple_impl.1} parent=1 // pred_check
      _
    $region35: #{_temple_impl.1} parent=1 // pred_check_branch
      %3435 = sbr.rel (0) target = $region37
    $region36: #{_temple_impl.1} parent=1 // pred_region
      %3436 = dma.done [#allocation4], 192
    $region37: #{_temple_impl.1} parent=1 // pred_fallthru
      _
    %3437 = vsyncpa [#allocation4], 1

</llo_original>
